<compile_context>
chip_gen: v6e
topology: v6e:2x2x1
jax: 0.10.0
libtpu: 0.0.40
codegen_flags: <defaults>
</compile_context>

<pallas_src>
import functools

import jax
import jax.numpy as jnp
from jax import lax
from jax.experimental import pallas as pl
from jax.experimental.pallas import tpu as pltpu

LANE = 128
SUB = 8


def _round_up(x, m):
    return ((x + m - 1) // m) * m


# ----------------------------------------------------------------------------
# Fused Pallas kernel: full BaseModel forward for Bt batch elements per step.
# Activations are channel-first, lane-dense: (C, Bt*N*N).
# ----------------------------------------------------------------------------
def _base_model_kernel(x_ref, w_ref, o_ref, *, layout, n, bt):
    nn = n * n

    def slab(ent):
        r, c, off = ent
        return w_ref[0:r, off:off + c]          # static, 128-aligned lane offset

    v = x_ref[0].astype(jnp.float32)            # (C0, Bt*N*N)

    for blk in layout:
        f = blk["f"]

        # ---- MLP1 & MLP2 fused into stacked rows (2F, P).
        #      Layer 0: both consume v -> one dot with row-concatenated weights.
        #      Layers 1..depth-1: block-diagonal weights -> one dot per layer.
        h = jnp.dot(slab(blk["w0"]), v,
                    preferred_element_type=jnp.float32) + slab(blk["b0"])
        h = jnp.maximum(h, 0.0)                 # (2F, P)
        for we, be in zip(blk["wl"], blk["bl"]):
            h = jnp.dot(slab(we), h,
                        preferred_element_type=jnp.float32) + slab(be)
            h = jnp.maximum(h, 0.0)

        m1 = h[0:f, :]                          # (F, P)
        m2 = h[f:2 * f, :]                      # (F, P)

        # ---- Per-(batch, channel) NxN matmul on the MXU:
        #      channel-batched dot_general, one reshape each way.
        parts = []
        for b in range(bt):                     # bt is small & static
            m1_b = m1[:, b * nn:(b + 1) * nn].reshape(f, n, n)   # (c, i, k)
            m2_b = m2[:, b * nn:(b + 1) * nn].reshape(f, n, n)   # (c, k, j)
            mm = lax.dot_general(
                m1_b, m2_b,
                dimension_numbers=(((2,), (1,)), ((0,), (0,))),
                preferred_element_type=jnp.float32)              # (c, i, j)
            parts.append(mm.reshape(f, nn))
        mult = parts[0] if bt == 1 else jnp.concatenate(parts, axis=1)  # (F, P)

        # ---- Skip conv over concat(v, mult), fused algebraically
        #      (no concat buffer; x-part and mult-part dots + bias).
        v = (jnp.dot(slab(blk["swx"]), v, preferred_element_type=jnp.float32)
             + jnp.dot(slab(blk["swm"]), mult, preferred_element_type=jnp.float32)
             + slab(blk["sb"]))                 # (F_out, P)

    o_ref[0] = v.astype(o_ref.dtype)


# ----------------------------------------------------------------------------
# Parameter construction (deterministic, synthetic)
# ----------------------------------------------------------------------------
def _init_linear(key, cin, cout):
    kw, kb = jax.random.split(key)
    w = jax.random.normal(kw, (cin, cout), jnp.float32) / jnp.sqrt(float(cin))
    b = 0.01 * jax.random.normal(kb, (1, cout), jnp.float32)
    return w, b


def _init_mlp(key, cin, cout, depth):
    layers = []
    c = cin
    for _ in range(depth):
        key, sub = jax.random.split(key)
        layers.append(_init_linear(sub, c, cout))
        c = cout
    return layers


def init_base_model(key, original_features_num, num_blocks, in_features,
                    out_features, depth_of_mlp):
    blocks = []
    last = original_features_num
    feats = [in_features] * (num_blocks - 1) + [out_features]
    for f in feats:
        key, k1, k2, k3 = jax.random.split(key, 4)
        blocks.append({
            "mlp1": _init_mlp(k1, last, f, depth_of_mlp),
            "mlp2": _init_mlp(k2, last, f, depth_of_mlp),
            "skip": _init_linear(k3, last + f, f),
        })
        last = f
    return blocks


# ----------------------------------------------------------------------------
# Host-side weight packing: one (8,128)-aligned 2D buffer, static slab layout.
# Weights are stored transposed (channel-first math) and pre-fused:
#   w0 = [mlp1_l0.T ; mlp2_l0.T]          (shared-input fusion)
#   wl = blockdiag(mlp1_l.T, mlp2_l.T)    (per deeper layer)
#   swx / swm = split skip weight (x part / mult part), transposed
# ----------------------------------------------------------------------------
def _pack_weights(blocks):
    slabs = []       # (array, col_offset)
    layout = []
    col = 0

    def add(mat):
        nonlocal col
        mat = jnp.asarray(mat, jnp.float32)
        r, c = mat.shape
        ent = (r, c, col)
        slabs.append((mat, col))
        col += _round_up(c, LANE)
        return ent

    for p in blocks:
        c_in, f = p["mlp1"][0][0].shape
        depth = len(p["mlp1"])
        sw, sb = p["skip"]
        ent = {"f": f, "c_in": c_in}
        ent["w0"] = add(jnp.concatenate(
            [p["mlp1"][0][0].T, p["mlp2"][0][0].T], axis=0))       # (2F, C_in)
        ent["b0"] = add(jnp.concatenate(
            [p["mlp1"][0][1].T, p["mlp2"][0][1].T], axis=0))       # (2F, 1)
        ent["wl"], ent["bl"] = [], []
        for l in range(1, depth):
            w1t, w2t = p["mlp1"][l][0].T, p["mlp2"][l][0].T
            z = jnp.zeros((f, f), jnp.float32)
            ent["wl"].append(add(jnp.block([[w1t, z], [z, w2t]]))) # (2F, 2F)
            ent["bl"].append(add(jnp.concatenate(
                [p["mlp1"][l][1].T, p["mlp2"][l][1].T], axis=0)))  # (2F, 1)
        ent["swx"] = add(sw[:c_in].T)                              # (F_out, C_in)
        ent["swm"] = add(sw[c_in:].T)                              # (F_out, F)
        ent["sb"] = add(sb.T)                                      # (F_out, 1)
        layout.append(ent)

    rows = _round_up(max(m.shape[0] for m, _ in slabs), SUB)
    packed = jnp.zeros((rows, col), jnp.float32)
    for m, off in slabs:
        packed = packed.at[:m.shape[0], off:off + m.shape[1]].set(m)
    return packed, layout


def _pick_batch_tile(batch, cap=8):
    """Largest divisor of `batch` (<= cap) that still leaves >= 2 grid steps,
    so the 'parallel' grid axis can shard across 2 TensorCores on v7x."""
    best = 1
    for d in range(1, min(batch, cap) + 1):
        if batch % d == 0 and batch // d >= 2:
            best = d
    return best


# ----------------------------------------------------------------------------
# Forward pass: one fused pallas_call for the whole model.
# ----------------------------------------------------------------------------
def base_model_forward(x, blocks, original_features_num, batch_tile=None):
    """x: (B, N, N, original_features_num) -> (B, N, N, out_features)."""
    if x.shape[3] != original_features_num:
        print("expected input feature {} and got {}".format(
            original_features_num, x.shape[3]))
        return None

    B, N, _, C0 = x.shape
    NN = N * N
    F_out = blocks[-1]["skip"][0].shape[1]

    bt = batch_tile if batch_tile is not None else _pick_batch_tile(B)
    assert B % bt == 0
    G = B // bt
    P = bt * NN

    packed, layout = _pack_weights(blocks)
    R, CT = packed.shape

    # Channel-first, lane-dense layout: (grid, C0, Bt*N*N).
    # (Wrapper-side layout plumbing; the torch permutes are absorbed here.)
    x_cf = x.transpose(0, 3, 1, 2).reshape(B, C0, NN)
    x_pk = (x_cf.reshape(G, bt, C0, NN)
                .transpose(0, 2, 1, 3)
                .reshape(G, C0, P))

    out_pk = pl.pallas_call(
        functools.partial(_base_model_kernel, layout=layout, n=N, bt=bt),
        out_shape=jax.ShapeDtypeStruct((G, F_out, P), x.dtype),
        grid_spec=pltpu.PrefetchScalarGridSpec(
            num_scalar_prefetch=0,
            grid=(G,),
            in_specs=[
                pl.BlockSpec((1, C0, P), lambda g: (g, 0, 0)),
                pl.BlockSpec((R, CT), lambda g: (0, 0)),   # single packed weight DMA
            ],
            out_specs=pl.BlockSpec((1, F_out, P), lambda g: (g, 0, 0)),
        ),
        compiler_params=pltpu.CompilerParams(
            dimension_semantics=("parallel",)),
    )(x_pk, packed)

    # Lane-dense output slab back to (B, N, N, F_out).
    out = (out_pk.reshape(G, F_out, bt, NN)
                 .transpose(0, 2, 1, 3)
                 .reshape(B, F_out, N, N)
                 .transpose(0, 2, 3, 1))
    return out


# ----------------------------------------------------------------------------
# Pure-JAX reference for a correctness check
# ----------------------------------------------------------------------------
def _ref_forward(x, blocks):
    def mlp(x2d, layers):
        o = x2d
        for w, b in layers:
            o = jnp.maximum(o @ w + b, 0.0)
        return o

    out = x
    for p in blocks:
        B, N, _, C = out.shape
        x2d = out.reshape(B * N * N, C)
        m1 = mlp(x2d, p["mlp1"]).reshape(B, N, N, -1)
        m2 = mlp(x2d, p["mlp2"]).reshape(B, N, N, -1)
        mult = jnp.einsum("bikc,bkjc->bijc", m1, m2)
        cat = jnp.concatenate([out, mult], axis=-1)
        sw, sb = p["skip"]
        out = (cat.reshape(B * N * N, -1) @ sw + sb).reshape(B, N, N, -1)
    return out


# ----------------------------------------------------------------------------
if __name__ == "__main__":
    # Module hyperparameters (small, synthetic).
    original_features_num = 4
    num_blocks = 2
    in_features = 16
    out_features = 8
    depth_of_mlp = 2
    # freeze_mlp only toggles requires_grad in PyTorch; no effect on forward.
    freeze_mlp = [False] * num_blocks  # noqa: F841

    B, N = 2, 16  # batch of graphs, n_vertices

    key = jax.random.PRNGKey(0)
    key, kx, kp = jax.random.split(key, 3)
    x = jax.random.normal(kx, (B, N, N, original_features_num), jnp.float32)
    blocks = init_base_model(kp, original_features_num, num_blocks,
                             in_features, out_features, depth_of_mlp)

    out = base_model_forward(x, blocks, original_features_num)
    out = jax.block_until_ready(out)

    assert out.shape == (B, N, N, out_features), out.shape

    ref = _ref_forward(x, blocks)
    assert jnp.allclose(out, ref, atol=1e-4, rtol=1e-4), \
        float(jnp.max(jnp.abs(out - ref)))

    print("KERNEL_OK")
</pallas_src>

<mosaic_0001>
module attributes {stable_mosaic.version = 11 : i64} {
  func.func @_base_model_kernel(%arg0: i32, %arg1: memref<1x4x256xf32, #tpu.memory_space<vmem>>, %arg2: memref<32x1792xf32, #tpu.memory_space<vmem>>, %arg3: memref<1x8x256xf32, #tpu.memory_space<vmem>>) attributes {dimension_semantics = [#tpu.dimension_semantics<parallel>], iteration_bounds = array<i64: 2>, scalar_prefetch = 0 : i64, scratch_operands = 0 : i64, tpu.core_type = #tpu.core_type<tc>, window_params = [{transform_indices = @transform_0, window_bounds = array<i64: 1, 4, 256>}, {pipeline_mode = #tpu.pipeline_mode<synchronous>, transform_indices = @transform_1, window_bounds = array<i64: 32, 1792>}, {transform_indices = @transform_2, window_bounds = array<i64: 1, 8, 256>}]} {
    %c0 = arith.constant 0 : index
    %c0_0 = arith.constant 0 : index
    %c0_1 = arith.constant 0 : index
    %0 = vector.load %arg1[%c0, %c0_0, %c0_1] : memref<1x4x256xf32, #tpu.memory_space<vmem>>, vector<1x4x256xf32>
    %1 = vector.shape_cast %0 : vector<1x4x256xf32> to vector<4x256xf32>
    %c0_2 = arith.constant 0 : index
    %c0_3 = arith.constant 0 : index
    %2 = vector.load %arg2[%c0_2, %c0_3] : memref<32x1792xf32, #tpu.memory_space<vmem>>, vector<32x4xf32>
    %cst = arith.constant dense<0.000000e+00> : vector<32x256xf32>
    %3 = tpu.matmul %2, %1, %cst {dimension_numbers = #tpu.dot_dimension_numbers<[1], [0], [0], [1], [0, 0, 1, 1], [], []>} : vector<32x4xf32>, vector<4x256xf32>, vector<32x256xf32> -> vector<32x256xf32>
    %c0_4 = arith.constant 0 : index
    %c128 = arith.constant 128 : index
    %4 = vector.load %arg2[%c0_4, %c128] : memref<32x1792xf32, #tpu.memory_space<vmem>>, vector<32x1xf32>
    %5 = vector.broadcast %4 : vector<32x1xf32> to vector<32x256xf32>
    %6 = arith.addf %3, %5 : vector<32x256xf32>
    %cst_5 = arith.constant 0.000000e+00 : f32
    %7 = vector.broadcast %cst_5 : f32 to vector<32x256xf32>
    %8 = arith.maximumf %6, %7 : vector<32x256xf32>
    %c0_6 = arith.constant 0 : index
    %c256 = arith.constant 256 : index
    %9 = vector.load %arg2[%c0_6, %c256] : memref<32x1792xf32, #tpu.memory_space<vmem>>, vector<32x32xf32>
    %cst_7 = arith.constant dense<0.000000e+00> : vector<32x256xf32>
    %10 = tpu.matmul %9, %8, %cst_7 {dimension_numbers = #tpu.dot_dimension_numbers<[1], [0], [0], [1], [0, 0, 1, 1], [], []>} : vector<32x32xf32>, vector<32x256xf32>, vector<32x256xf32> -> vector<32x256xf32>
    %c0_8 = arith.constant 0 : index
    %c384 = arith.constant 384 : index
    %11 = vector.load %arg2[%c0_8, %c384] : memref<32x1792xf32, #tpu.memory_space<vmem>>, vector<32x1xf32>
    %12 = vector.broadcast %11 : vector<32x1xf32> to vector<32x256xf32>
    %13 = arith.addf %10, %12 : vector<32x256xf32>
    %cst_9 = arith.constant 0.000000e+00 : f32
    %14 = vector.broadcast %cst_9 : f32 to vector<32x256xf32>
    %15 = arith.maximumf %13, %14 : vector<32x256xf32>
    %16 = vector.extract_strided_slice %15 {offsets = [0, 0], sizes = [16, 256], strides = [1, 1]} : vector<32x256xf32> to vector<16x256xf32>
    %17 = vector.extract_strided_slice %15 {offsets = [16, 0], sizes = [16, 256], strides = [1, 1]} : vector<32x256xf32> to vector<16x256xf32>
    %18 = vector.shape_cast %16 : vector<16x256xf32> to vector<16x16x16xf32>
    %19 = vector.shape_cast %17 : vector<16x256xf32> to vector<16x16x16xf32>
    %cst_10 = arith.constant dense<0.000000e+00> : vector<16x16x16xf32>
    %20 = tpu.matmul %18, %19, %cst_10 {dimension_numbers = #tpu.dot_dimension_numbers<[2], [1], [1], [2], [0, 0, 0, 1, 1, 2], [0], [0]>} : vector<16x16x16xf32>, vector<16x16x16xf32>, vector<16x16x16xf32> -> vector<16x16x16xf32>
    %21 = vector.shape_cast %20 : vector<16x16x16xf32> to vector<16x256xf32>
    %c0_11 = arith.constant 0 : index
    %c512 = arith.constant 512 : index
    %22 = vector.load %arg2[%c0_11, %c512] : memref<32x1792xf32, #tpu.memory_space<vmem>>, vector<16x4xf32>
    %cst_12 = arith.constant dense<0.000000e+00> : vector<16x256xf32>
    %23 = tpu.matmul %22, %1, %cst_12 {dimension_numbers = #tpu.dot_dimension_numbers<[1], [0], [0], [1], [0, 0, 1, 1], [], []>} : vector<16x4xf32>, vector<4x256xf32>, vector<16x256xf32> -> vector<16x256xf32>
    %c0_13 = arith.constant 0 : index
    %c640 = arith.constant 640 : index
    %24 = vector.load %arg2[%c0_13, %c640] : memref<32x1792xf32, #tpu.memory_space<vmem>>, vector<16x16xf32>
    %cst_14 = arith.constant dense<0.000000e+00> : vector<16x256xf32>
    %25 = tpu.matmul %24, %21, %cst_14 {dimension_numbers = #tpu.dot_dimension_numbers<[1], [0], [0], [1], [0, 0, 1, 1], [], []>} : vector<16x16xf32>, vector<16x256xf32>, vector<16x256xf32> -> vector<16x256xf32>
    %26 = arith.addf %23, %25 : vector<16x256xf32>
    %c0_15 = arith.constant 0 : index
    %c768 = arith.constant 768 : index
    %27 = vector.load %arg2[%c0_15, %c768] : memref<32x1792xf32, #tpu.memory_space<vmem>>, vector<16x1xf32>
    %28 = vector.broadcast %27 : vector<16x1xf32> to vector<16x256xf32>
    %29 = arith.addf %26, %28 : vector<16x256xf32>
    %c0_16 = arith.constant 0 : index
    %c896 = arith.constant 896 : index
    %30 = vector.load %arg2[%c0_16, %c896] : memref<32x1792xf32, #tpu.memory_space<vmem>>, vector<16x16xf32>
    %cst_17 = arith.constant dense<0.000000e+00> : vector<16x256xf32>
    %31 = tpu.matmul %30, %29, %cst_17 {dimension_numbers = #tpu.dot_dimension_numbers<[1], [0], [0], [1], [0, 0, 1, 1], [], []>} : vector<16x16xf32>, vector<16x256xf32>, vector<16x256xf32> -> vector<16x256xf32>
    %c0_18 = arith.constant 0 : index
    %c1024 = arith.constant 1024 : index
    %32 = vector.load %arg2[%c0_18, %c1024] : memref<32x1792xf32, #tpu.memory_space<vmem>>, vector<16x1xf32>
    %33 = vector.broadcast %32 : vector<16x1xf32> to vector<16x256xf32>
    %34 = arith.addf %31, %33 : vector<16x256xf32>
    %cst_19 = arith.constant 0.000000e+00 : f32
    %35 = vector.broadcast %cst_19 : f32 to vector<16x256xf32>
    %36 = arith.maximumf %34, %35 : vector<16x256xf32>
    %c0_20 = arith.constant 0 : index
    %c1152 = arith.constant 1152 : index
    %37 = vector.load %arg2[%c0_20, %c1152] : memref<32x1792xf32, #tpu.memory_space<vmem>>, vector<16x16xf32>
    %cst_21 = arith.constant dense<0.000000e+00> : vector<16x256xf32>
    %38 = tpu.matmul %37, %36, %cst_21 {dimension_numbers = #tpu.dot_dimension_numbers<[1], [0], [0], [1], [0, 0, 1, 1], [], []>} : vector<16x16xf32>, vector<16x256xf32>, vector<16x256xf32> -> vector<16x256xf32>
    %c0_22 = arith.constant 0 : index
    %c1280 = arith.constant 1280 : index
    %39 = vector.load %arg2[%c0_22, %c1280] : memref<32x1792xf32, #tpu.memory_space<vmem>>, vector<16x1xf32>
    %40 = vector.broadcast %39 : vector<16x1xf32> to vector<16x256xf32>
    %41 = arith.addf %38, %40 : vector<16x256xf32>
    %cst_23 = arith.constant 0.000000e+00 : f32
    %42 = vector.broadcast %cst_23 : f32 to vector<16x256xf32>
    %43 = arith.maximumf %41, %42 : vector<16x256xf32>
    %44 = vector.extract_strided_slice %43 {offsets = [0, 0], sizes = [8, 256], strides = [1, 1]} : vector<16x256xf32> to vector<8x256xf32>
    %45 = vector.extract_strided_slice %43 {offsets = [8, 0], sizes = [8, 256], strides = [1, 1]} : vector<16x256xf32> to vector<8x256xf32>
    %46 = vector.shape_cast %44 : vector<8x256xf32> to vector<8x16x16xf32>
    %47 = vector.shape_cast %45 : vector<8x256xf32> to vector<8x16x16xf32>
    %cst_24 = arith.constant dense<0.000000e+00> : vector<8x16x16xf32>
    %48 = tpu.matmul %46, %47, %cst_24 {dimension_numbers = #tpu.dot_dimension_numbers<[2], [1], [1], [2], [0, 0, 0, 1, 1, 2], [0], [0]>} : vector<8x16x16xf32>, vector<8x16x16xf32>, vector<8x16x16xf32> -> vector<8x16x16xf32>
    %49 = vector.shape_cast %48 : vector<8x16x16xf32> to vector<8x256xf32>
    %c0_25 = arith.constant 0 : index
    %c1408 = arith.constant 1408 : index
    %50 = vector.load %arg2[%c0_25, %c1408] : memref<32x1792xf32, #tpu.memory_space<vmem>>, vector<8x16xf32>
    %cst_26 = arith.constant dense<0.000000e+00> : vector<8x256xf32>
    %51 = tpu.matmul %50, %29, %cst_26 {dimension_numbers = #tpu.dot_dimension_numbers<[1], [0], [0], [1], [0, 0, 1, 1], [], []>} : vector<8x16xf32>, vector<16x256xf32>, vector<8x256xf32> -> vector<8x256xf32>
    %c0_27 = arith.constant 0 : index
    %c1536 = arith.constant 1536 : index
    %52 = vector.load %arg2[%c0_27, %c1536] : memref<32x1792xf32, #tpu.memory_space<vmem>>, vector<8x8xf32>
    %cst_28 = arith.constant dense<0.000000e+00> : vector<8x256xf32>
    %53 = tpu.matmul %52, %49, %cst_28 {dimension_numbers = #tpu.dot_dimension_numbers<[1], [0], [0], [1], [0, 0, 1, 1], [], []>} : vector<8x8xf32>, vector<8x256xf32>, vector<8x256xf32> -> vector<8x256xf32>
    %54 = arith.addf %51, %53 : vector<8x256xf32>
    %c0_29 = arith.constant 0 : index
    %c1664 = arith.constant 1664 : index
    %55 = vector.load %arg2[%c0_29, %c1664] : memref<32x1792xf32, #tpu.memory_space<vmem>>, vector<8x1xf32>
    %56 = vector.broadcast %55 : vector<8x1xf32> to vector<8x256xf32>
    %57 = arith.addf %54, %56 : vector<8x256xf32>
    %c0_30 = arith.constant 0 : index
    %c0_31 = arith.constant 0 : index
    %c0_32 = arith.constant 0 : index
    %58 = vector.load %arg3[%c0_30, %c0_31, %c0_32] : memref<1x8x256xf32, #tpu.memory_space<vmem>>, vector<1x8x256xf32>
    %59 = vector.shape_cast %58 : vector<1x8x256xf32> to vector<8x256xf32>
    %60 = vector.shape_cast %57 : vector<8x256xf32> to vector<1x8x256xf32>
    tpu.vector_store %arg3[%c0_30, %c0_31, %c0_32], %60 {strides = array<i32>} : memref<1x8x256xf32, #tpu.memory_space<vmem>>, vector<1x8x256xf32>,
    return
  }
  func.func @transform_0(%arg0: i32) -> (i32, i32, i32) {
    %c0_i32 = arith.constant 0 : i32
    %c0_i32_0 = arith.constant 0 : i32
    %c0_i32_1 = arith.constant 0 : i32
    return %arg0, %c0_i32, %c0_i32_0 : i32, i32, i32
  }
  func.func @transform_1(%arg0: i32) -> (i32, i32) {
    %c0_i32 = arith.constant 0 : i32
    %c0_i32_0 = arith.constant 0 : i32
    %c0_i32_1 = arith.constant 0 : i32
    return %c0_i32, %c0_i32_0 : i32, i32
  }
  func.func @transform_2(%arg0: i32) -> (i32, i32, i32) {
    %c0_i32 = arith.constant 0 : i32
    %c0_i32_0 = arith.constant 0 : i32
    %c0_i32_1 = arith.constant 0 : i32
    return %arg0, %c0_i32, %c0_i32_0 : i32, i32, i32
  }
}

</mosaic_0001>

<llo_original>
// kernel: tpu_custom_call.1
$region0: #{tpu_custom_call.1}
  #allocation0 [shape = 'u32[]', space=smem, size = 0x4, offset = 0x4, fixed_abs, tag = 'smem constant byte address 0x4 - core index']
  #allocation1 [shape = 'u32[144,128]{1,0:T(1,128)}', space=vmem, size = 0x12000, scoped, tag = 'internal scratch']
  %s0 = inlined_call_operand.hbm [shape: f32[2,4,256], index: 0, kind: input, shape index: {}]
  %s1 = inlined_call_operand.hbm [shape: f32[32,1792], index: 1, kind: input, shape index: {}]
  %s2 = inlined_call_operand.hbm [shape: f32[2,8,256], index: 2, kind: output, shape index: {}]
  %s3 = sld [smem:[#allocation0]]
  $region49: #{tpu_custom_call.1} parent=0
    _
  %s5 = ssub.s32 1, %s3
  %s6 = scalar_select 0, %s5, %s3
  $region1: #{tpu_custom_call.1} parent=0
    #allocation2 [shape = 'u8[8192]{0}', space=vmem, size = 0x2000, scoped, tag = 'input window, operand 0']
    #allocation3 [shape = 's32[2]{0}', space=sflag, size = 0x8, scoped, tag = 'scoped memory for tpu_custom_call.1']
    #allocation4 [shape = 's32[2]{0}', space=sflag, size = 0x8, scoped, tag = 'scoped memory for tpu_custom_call.1']
    #allocation5 [shape = 'u8[229376]{0}', space=vmem, size = 0x38000, scoped, tag = 'input window, operand 1, single buffered']
    #allocation6 [shape = 's32[1]{0}', space=sflag, size = 0x4, scoped, tag = 'scoped memory for tpu_custom_call.1']
    #allocation7 [shape = 'u8[16384]{0}', space=vmem, size = 0x4000, scoped, tag = 'output window, operand 0']
    %7 = vsyncpa [#allocation3], 0
    %s8 = scalar_lea.sflag [#allocation3], 1
    %9 = vsyncpa %s8, 0
    %10 = vsyncpa [#allocation6], 0
    %11 = vsyncpa [#allocation4], 0
    %s12 = scalar_lea.sflag [#allocation4], 1
    %13 = vsyncpa %s12, 0
    loop: start=0, step=1, limit=4
    $region2: #{tpu_custom_call.1} parent=1 // loop_pre_header
      _
    $region3: #{tpu_custom_call.1} parent=1 // loop_header
      %s15 = sphi 0, %s19
      %p16 = scmp.ge.s32.totalorder %s15, 4
      %s25 = sphi 0, %s27
      %s28 = sphi 0, %s25
      %s29 = sphi 0, %s28
      %s45 = sphi 0, %s29
      %s49 = sphi 0, %s49
      %s51 = sphi 0, %s49
      %s52 = sphi 0, %s51
      %s66 = sphi 0, %s52
      %s72 = sphi 0, %s74
      %s75 = sphi 0, %s72
      %s76 = sphi 0, %s75
      %s92 = sphi 0, %s76
    $region4: #{tpu_custom_call.1} parent=1 // loop_header_branch
      %18 = sbr.rel (%p16) target = $region8
    $region5: #{tpu_custom_call.1} parent=1 // loop_body
      %s20 = ssub.s32 %s15, 1
      %s21 = ssub.s32 %s15, 2
      %s22 = sadd.s32 %s15, 1
      %s23 = ssub.s32 %s15, %s22
      %p24 = scmp.eq.s32.totalorder %s23, 0
      %s26 = sadd.s32 %s25, 1
      %s27 = scalar_select %p24, %s25, %s26
      %p30 = pneg %p24
      %p31 = scmp.eq.s32.totalorder %s15, 1
      %p32 = por %p30, %p31
      %p33 = scmp.ne.s32.totalorder %s25, %s28
      %p34 = scmp.eq.s32.totalorder %s15, 0
      %p35 = por %p33, %p34
      %p36 = scmp.ne.s32.totalorder %s25, %s28
      %p37 = scmp.eq.s32.totalorder %s20, 1
      %p38 = por %p36, %p37
      %p39 = scmp.ne.s32.totalorder %s28, %s29
      %p40 = scmp.eq.s32.totalorder %s20, 0
      %p41 = por %p39, %p40
      %p42 = scmp.ne.s32.totalorder %s28, %s29
      %p43 = scmp.eq.s32.totalorder %s21, 1
      %p44 = por %p42, %p43
      %p46 = scmp.ne.s32.totalorder %s29, %s45
      %p47 = scmp.eq.s32.totalorder %s21, 0
      %p48 = por %p46, %p47
      %s50 = sadd.s32 %s49, 1
      %p53 = scmp.eq.s32.totalorder %s15, 1
      %p54 = scmp.ne.s32.totalorder %s49, %s51
      %p55 = scmp.eq.s32.totalorder %s15, 0
      %p56 = por %p54, %p55
      %p57 = scmp.ne.s32.totalorder %s49, %s51
      %p58 = scmp.eq.s32.totalorder %s20, 1
      %p59 = por %p57, %p58
      %p60 = scmp.ne.s32.totalorder %s51, %s52
      %p61 = scmp.eq.s32.totalorder %s20, 0
      %p62 = por %p60, %p61
      %p63 = scmp.ne.s32.totalorder %s51, %s52
      %p64 = scmp.eq.s32.totalorder %s21, 1
      %p65 = por %p63, %p64
      %p67 = scmp.ne.s32.totalorder %s52, %s66
      %p68 = scmp.eq.s32.totalorder %s21, 0
      %p69 = por %p67, %p68
      %s70 = ssub.s32 %s15, %s22
      %p71 = scmp.eq.s32.totalorder %s70, 0
      %s73 = sadd.s32 %s72, 1
      %s74 = scalar_select %p71, %s72, %s73
      %p77 = pneg %p71
      %p78 = scmp.eq.s32.totalorder %s15, 1
      %p79 = por %p77, %p78
      %p80 = scmp.ne.s32.totalorder %s72, %s75
      %p81 = scmp.eq.s32.totalorder %s15, 0
      %p82 = por %p80, %p81
      %p83 = scmp.ne.s32.totalorder %s72, %s75
      %p84 = scmp.eq.s32.totalorder %s20, 1
      %p85 = por %p83, %p84
      %p86 = scmp.ne.s32.totalorder %s75, %s76
      %p87 = scmp.eq.s32.totalorder %s20, 0
      %p88 = por %p86, %p87
      %p89 = scmp.ne.s32.totalorder %s75, %s76
      %p90 = scmp.eq.s32.totalorder %s21, 1
      %p91 = por %p89, %p90
      %p93 = scmp.ne.s32.totalorder %s76, %s92
      %p94 = scmp.eq.s32.totalorder %s21, 0
      %p95 = por %p93, %p94
      %p96 = scmp.le.s32.totalorder 1, %s15
      %p97 = scmp.lt.s32.totalorder %s15, 3
      %p98 = pnand %p96, %p97
      %p99 = pneg %p98
      // Predicated region
      $region9: #{tpu_custom_call.1} parent=5 // pred_check
        _
      $region10: #{tpu_custom_call.1} parent=5 // pred_check_branch
        %101 = sbr.rel (%p98) target = $region12
      $region11: #{tpu_custom_call.1} parent=5 // pred_region
        %s102 = ssub.s32 %s15, 1
        // Predicated region
        $region13: #{tpu_custom_call.1} parent=11 // pred_check
          %p103 = pneg %p62
        $region14: #{tpu_custom_call.1} parent=11 // pred_check_branch
          %105 = sbr.rel (%p103) target = $region16
        $region15: #{tpu_custom_call.1} parent=11 // pred_region
          %s107 = ssub.s32 7168, 7168
          %108 = vsyncadd [#allocation6], %s107
          %s109 = sshll.u32 [#allocation5], 4
          %s110 = int_to_ptr.vmem [resolvable:$true] %s109
          %115 = dma.hbm_to_vmem [thread:$0]  %s1, 7168, %s110, [#allocation6], 1792, 1792, 112
        $region16: #{tpu_custom_call.1} parent=11 // pred_fallthru
          _
      $region12: #{tpu_custom_call.1} parent=5 // pred_fallthru
        _
      %p116 = scmp.lt.s32.totalorder %s15, 2
      // Predicated region
      $region17: #{tpu_custom_call.1} parent=5 // pred_check
        %p117 = pneg %p116
      $region18: #{tpu_custom_call.1} parent=5 // pred_check_branch
        %119 = sbr.rel (%p117) target = $region20
      $region19: #{tpu_custom_call.1} parent=5 // pred_region
        // Predicated region
        $region21: #{tpu_custom_call.1} parent=19 // pred_check
          %p120 = pneg %p35
        $region22: #{tpu_custom_call.1} parent=19 // pred_check_branch
          %122 = sbr.rel (%p120) target = $region24
        $region23: #{tpu_custom_call.1} parent=19 // pred_region
          %s123 = sand.u32 %s25, 1
          %s124 = scalar_lea.sflag [#allocation3], %s123
          %s125 = sand.u32 %s25, 1
          %s126 = smul.addr %s125, 8
          %s127 = scalar_lea.vmem [#allocation2], %s126
          %s129 = ssub.s32 128, 128
          %130 = vsyncadd %s124, %s129
          %s131 = smul.addr %s15, 2
          %s132 = smul.addr %s131, 64
          %s133 = scalar_lea.hbm %s0, %s132
          %s135 = sshll.u32 %s127, 4
          %s136 = int_to_ptr.vmem [resolvable:$true] %s135
          %138 = dma.hbm_to_vmem [thread:$0]  %s133, 128, %s136, %s124
        $region24: #{tpu_custom_call.1} parent=19 // pred_fallthru
          _
      $region20: #{tpu_custom_call.1} parent=5 // pred_fallthru
        _
      %p139 = scmp.le.s32.totalorder 1, %s15
      %p140 = scmp.lt.s32.totalorder %s15, 3
      %p141 = pnand %p139, %p140
      %p142 = pneg %p141
      // Predicated region
      $region25: #{tpu_custom_call.1} parent=5 // pred_check
        _
      $region26: #{tpu_custom_call.1} parent=5 // pred_check_branch
        %144 = sbr.rel (%p141) target = $region28
      $region27: #{tpu_custom_call.1} parent=5 // pred_region
        %s145 = ssub.s32 %s15, 1
        %s146 = sand.u32 %s28, 1
        %s147 = scalar_lea.sflag [#allocation3], %s146
        %s148 = sand.u32 %s28, 1
        %s149 = smul.addr %s148, 8
        %s150 = scalar_lea.vmem [#allocation2], %s149
        // Predicated region
        $region29: #{tpu_custom_call.1} parent=27 // pred_check
          %p151 = pneg %p41
        $region30: #{tpu_custom_call.1} parent=27 // pred_check_branch
          %153 = sbr.rel (%p151) target = $region32
        $region31: #{tpu_custom_call.1} parent=27 // pred_region
          %154 = dma.done %s147, 128
        $region32: #{tpu_custom_call.1} parent=27 // pred_fallthru
          _
        // Predicated region
        $region33: #{tpu_custom_call.1} parent=27 // pred_check
          %p155 = pneg %p62
        $region34: #{tpu_custom_call.1} parent=27 // pred_check_branch
          %157 = sbr.rel (%p155) target = $region36
        $region35: #{tpu_custom_call.1} parent=27 // pred_region
          %158 = dma.done [#allocation6], 7168
        $region36: #{tpu_custom_call.1} parent=27 // pred_fallthru
          _
        %s159 = sand.u32 %s28, 1
        %s160 = scalar_lea.sflag [#allocation3], %s159
        %s161 = sand.u32 %s28, 1
        %s162 = smul.addr %s161, 8
        %s163 = scalar_lea.vmem [#allocation2], %s162
        %p164 = pneg %p41
        %p165 = pneg %p38
        %p166 = pneg %p62
        %p167 = pneg %p59
        %p168 = pneg %p88
        %p169 = pneg %p85
        %s170 = sand.u32 %s75, 1
        %s171 = scalar_lea.sflag [#allocation4], %s170
        %s172 = sand.u32 %s75, 1
        %s173 = smul.addr %s172, 16
        %s174 = scalar_lea.vmem [#allocation7], %s173
        %v175 = vld [vmem:[%s150] sm:$0xff]
        %v176 = vld [vmem:[#allocation5] sm:$0xff]
        %v177 = vld [vmem:[#allocation5 + $0x70] sm:$0xff]
        %v178 = vld [vmem:[#allocation5 + $0xe0] sm:$0xff]
        %v179 = vld [vmem:[#allocation5 + $0x150] sm:$0xff]
        %v180 = vld [vmem:[#allocation5 + $0x8] sm:$0xff]
        %v181 = vld [vmem:[#allocation5 + $0x78] sm:$0xff]
        %v182 = vld [vmem:[#allocation5 + $0xe8] sm:$0xff]
        %v183 = vld [vmem:[#allocation5 + $0x158] sm:$0xff]
        %185 = vset.pattern.permute.xlu0 0
        %186 = vperm.xlu0 %185, %v180
        %v187 = vpop.permute.xlu0 %186
        %190 = vset.pattern.permute.xlu0 0
        %191 = vperm.xlu0 %190, %v181
        %v192 = vpop.permute.xlu0 %191
        %195 = vset.pattern.permute.xlu0 0
        %196 = vperm.xlu0 %195, %v182
        %v197 = vpop.permute.xlu0 %196
        %200 = vset.pattern.permute.xlu0 0
        %201 = vperm.xlu0 %200, %v183
        %v202 = vpop.permute.xlu0 %201
        %v205 = vcombine.high %v175, %v175
        %vm206 = vcmask 31744
        %v208 = vsel %vm206, %v176, 0
        %v211 = vsel %vm206, %v177, 0
        %v214 = vsel %vm206, %v178, 0
        %v217 = vsel %vm206, %v179, 0
        %vm219 = vcmask 1043456
        %v220 = vsel %vm219, %v175, 0
        %v222 = vsel %vm219, %v205, 0
        %224 = vmatprep.subr.mxu0 0.0
        %225 = vmatpush1.msra.mxu0 0.0
        %226 = vmatprep.subr.mxu0 0.0
        %227 = vmatpush1.msra.mxu0 0.0
        %228 = vmatprep.subr.mxu0 0.0
        %229 = vmatpush1.msra.mxu0 0.0
        %230 = vmatprep.subr.mxu0 0.0
        %231 = vmatpush1.msra.mxu0 0.0
        %232 = vmatprep.subr.mxu0 0.0
        %233 = vmatpush1.msra.mxu0 0.0
        %234 = vmatprep.subr.mxu0 0.0
        %235 = vmatpush1.msra.mxu0 0.0
        %236 = vmatprep.subr.mxu0 0.0
        %237 = vmatpush1.msra.mxu0 0.0
        %238 = vmatprep.subr.mxu0 0.0
        %239 = vmatpush1.msra.mxu0 0.0
        %240 = vmatprep.subr.mxu0 0.0
        %241 = vmatpush1.msra.mxu0 0.0
        %242 = vmatprep.subr.mxu0 0.0
        %243 = vmatpush1.msra.mxu0 0.0
        %244 = vmatprep.subr.mxu0 0.0
        %245 = vmatpush1.msra.mxu0 0.0
        %246 = vmatprep.subr.mxu0 0.0
        %247 = vmatpush1.msra.mxu0 0.0
        %248 = vmatprep.subr.mxu0 0.0
        %249 = vmatpush1.msra.mxu0 0.0
        %250 = vmatprep.subr.mxu0 0.0
        %251 = vmatpush1.msra.mxu0 0.0
        %252 = vmatprep.subr.mxu0 0.0
        %253 = vmatpush1.msra.mxu0 0.0
        %254 = vmatprep.subr.mxu0 %v222
        %255 = vmatpush1.msra.mxu0 %v220
        %256 = vmatprep.subr.mxu0 0.0
        %257 = vmatpush2.msra.mxu0 0.0
        %258 = vmatprep.subr.mxu0 0.0
        %259 = vmatpush2.msra.mxu0 0.0
        %260 = vmatprep.subr.mxu0 0.0
        %261 = vmatpush2.msra.mxu0 0.0
        %262 = vmatprep.subr.mxu0 0.0
        %263 = vmatpush2.msra.mxu0 0.0
        %264 = vmatprep.subr.mxu0 0.0
        %265 = vmatpush2.msra.mxu0 0.0
        %266 = vmatprep.subr.mxu0 0.0
        %267 = vmatpush2.msra.mxu0 0.0
        %268 = vmatprep.subr.mxu0 0.0
        %269 = vmatpush2.msra.mxu0 0.0
        %270 = vmatprep.subr.mxu0 0.0
        %271 = vmatpush2.msra.mxu0 0.0
        %272 = vmatprep.subr.mxu0 0.0
        %273 = vmatpush2.msra.mxu0 0.0
        %274 = vmatprep.subr.mxu0 0.0
        %275 = vmatpush2.msra.mxu0 0.0
        %276 = vmatprep.subr.mxu0 0.0
        %277 = vmatpush2.msra.mxu0 0.0
        %278 = vmatprep.subr.mxu0 0.0
        %279 = vmatpush2.msra.mxu0 0.0
        %280 = vmatprep.subr.mxu0 0.0
        %281 = vmatpush2.msra.mxu0 0.0
        %282 = vmatprep.subr.mxu0 0.0
        %283 = vmatpush2.msra.mxu0 0.0
        %284 = vmatprep.subr.mxu0 0.0
        %285 = vmatpush2.msra.mxu0 0.0
        %286 = vmatprep.subr.mxu0 0.0
        %287 = vmatpush2.msra.mxu0 0.0
        %288 = vmatprep.mubr.f32.mxu0 0.0
        %289 = vmatmul.mubr.f32.gmra.mxu0 %v208
        %v290 = vpop.f32.mrf.mxu0
        %v291 = vadd.f32 %v187, %v290
        %v292 = vpop.f32.mrf.mxu0
        %v293 = vadd.f32 %v187, %v292
        %294 = vmatprep.mubr.f32.mxu0 0.0
        %295 = vmatmul.mubr.f32.gmra.mxu0 %v211
        %v296 = vpop.f32.mrf.mxu0
        %v297 = vadd.f32 %v192, %v296
        %v298 = vpop.f32.mrf.mxu0
        %v299 = vadd.f32 %v192, %v298
        %300 = vmatprep.mubr.f32.mxu0 0.0
        %301 = vmatmul.mubr.f32.gmra.mxu0 %v214
        %v302 = vpop.f32.mrf.mxu0
        %v303 = vadd.f32 %v197, %v302
        %v304 = vpop.f32.mrf.mxu0
        %v305 = vadd.f32 %v197, %v304
        %306 = vmatprep.mubr.f32.mxu0 0.0
        %307 = vmatmul.mubr.f32.gmra.mxu0 %v217
        %v308 = vpop.f32.mrf.mxu0
        %v309 = vadd.f32 %v202, %v308
        %v310 = vpop.f32.mrf.mxu0
        %v311 = vadd.f32 %v202, %v310
        %312 = vdwg.mxu0
        %v313 = vmax.f32 %v291, 0.0
        %v314 = vmax.f32 %v293, 0.0
        %v315 = vmax.f32 %v297, 0.0
        %v316 = vmax.f32 %v299, 0.0
        %v317 = vmax.f32 %v303, 0.0
        %v318 = vmax.f32 %v305, 0.0
        %v319 = vmax.f32 %v309, 0.0
        %v320 = vmax.f32 %v311, 0.0
        %v321 = vld [vmem:[#allocation5 + $0x10] sm:$0xff]
        %v322 = vld [vmem:[#allocation5 + $0x80] sm:$0xff]
        %v323 = vld [vmem:[#allocation5 + $0xf0] sm:$0xff]
        %v324 = vld [vmem:[#allocation5 + $0x160] sm:$0xff]
        %v325 = vld [vmem:[#allocation5 + $0x18] sm:$0xff]
        %v326 = vld [vmem:[#allocation5 + $0x88] sm:$0xff]
        %v327 = vld [vmem:[#allocation5 + $0xf8] sm:$0xff]
        %v328 = vld [vmem:[#allocation5 + $0x168] sm:$0xff]
        %330 = vset.pattern.permute.xlu0 0
        %331 = vperm.xlu0 %330, %v325
        %v332 = vpop.permute.xlu0 %331
        %335 = vset.pattern.permute.xlu0 0
        %336 = vperm.xlu0 %335, %v326
        %v337 = vpop.permute.xlu0 %336
        %340 = vset.pattern.permute.xlu0 0
        %341 = vperm.xlu0 %340, %v327
        %v342 = vpop.permute.xlu0 %341
        %345 = vset.pattern.permute.xlu0 0
        %346 = vperm.xlu0 %345, %v328
        %v347 = vpop.permute.xlu0 %346
        %vm349 = vcmask 261120
        %v351 = vsel %vm349, %v321, 0
        %v354 = vsel %vm349, %v322, 0
        %v357 = vsel %vm349, %v323, 0
        %v360 = vsel %vm349, %v324, 0
        %362 = vmatprep.subr.mxu0 0.0
        %363 = vmatpush1.msra.mxu0 0.0
        %364 = vmatprep.subr.mxu0 0.0
        %365 = vmatpush1.msra.mxu0 0.0
        %366 = vmatprep.subr.mxu0 0.0
        %367 = vmatpush1.msra.mxu0 0.0
        %368 = vmatprep.subr.mxu0 0.0
        %369 = vmatpush1.msra.mxu0 0.0
        %370 = vmatprep.subr.mxu0 0.0
        %371 = vmatpush1.msra.mxu0 0.0
        %372 = vmatprep.subr.mxu0 0.0
        %373 = vmatpush1.msra.mxu0 0.0
        %374 = vmatprep.subr.mxu0 0.0
        %375 = vmatpush1.msra.mxu0 0.0
        %376 = vmatprep.subr.mxu0 0.0
        %377 = vmatpush1.msra.mxu0 0.0
        %378 = vmatprep.subr.mxu0 0.0
        %379 = vmatpush1.msra.mxu0 0.0
        %380 = vmatprep.subr.mxu0 0.0
        %381 = vmatpush1.msra.mxu0 0.0
        %382 = vmatprep.subr.mxu0 0.0
        %383 = vmatpush1.msra.mxu0 0.0
        %384 = vmatprep.subr.mxu0 0.0
        %385 = vmatpush1.msra.mxu0 0.0
        %386 = vmatprep.subr.mxu0 %v320
        %387 = vmatpush1.msra.mxu0 %v319
        %388 = vmatprep.subr.mxu0 %v318
        %389 = vmatpush1.msra.mxu0 %v317
        %390 = vmatprep.subr.mxu0 %v316
        %391 = vmatpush1.msra.mxu0 %v315
        %392 = vmatprep.subr.mxu0 %v314
        %393 = vmatpush1.msra.mxu0 %v313
        %394 = vmatprep.subr.mxu0 0.0
        %395 = vmatpush2.msra.mxu0 0.0
        %396 = vmatprep.subr.mxu0 0.0
        %397 = vmatpush2.msra.mxu0 0.0
        %398 = vmatprep.subr.mxu0 0.0
        %399 = vmatpush2.msra.mxu0 0.0
        %400 = vmatprep.subr.mxu0 0.0
        %401 = vmatpush2.msra.mxu0 0.0
        %402 = vmatprep.subr.mxu0 0.0
        %403 = vmatpush2.msra.mxu0 0.0
        %404 = vmatprep.subr.mxu0 0.0
        %405 = vmatpush2.msra.mxu0 0.0
        %406 = vmatprep.subr.mxu0 0.0
        %407 = vmatpush2.msra.mxu0 0.0
        %408 = vmatprep.subr.mxu0 0.0
        %409 = vmatpush2.msra.mxu0 0.0
        %410 = vmatprep.subr.mxu0 0.0
        %411 = vmatpush2.msra.mxu0 0.0
        %412 = vmatprep.subr.mxu0 0.0
        %413 = vmatpush2.msra.mxu0 0.0
        %414 = vmatprep.subr.mxu0 0.0
        %415 = vmatpush2.msra.mxu0 0.0
        %416 = vmatprep.subr.mxu0 0.0
        %417 = vmatpush2.msra.mxu0 0.0
        %418 = vmatprep.subr.mxu0 0.0
        %419 = vmatpush2.msra.mxu0 0.0
        %420 = vmatprep.subr.mxu0 0.0
        %421 = vmatpush2.msra.mxu0 0.0
        %422 = vmatprep.subr.mxu0 0.0
        %423 = vmatpush2.msra.mxu0 0.0
        %424 = vmatprep.subr.mxu0 0.0
        %425 = vmatpush2.msra.mxu0 0.0
        %426 = vmatprep.mubr.f32.mxu0 0.0
        %427 = vmatmul.mubr.f32.gmra.mxu0 %v351
        %v428 = vpop.f32.mrf.mxu0
        %v429 = vadd.f32 %v332, %v428
        %v430 = vpop.f32.mrf.mxu0
        %v431 = vadd.f32 %v332, %v430
        %432 = vmatprep.mubr.f32.mxu0 0.0
        %433 = vmatmul.mubr.f32.gmra.mxu0 %v354
        %v434 = vpop.f32.mrf.mxu0
        %v435 = vadd.f32 %v337, %v434
        %v436 = vpop.f32.mrf.mxu0
        %v437 = vadd.f32 %v337, %v436
        %438 = vmatprep.mubr.f32.mxu0 0.0
        %439 = vmatmul.mubr.f32.gmra.mxu0 %v357
        %v440 = vpop.f32.mrf.mxu0
        %v441 = vadd.f32 %v342, %v440
        %v442 = vpop.f32.mrf.mxu0
        %v443 = vadd.f32 %v342, %v442
        %444 = vmatprep.mubr.f32.mxu0 0.0
        %445 = vmatmul.mubr.f32.gmra.mxu0 %v360
        %v446 = vpop.f32.mrf.mxu0
        %v447 = vadd.f32 %v347, %v446
        %v448 = vpop.f32.mrf.mxu0
        %v449 = vadd.f32 %v347, %v448
        %450 = vdwg.mxu0
        %v451 = vmax.f32 %v429, 0.0
        %v452 = vmax.f32 %v431, 0.0
        %v453 = vmax.f32 %v435, 0.0
        %v454 = vmax.f32 %v437, 0.0
        %v455 = vmax.f32 %v441, 0.0
        %v456 = vmax.f32 %v443, 0.0
        %v457 = vmax.f32 %v447, 0.0
        %v458 = vmax.f32 %v449, 0.0
        %461 = vrot.lane.b32.xlu0 %v451, 112
        %v462 = vpop.permute.xlu0 %461
        %463 = vrot.lane.b32.xlu0 %v453, 112
        %v464 = vpop.permute.xlu0 %463
        %467 = vrot.lane.b32.xlu0 %v451, 96
        %v468 = vpop.permute.xlu0 %467
        %469 = vrot.lane.b32.xlu0 %v453, 96
        %v470 = vpop.permute.xlu0 %469
        %473 = vrot.lane.b32.xlu0 %v451, 80
        %v474 = vpop.permute.xlu0 %473
        %475 = vrot.lane.b32.xlu0 %v453, 80
        %v476 = vpop.permute.xlu0 %475
        %479 = vrot.lane.b32.xlu0 %v451, 64
        %v480 = vpop.permute.xlu0 %479
        %481 = vrot.lane.b32.xlu0 %v453, 64
        %v482 = vpop.permute.xlu0 %481
        %485 = vrot.lane.b32.xlu0 %v451, 48
        %v486 = vpop.permute.xlu0 %485
        %487 = vrot.lane.b32.xlu0 %v453, 48
        %v488 = vpop.permute.xlu0 %487
        %491 = vrot.lane.b32.xlu0 %v451, 32
        %v492 = vpop.permute.xlu0 %491
        %493 = vrot.lane.b32.xlu0 %v453, 32
        %v494 = vpop.permute.xlu0 %493
        %497 = vrot.lane.b32.xlu0 %v451, 16
        %v498 = vpop.permute.xlu0 %497
        %499 = vrot.lane.b32.xlu0 %v453, 16
        %v500 = vpop.permute.xlu0 %499
        %505 = vrot.lane.b32.xlu0 %v452, 112
        %v506 = vpop.permute.xlu0 %505
        %507 = vrot.lane.b32.xlu0 %v454, 112
        %v508 = vpop.permute.xlu0 %507
        %511 = vrot.lane.b32.xlu0 %v452, 96
        %v512 = vpop.permute.xlu0 %511
        %513 = vrot.lane.b32.xlu0 %v454, 96
        %v514 = vpop.permute.xlu0 %513
        %517 = vrot.lane.b32.xlu0 %v452, 80
        %v518 = vpop.permute.xlu0 %517
        %519 = vrot.lane.b32.xlu0 %v454, 80
        %v520 = vpop.permute.xlu0 %519
        %523 = vrot.lane.b32.xlu0 %v452, 64
        %v524 = vpop.permute.xlu0 %523
        %525 = vrot.lane.b32.xlu0 %v454, 64
        %v526 = vpop.permute.xlu0 %525
        %529 = vrot.lane.b32.xlu0 %v452, 48
        %v530 = vpop.permute.xlu0 %529
        %531 = vrot.lane.b32.xlu0 %v454, 48
        %v532 = vpop.permute.xlu0 %531
        %535 = vrot.lane.b32.xlu0 %v452, 32
        %v536 = vpop.permute.xlu0 %535
        %537 = vrot.lane.b32.xlu0 %v454, 32
        %v538 = vpop.permute.xlu0 %537
        %541 = vrot.lane.b32.xlu0 %v452, 16
        %v542 = vpop.permute.xlu0 %541
        %543 = vrot.lane.b32.xlu0 %v454, 16
        %v544 = vpop.permute.xlu0 %543
        %v547 = vcombine.low %v451, %v468
        %v548 = vcombine.high %v451, %v468
        %v550 = vunpack.c.l.s4 1983009808
        %v551 = vunpack.c.0.s8 %v550
        %v552 = vlaneseq
        %v553 = vshrl.u32 %v552, 7
        %v554 = vsub.s32 %v551, %v553
        %v555 = vrot.slane %v547, %v554
        %v557 = vunpack.c.l.s4 1983009808
        %v558 = vunpack.c.0.s8 %v557
        %v559 = vlaneseq
        %v560 = vshrl.u32 %v559, 7
        %v561 = vsub.s32 %v558, %v560
        %v562 = vrot.slane %v548, %v561
        %v563 = vcombine.low %v462, %v474
        %v564 = vcombine.high %v462, %v474
        %v566 = vunpack.c.l.s4 1983009808
        %v567 = vunpack.c.0.s8 %v566
        %v568 = vlaneseq
        %v569 = vshrl.u32 %v568, 7
        %v570 = vsub.s32 %v567, %v569
        %v571 = vrot.slane %v563, %v570
        %v573 = vunpack.c.l.s4 1983009808
        %v574 = vunpack.c.0.s8 %v573
        %v575 = vlaneseq
        %v576 = vshrl.u32 %v575, 7
        %v577 = vsub.s32 %v574, %v576
        %v578 = vrot.slane %v564, %v577
        %v579 = vcombine.low %v480, %v492
        %v580 = vcombine.high %v480, %v492
        %v582 = vunpack.c.l.s4 1983009808
        %v583 = vunpack.c.0.s8 %v582
        %v584 = vlaneseq
        %v585 = vshrl.u32 %v584, 7
        %v586 = vsub.s32 %v583, %v585
        %v587 = vrot.slane %v579, %v586
        %v589 = vunpack.c.l.s4 1983009808
        %v590 = vunpack.c.0.s8 %v589
        %v591 = vlaneseq
        %v592 = vshrl.u32 %v591, 7
        %v593 = vsub.s32 %v590, %v592
        %v594 = vrot.slane %v580, %v593
        %v595 = vcombine.low %v486, %v498
        %v596 = vcombine.high %v486, %v498
        %v598 = vunpack.c.l.s4 1983009808
        %v599 = vunpack.c.0.s8 %v598
        %v600 = vlaneseq
        %v601 = vshrl.u32 %v600, 7
        %v602 = vsub.s32 %v599, %v601
        %v603 = vrot.slane %v595, %v602
        %v605 = vunpack.c.l.s4 1983009808
        %v606 = vunpack.c.0.s8 %v605
        %v607 = vlaneseq
        %v608 = vshrl.u32 %v607, 7
        %v609 = vsub.s32 %v606, %v608
        %v610 = vrot.slane %v596, %v609
        %v611 = vcombine.low %v555, %v571
        %v612 = vcombine.high %v555, %v571
        %v614 = vunpack.c.l.s4 1934713408
        %v615 = vunpack.c.0.s8 %v614
        %v616 = vlaneseq
        %v617 = vshrl.u32 %v616, 7
        %v618 = vsub.s32 %v615, %v617
        %v619 = vrot.slane %v611, %v618
        %v621 = vunpack.c.l.s4 1934713408
        %v622 = vunpack.c.0.s8 %v621
        %v623 = vlaneseq
        %v624 = vshrl.u32 %v623, 7
        %v625 = vsub.s32 %v622, %v624
        %v626 = vrot.slane %v612, %v625
        %v627 = vcombine.low %v562, %v578
        %v628 = vcombine.high %v562, %v578
        %v630 = vunpack.c.l.s4 1934713408
        %v631 = vunpack.c.0.s8 %v630
        %v632 = vlaneseq
        %v633 = vshrl.u32 %v632, 7
        %v634 = vsub.s32 %v631, %v633
        %v635 = vrot.slane %v627, %v634
        %v637 = vunpack.c.l.s4 1934713408
        %v638 = vunpack.c.0.s8 %v637
        %v639 = vlaneseq
        %v640 = vshrl.u32 %v639, 7
        %v641 = vsub.s32 %v638, %v640
        %v642 = vrot.slane %v628, %v641
        %v643 = vcombine.low %v587, %v603
        %v644 = vcombine.high %v587, %v603
        %v646 = vunpack.c.l.s4 1934713408
        %v647 = vunpack.c.0.s8 %v646
        %v648 = vlaneseq
        %v649 = vshrl.u32 %v648, 7
        %v650 = vsub.s32 %v647, %v649
        %v651 = vrot.slane %v643, %v650
        %v653 = vunpack.c.l.s4 1934713408
        %v654 = vunpack.c.0.s8 %v653
        %v655 = vlaneseq
        %v656 = vshrl.u32 %v655, 7
        %v657 = vsub.s32 %v654, %v656
        %v658 = vrot.slane %v644, %v657
        %v659 = vcombine.low %v594, %v610
        %v660 = vcombine.high %v594, %v610
        %v662 = vunpack.c.l.s4 1934713408
        %v663 = vunpack.c.0.s8 %v662
        %v664 = vlaneseq
        %v665 = vshrl.u32 %v664, 7
        %v666 = vsub.s32 %v663, %v665
        %v667 = vrot.slane %v659, %v666
        %v669 = vunpack.c.l.s4 1934713408
        %v670 = vunpack.c.0.s8 %v669
        %v671 = vlaneseq
        %v672 = vshrl.u32 %v671, 7
        %v673 = vsub.s32 %v670, %v672
        %v674 = vrot.slane %v660, %v673
        %v675 = vcombine.low %v619, %v651
        %v676 = vcombine.high %v619, %v651
        %v677 = vcombine.low %v626, %v658
        %v678 = vcombine.high %v626, %v658
        %v679 = vcombine.low %v635, %v667
        %v680 = vcombine.high %v635, %v667
        %v681 = vcombine.low %v642, %v674
        %v682 = vcombine.high %v642, %v674
        %v683 = vcombine.low %v452, %v512
        %v684 = vcombine.high %v452, %v512
        %v686 = vunpack.c.l.s4 1983009808
        %v687 = vunpack.c.0.s8 %v686
        %v688 = vlaneseq
        %v689 = vshrl.u32 %v688, 7
        %v690 = vsub.s32 %v687, %v689
        %v691 = vrot.slane %v683, %v690
        %v693 = vunpack.c.l.s4 1983009808
        %v694 = vunpack.c.0.s8 %v693
        %v695 = vlaneseq
        %v696 = vshrl.u32 %v695, 7
        %v697 = vsub.s32 %v694, %v696
        %v698 = vrot.slane %v684, %v697
        %v699 = vcombine.low %v506, %v518
        %v700 = vcombine.high %v506, %v518
        %v702 = vunpack.c.l.s4 1983009808
        %v703 = vunpack.c.0.s8 %v702
        %v704 = vlaneseq
        %v705 = vshrl.u32 %v704, 7
        %v706 = vsub.s32 %v703, %v705
        %v707 = vrot.slane %v699, %v706
        %v709 = vunpack.c.l.s4 1983009808
        %v710 = vunpack.c.0.s8 %v709
        %v711 = vlaneseq
        %v712 = vshrl.u32 %v711, 7
        %v713 = vsub.s32 %v710, %v712
        %v714 = vrot.slane %v700, %v713
        %v715 = vcombine.low %v524, %v536
        %v716 = vcombine.high %v524, %v536
        %v718 = vunpack.c.l.s4 1983009808
        %v719 = vunpack.c.0.s8 %v718
        %v720 = vlaneseq
        %v721 = vshrl.u32 %v720, 7
        %v722 = vsub.s32 %v719, %v721
        %v723 = vrot.slane %v715, %v722
        %v725 = vunpack.c.l.s4 1983009808
        %v726 = vunpack.c.0.s8 %v725
        %v727 = vlaneseq
        %v728 = vshrl.u32 %v727, 7
        %v729 = vsub.s32 %v726, %v728
        %v730 = vrot.slane %v716, %v729
        %v731 = vcombine.low %v530, %v542
        %v732 = vcombine.high %v530, %v542
        %v734 = vunpack.c.l.s4 1983009808
        %v735 = vunpack.c.0.s8 %v734
        %v736 = vlaneseq
        %v737 = vshrl.u32 %v736, 7
        %v738 = vsub.s32 %v735, %v737
        %v739 = vrot.slane %v731, %v738
        %v741 = vunpack.c.l.s4 1983009808
        %v742 = vunpack.c.0.s8 %v741
        %v743 = vlaneseq
        %v744 = vshrl.u32 %v743, 7
        %v745 = vsub.s32 %v742, %v744
        %v746 = vrot.slane %v732, %v745
        %v747 = vcombine.low %v691, %v707
        %v748 = vcombine.high %v691, %v707
        %v750 = vunpack.c.l.s4 1934713408
        %v751 = vunpack.c.0.s8 %v750
        %v752 = vlaneseq
        %v753 = vshrl.u32 %v752, 7
        %v754 = vsub.s32 %v751, %v753
        %v755 = vrot.slane %v747, %v754
        %v757 = vunpack.c.l.s4 1934713408
        %v758 = vunpack.c.0.s8 %v757
        %v759 = vlaneseq
        %v760 = vshrl.u32 %v759, 7
        %v761 = vsub.s32 %v758, %v760
        %v762 = vrot.slane %v748, %v761
        %v763 = vcombine.low %v698, %v714
        %v764 = vcombine.high %v698, %v714
        %v766 = vunpack.c.l.s4 1934713408
        %v767 = vunpack.c.0.s8 %v766
        %v768 = vlaneseq
        %v769 = vshrl.u32 %v768, 7
        %v770 = vsub.s32 %v767, %v769
        %v771 = vrot.slane %v763, %v770
        %v773 = vunpack.c.l.s4 1934713408
        %v774 = vunpack.c.0.s8 %v773
        %v775 = vlaneseq
        %v776 = vshrl.u32 %v775, 7
        %v777 = vsub.s32 %v774, %v776
        %v778 = vrot.slane %v764, %v777
        %v779 = vcombine.low %v723, %v739
        %v780 = vcombine.high %v723, %v739
        %v782 = vunpack.c.l.s4 1934713408
        %v783 = vunpack.c.0.s8 %v782
        %v784 = vlaneseq
        %v785 = vshrl.u32 %v784, 7
        %v786 = vsub.s32 %v783, %v785
        %v787 = vrot.slane %v779, %v786
        %v789 = vunpack.c.l.s4 1934713408
        %v790 = vunpack.c.0.s8 %v789
        %v791 = vlaneseq
        %v792 = vshrl.u32 %v791, 7
        %v793 = vsub.s32 %v790, %v792
        %v794 = vrot.slane %v780, %v793
        %v795 = vcombine.low %v730, %v746
        %v796 = vcombine.high %v730, %v746
        %v798 = vunpack.c.l.s4 1934713408
        %v799 = vunpack.c.0.s8 %v798
        %v800 = vlaneseq
        %v801 = vshrl.u32 %v800, 7
        %v802 = vsub.s32 %v799, %v801
        %v803 = vrot.slane %v795, %v802
        %v805 = vunpack.c.l.s4 1934713408
        %v806 = vunpack.c.0.s8 %v805
        %v807 = vlaneseq
        %v808 = vshrl.u32 %v807, 7
        %v809 = vsub.s32 %v806, %v808
        %v810 = vrot.slane %v796, %v809
        %v811 = vcombine.low %v755, %v787
        %v812 = vcombine.high %v755, %v787
        %v813 = vcombine.low %v762, %v794
        %v814 = vcombine.high %v762, %v794
        %v815 = vcombine.low %v771, %v803
        %v816 = vcombine.high %v771, %v803
        %v817 = vcombine.low %v778, %v810
        %v818 = vcombine.high %v778, %v810
        %v819 = vcombine.low %v453, %v470
        %v820 = vcombine.high %v453, %v470
        %v822 = vunpack.c.l.s4 1983009808
        %v823 = vunpack.c.0.s8 %v822
        %v824 = vlaneseq
        %v825 = vshrl.u32 %v824, 7
        %v826 = vsub.s32 %v823, %v825
        %v827 = vrot.slane %v819, %v826
        %v829 = vunpack.c.l.s4 1983009808
        %v830 = vunpack.c.0.s8 %v829
        %v831 = vlaneseq
        %v832 = vshrl.u32 %v831, 7
        %v833 = vsub.s32 %v830, %v832
        %v834 = vrot.slane %v820, %v833
        %v835 = vcombine.low %v464, %v476
        %v836 = vcombine.high %v464, %v476
        %v838 = vunpack.c.l.s4 1983009808
        %v839 = vunpack.c.0.s8 %v838
        %v840 = vlaneseq
        %v841 = vshrl.u32 %v840, 7
        %v842 = vsub.s32 %v839, %v841
        %v843 = vrot.slane %v835, %v842
        %v845 = vunpack.c.l.s4 1983009808
        %v846 = vunpack.c.0.s8 %v845
        %v847 = vlaneseq
        %v848 = vshrl.u32 %v847, 7
        %v849 = vsub.s32 %v846, %v848
        %v850 = vrot.slane %v836, %v849
        %v851 = vcombine.low %v482, %v494
        %v852 = vcombine.high %v482, %v494
        %v854 = vunpack.c.l.s4 1983009808
        %v855 = vunpack.c.0.s8 %v854
        %v856 = vlaneseq
        %v857 = vshrl.u32 %v856, 7
        %v858 = vsub.s32 %v855, %v857
        %v859 = vrot.slane %v851, %v858
        %v861 = vunpack.c.l.s4 1983009808
        %v862 = vunpack.c.0.s8 %v861
        %v863 = vlaneseq
        %v864 = vshrl.u32 %v863, 7
        %v865 = vsub.s32 %v862, %v864
        %v866 = vrot.slane %v852, %v865
        %v867 = vcombine.low %v488, %v500
        %v868 = vcombine.high %v488, %v500
        %v870 = vunpack.c.l.s4 1983009808
        %v871 = vunpack.c.0.s8 %v870
        %v872 = vlaneseq
        %v873 = vshrl.u32 %v872, 7
        %v874 = vsub.s32 %v871, %v873
        %v875 = vrot.slane %v867, %v874
        %v877 = vunpack.c.l.s4 1983009808
        %v878 = vunpack.c.0.s8 %v877
        %v879 = vlaneseq
        %v880 = vshrl.u32 %v879, 7
        %v881 = vsub.s32 %v878, %v880
        %v882 = vrot.slane %v868, %v881
        %v883 = vcombine.low %v827, %v843
        %v884 = vcombine.high %v827, %v843
        %v886 = vunpack.c.l.s4 1934713408
        %v887 = vunpack.c.0.s8 %v886
        %v888 = vlaneseq
        %v889 = vshrl.u32 %v888, 7
        %v890 = vsub.s32 %v887, %v889
        %v891 = vrot.slane %v883, %v890
        %v893 = vunpack.c.l.s4 1934713408
        %v894 = vunpack.c.0.s8 %v893
        %v895 = vlaneseq
        %v896 = vshrl.u32 %v895, 7
        %v897 = vsub.s32 %v894, %v896
        %v898 = vrot.slane %v884, %v897
        %v899 = vcombine.low %v834, %v850
        %v900 = vcombine.high %v834, %v850
        %v902 = vunpack.c.l.s4 1934713408
        %v903 = vunpack.c.0.s8 %v902
        %v904 = vlaneseq
        %v905 = vshrl.u32 %v904, 7
        %v906 = vsub.s32 %v903, %v905
        %v907 = vrot.slane %v899, %v906
        %v909 = vunpack.c.l.s4 1934713408
        %v910 = vunpack.c.0.s8 %v909
        %v911 = vlaneseq
        %v912 = vshrl.u32 %v911, 7
        %v913 = vsub.s32 %v910, %v912
        %v914 = vrot.slane %v900, %v913
        %v915 = vcombine.low %v859, %v875
        %v916 = vcombine.high %v859, %v875
        %v918 = vunpack.c.l.s4 1934713408
        %v919 = vunpack.c.0.s8 %v918
        %v920 = vlaneseq
        %v921 = vshrl.u32 %v920, 7
        %v922 = vsub.s32 %v919, %v921
        %v923 = vrot.slane %v915, %v922
        %v925 = vunpack.c.l.s4 1934713408
        %v926 = vunpack.c.0.s8 %v925
        %v927 = vlaneseq
        %v928 = vshrl.u32 %v927, 7
        %v929 = vsub.s32 %v926, %v928
        %v930 = vrot.slane %v916, %v929
        %v931 = vcombine.low %v866, %v882
        %v932 = vcombine.high %v866, %v882
        %v934 = vunpack.c.l.s4 1934713408
        %v935 = vunpack.c.0.s8 %v934
        %v936 = vlaneseq
        %v937 = vshrl.u32 %v936, 7
        %v938 = vsub.s32 %v935, %v937
        %v939 = vrot.slane %v931, %v938
        %v941 = vunpack.c.l.s4 1934713408
        %v942 = vunpack.c.0.s8 %v941
        %v943 = vlaneseq
        %v944 = vshrl.u32 %v943, 7
        %v945 = vsub.s32 %v942, %v944
        %v946 = vrot.slane %v932, %v945
        %v947 = vcombine.low %v891, %v923
        %v948 = vcombine.high %v891, %v923
        %v949 = vcombine.low %v898, %v930
        %v950 = vcombine.high %v898, %v930
        %v951 = vcombine.low %v907, %v939
        %v952 = vcombine.high %v907, %v939
        %v953 = vcombine.low %v914, %v946
        %v954 = vcombine.high %v914, %v946
        %v955 = vcombine.low %v454, %v514
        %v956 = vcombine.high %v454, %v514
        %v958 = vunpack.c.l.s4 1983009808
        %v959 = vunpack.c.0.s8 %v958
        %v960 = vlaneseq
        %v961 = vshrl.u32 %v960, 7
        %v962 = vsub.s32 %v959, %v961
        %v963 = vrot.slane %v955, %v962
        %v965 = vunpack.c.l.s4 1983009808
        %v966 = vunpack.c.0.s8 %v965
        %v967 = vlaneseq
        %v968 = vshrl.u32 %v967, 7
        %v969 = vsub.s32 %v966, %v968
        %v970 = vrot.slane %v956, %v969
        %v971 = vcombine.low %v508, %v520
        %v972 = vcombine.high %v508, %v520
        %v974 = vunpack.c.l.s4 1983009808
        %v975 = vunpack.c.0.s8 %v974
        %v976 = vlaneseq
        %v977 = vshrl.u32 %v976, 7
        %v978 = vsub.s32 %v975, %v977
        %v979 = vrot.slane %v971, %v978
        %v981 = vunpack.c.l.s4 1983009808
        %v982 = vunpack.c.0.s8 %v981
        %v983 = vlaneseq
        %v984 = vshrl.u32 %v983, 7
        %v985 = vsub.s32 %v982, %v984
        %v986 = vrot.slane %v972, %v985
        %v987 = vcombine.low %v526, %v538
        %v988 = vcombine.high %v526, %v538
        %v990 = vunpack.c.l.s4 1983009808
        %v991 = vunpack.c.0.s8 %v990
        %v992 = vlaneseq
        %v993 = vshrl.u32 %v992, 7
        %v994 = vsub.s32 %v991, %v993
        %v995 = vrot.slane %v987, %v994
        %v997 = vunpack.c.l.s4 1983009808
        %v998 = vunpack.c.0.s8 %v997
        %v999 = vlaneseq
        %v1000 = vshrl.u32 %v999, 7
        %v1001 = vsub.s32 %v998, %v1000
        %v1002 = vrot.slane %v988, %v1001
        %v1003 = vcombine.low %v532, %v544
        %v1004 = vcombine.high %v532, %v544
        %v1006 = vunpack.c.l.s4 1983009808
        %v1007 = vunpack.c.0.s8 %v1006
        %v1008 = vlaneseq
        %v1009 = vshrl.u32 %v1008, 7
        %v1010 = vsub.s32 %v1007, %v1009
        %v1011 = vrot.slane %v1003, %v1010
        %v1013 = vunpack.c.l.s4 1983009808
        %v1014 = vunpack.c.0.s8 %v1013
        %v1015 = vlaneseq
        %v1016 = vshrl.u32 %v1015, 7
        %v1017 = vsub.s32 %v1014, %v1016
        %v1018 = vrot.slane %v1004, %v1017
        %v1019 = vcombine.low %v963, %v979
        %v1020 = vcombine.high %v963, %v979
        %v1022 = vunpack.c.l.s4 1934713408
        %v1023 = vunpack.c.0.s8 %v1022
        %v1024 = vlaneseq
        %v1025 = vshrl.u32 %v1024, 7
        %v1026 = vsub.s32 %v1023, %v1025
        %v1027 = vrot.slane %v1019, %v1026
        %v1029 = vunpack.c.l.s4 1934713408
        %v1030 = vunpack.c.0.s8 %v1029
        %v1031 = vlaneseq
        %v1032 = vshrl.u32 %v1031, 7
        %v1033 = vsub.s32 %v1030, %v1032
        %v1034 = vrot.slane %v1020, %v1033
        %v1035 = vcombine.low %v970, %v986
        %v1036 = vcombine.high %v970, %v986
        %v1038 = vunpack.c.l.s4 1934713408
        %v1039 = vunpack.c.0.s8 %v1038
        %v1040 = vlaneseq
        %v1041 = vshrl.u32 %v1040, 7
        %v1042 = vsub.s32 %v1039, %v1041
        %v1043 = vrot.slane %v1035, %v1042
        %v1045 = vunpack.c.l.s4 1934713408
        %v1046 = vunpack.c.0.s8 %v1045
        %v1047 = vlaneseq
        %v1048 = vshrl.u32 %v1047, 7
        %v1049 = vsub.s32 %v1046, %v1048
        %v1050 = vrot.slane %v1036, %v1049
        %v1051 = vcombine.low %v995, %v1011
        %v1052 = vcombine.high %v995, %v1011
        %v1054 = vunpack.c.l.s4 1934713408
        %v1055 = vunpack.c.0.s8 %v1054
        %v1056 = vlaneseq
        %v1057 = vshrl.u32 %v1056, 7
        %v1058 = vsub.s32 %v1055, %v1057
        %v1059 = vrot.slane %v1051, %v1058
        %v1061 = vunpack.c.l.s4 1934713408
        %v1062 = vunpack.c.0.s8 %v1061
        %v1063 = vlaneseq
        %v1064 = vshrl.u32 %v1063, 7
        %v1065 = vsub.s32 %v1062, %v1064
        %v1066 = vrot.slane %v1052, %v1065
        %v1067 = vcombine.low %v1002, %v1018
        %v1068 = vcombine.high %v1002, %v1018
        %v1070 = vunpack.c.l.s4 1934713408
        %v1071 = vunpack.c.0.s8 %v1070
        %v1072 = vlaneseq
        %v1073 = vshrl.u32 %v1072, 7
        %v1074 = vsub.s32 %v1071, %v1073
        %v1075 = vrot.slane %v1067, %v1074
        %v1077 = vunpack.c.l.s4 1934713408
        %v1078 = vunpack.c.0.s8 %v1077
        %v1079 = vlaneseq
        %v1080 = vshrl.u32 %v1079, 7
        %v1081 = vsub.s32 %v1078, %v1080
        %v1082 = vrot.slane %v1068, %v1081
        %v1083 = vcombine.low %v1027, %v1059
        %v1084 = vcombine.high %v1027, %v1059
        %v1085 = vcombine.low %v1034, %v1066
        %v1086 = vcombine.high %v1034, %v1066
        %v1087 = vcombine.low %v1043, %v1075
        %v1088 = vcombine.high %v1043, %v1075
        %v1089 = vcombine.low %v1050, %v1082
        %v1090 = vcombine.high %v1050, %v1082
        %1093 = vrot.lane.b32.xlu0 %v455, 112
        %v1094 = vpop.permute.xlu0 %1093
        %1095 = vrot.lane.b32.xlu0 %v457, 112
        %v1096 = vpop.permute.xlu0 %1095
        %1099 = vrot.lane.b32.xlu0 %v455, 96
        %v1100 = vpop.permute.xlu0 %1099
        %1101 = vrot.lane.b32.xlu0 %v457, 96
        %v1102 = vpop.permute.xlu0 %1101
        %1105 = vrot.lane.b32.xlu0 %v455, 80
        %v1106 = vpop.permute.xlu0 %1105
        %1107 = vrot.lane.b32.xlu0 %v457, 80
        %v1108 = vpop.permute.xlu0 %1107
        %1111 = vrot.lane.b32.xlu0 %v455, 64
        %v1112 = vpop.permute.xlu0 %1111
        %1113 = vrot.lane.b32.xlu0 %v457, 64
        %v1114 = vpop.permute.xlu0 %1113
        %1117 = vrot.lane.b32.xlu0 %v455, 48
        %v1118 = vpop.permute.xlu0 %1117
        %1119 = vrot.lane.b32.xlu0 %v457, 48
        %v1120 = vpop.permute.xlu0 %1119
        %1123 = vrot.lane.b32.xlu0 %v455, 32
        %v1124 = vpop.permute.xlu0 %1123
        %1125 = vrot.lane.b32.xlu0 %v457, 32
        %v1126 = vpop.permute.xlu0 %1125
        %1129 = vrot.lane.b32.xlu0 %v455, 16
        %v1130 = vpop.permute.xlu0 %1129
        %1131 = vrot.lane.b32.xlu0 %v457, 16
        %v1132 = vpop.permute.xlu0 %1131
        %1137 = vrot.lane.b32.xlu0 %v456, 112
        %v1138 = vpop.permute.xlu0 %1137
        %1139 = vrot.lane.b32.xlu0 %v458, 112
        %v1140 = vpop.permute.xlu0 %1139
        %1143 = vrot.lane.b32.xlu0 %v456, 96
        %v1144 = vpop.permute.xlu0 %1143
        %1145 = vrot.lane.b32.xlu0 %v458, 96
        %v1146 = vpop.permute.xlu0 %1145
        %1149 = vrot.lane.b32.xlu0 %v456, 80
        %v1150 = vpop.permute.xlu0 %1149
        %1151 = vrot.lane.b32.xlu0 %v458, 80
        %v1152 = vpop.permute.xlu0 %1151
        %1155 = vrot.lane.b32.xlu0 %v456, 64
        %v1156 = vpop.permute.xlu0 %1155
        %1157 = vrot.lane.b32.xlu0 %v458, 64
        %v1158 = vpop.permute.xlu0 %1157
        %1161 = vrot.lane.b32.xlu0 %v456, 48
        %v1162 = vpop.permute.xlu0 %1161
        %1163 = vrot.lane.b32.xlu0 %v458, 48
        %v1164 = vpop.permute.xlu0 %1163
        %1167 = vrot.lane.b32.xlu0 %v456, 32
        %v1168 = vpop.permute.xlu0 %1167
        %1169 = vrot.lane.b32.xlu0 %v458, 32
        %v1170 = vpop.permute.xlu0 %1169
        %1173 = vrot.lane.b32.xlu0 %v456, 16
        %v1174 = vpop.permute.xlu0 %1173
        %1175 = vrot.lane.b32.xlu0 %v458, 16
        %v1176 = vpop.permute.xlu0 %1175
        %v1179 = vcombine.low %v455, %v1100
        %v1180 = vcombine.high %v455, %v1100
        %v1182 = vunpack.c.l.s4 1983009808
        %v1183 = vunpack.c.0.s8 %v1182
        %v1184 = vlaneseq
        %v1185 = vshrl.u32 %v1184, 7
        %v1186 = vsub.s32 %v1183, %v1185
        %v1187 = vrot.slane %v1179, %v1186
        %v1189 = vunpack.c.l.s4 1983009808
        %v1190 = vunpack.c.0.s8 %v1189
        %v1191 = vlaneseq
        %v1192 = vshrl.u32 %v1191, 7
        %v1193 = vsub.s32 %v1190, %v1192
        %v1194 = vrot.slane %v1180, %v1193
        %v1195 = vcombine.low %v1094, %v1106
        %v1196 = vcombine.high %v1094, %v1106
        %v1198 = vunpack.c.l.s4 1983009808
        %v1199 = vunpack.c.0.s8 %v1198
        %v1200 = vlaneseq
        %v1201 = vshrl.u32 %v1200, 7
        %v1202 = vsub.s32 %v1199, %v1201
        %v1203 = vrot.slane %v1195, %v1202
        %v1205 = vunpack.c.l.s4 1983009808
        %v1206 = vunpack.c.0.s8 %v1205
        %v1207 = vlaneseq
        %v1208 = vshrl.u32 %v1207, 7
        %v1209 = vsub.s32 %v1206, %v1208
        %v1210 = vrot.slane %v1196, %v1209
        %v1211 = vcombine.low %v1112, %v1124
        %v1212 = vcombine.high %v1112, %v1124
        %v1214 = vunpack.c.l.s4 1983009808
        %v1215 = vunpack.c.0.s8 %v1214
        %v1216 = vlaneseq
        %v1217 = vshrl.u32 %v1216, 7
        %v1218 = vsub.s32 %v1215, %v1217
        %v1219 = vrot.slane %v1211, %v1218
        %v1221 = vunpack.c.l.s4 1983009808
        %v1222 = vunpack.c.0.s8 %v1221
        %v1223 = vlaneseq
        %v1224 = vshrl.u32 %v1223, 7
        %v1225 = vsub.s32 %v1222, %v1224
        %v1226 = vrot.slane %v1212, %v1225
        %v1227 = vcombine.low %v1118, %v1130
        %v1228 = vcombine.high %v1118, %v1130
        %v1230 = vunpack.c.l.s4 1983009808
        %v1231 = vunpack.c.0.s8 %v1230
        %v1232 = vlaneseq
        %v1233 = vshrl.u32 %v1232, 7
        %v1234 = vsub.s32 %v1231, %v1233
        %v1235 = vrot.slane %v1227, %v1234
        %v1237 = vunpack.c.l.s4 1983009808
        %v1238 = vunpack.c.0.s8 %v1237
        %v1239 = vlaneseq
        %v1240 = vshrl.u32 %v1239, 7
        %v1241 = vsub.s32 %v1238, %v1240
        %v1242 = vrot.slane %v1228, %v1241
        %v1243 = vcombine.low %v1187, %v1203
        %v1244 = vcombine.high %v1187, %v1203
        %v1246 = vunpack.c.l.s4 1934713408
        %v1247 = vunpack.c.0.s8 %v1246
        %v1248 = vlaneseq
        %v1249 = vshrl.u32 %v1248, 7
        %v1250 = vsub.s32 %v1247, %v1249
        %v1251 = vrot.slane %v1243, %v1250
        %v1253 = vunpack.c.l.s4 1934713408
        %v1254 = vunpack.c.0.s8 %v1253
        %v1255 = vlaneseq
        %v1256 = vshrl.u32 %v1255, 7
        %v1257 = vsub.s32 %v1254, %v1256
        %v1258 = vrot.slane %v1244, %v1257
        %v1259 = vcombine.low %v1194, %v1210
        %v1260 = vcombine.high %v1194, %v1210
        %v1262 = vunpack.c.l.s4 1934713408
        %v1263 = vunpack.c.0.s8 %v1262
        %v1264 = vlaneseq
        %v1265 = vshrl.u32 %v1264, 7
        %v1266 = vsub.s32 %v1263, %v1265
        %v1267 = vrot.slane %v1259, %v1266
        %v1269 = vunpack.c.l.s4 1934713408
        %v1270 = vunpack.c.0.s8 %v1269
        %v1271 = vlaneseq
        %v1272 = vshrl.u32 %v1271, 7
        %v1273 = vsub.s32 %v1270, %v1272
        %v1274 = vrot.slane %v1260, %v1273
        %v1275 = vcombine.low %v1219, %v1235
        %v1276 = vcombine.high %v1219, %v1235
        %v1278 = vunpack.c.l.s4 1934713408
        %v1279 = vunpack.c.0.s8 %v1278
        %v1280 = vlaneseq
        %v1281 = vshrl.u32 %v1280, 7
        %v1282 = vsub.s32 %v1279, %v1281
        %v1283 = vrot.slane %v1275, %v1282
        %v1285 = vunpack.c.l.s4 1934713408
        %v1286 = vunpack.c.0.s8 %v1285
        %v1287 = vlaneseq
        %v1288 = vshrl.u32 %v1287, 7
        %v1289 = vsub.s32 %v1286, %v1288
        %v1290 = vrot.slane %v1276, %v1289
        %v1291 = vcombine.low %v1226, %v1242
        %v1292 = vcombine.high %v1226, %v1242
        %v1294 = vunpack.c.l.s4 1934713408
        %v1295 = vunpack.c.0.s8 %v1294
        %v1296 = vlaneseq
        %v1297 = vshrl.u32 %v1296, 7
        %v1298 = vsub.s32 %v1295, %v1297
        %v1299 = vrot.slane %v1291, %v1298
        %v1301 = vunpack.c.l.s4 1934713408
        %v1302 = vunpack.c.0.s8 %v1301
        %v1303 = vlaneseq
        %v1304 = vshrl.u32 %v1303, 7
        %v1305 = vsub.s32 %v1302, %v1304
        %v1306 = vrot.slane %v1292, %v1305
        %v1307 = vcombine.low %v1251, %v1283
        %v1308 = vcombine.high %v1251, %v1283
        %v1309 = vcombine.low %v1258, %v1290
        %v1310 = vcombine.high %v1258, %v1290
        %v1311 = vcombine.low %v1267, %v1299
        %v1312 = vcombine.high %v1267, %v1299
        %v1313 = vcombine.low %v1274, %v1306
        %v1314 = vcombine.high %v1274, %v1306
        %v1315 = vcombine.low %v456, %v1144
        %v1316 = vcombine.high %v456, %v1144
        %v1318 = vunpack.c.l.s4 1983009808
        %v1319 = vunpack.c.0.s8 %v1318
        %v1320 = vlaneseq
        %v1321 = vshrl.u32 %v1320, 7
        %v1322 = vsub.s32 %v1319, %v1321
        %v1323 = vrot.slane %v1315, %v1322
        %v1325 = vunpack.c.l.s4 1983009808
        %v1326 = vunpack.c.0.s8 %v1325
        %v1327 = vlaneseq
        %v1328 = vshrl.u32 %v1327, 7
        %v1329 = vsub.s32 %v1326, %v1328
        %v1330 = vrot.slane %v1316, %v1329
        %v1331 = vcombine.low %v1138, %v1150
        %v1332 = vcombine.high %v1138, %v1150
        %v1334 = vunpack.c.l.s4 1983009808
        %v1335 = vunpack.c.0.s8 %v1334
        %v1336 = vlaneseq
        %v1337 = vshrl.u32 %v1336, 7
        %v1338 = vsub.s32 %v1335, %v1337
        %v1339 = vrot.slane %v1331, %v1338
        %v1341 = vunpack.c.l.s4 1983009808
        %v1342 = vunpack.c.0.s8 %v1341
        %v1343 = vlaneseq
        %v1344 = vshrl.u32 %v1343, 7
        %v1345 = vsub.s32 %v1342, %v1344
        %v1346 = vrot.slane %v1332, %v1345
        %v1347 = vcombine.low %v1156, %v1168
        %v1348 = vcombine.high %v1156, %v1168
        %v1350 = vunpack.c.l.s4 1983009808
        %v1351 = vunpack.c.0.s8 %v1350
        %v1352 = vlaneseq
        %v1353 = vshrl.u32 %v1352, 7
        %v1354 = vsub.s32 %v1351, %v1353
        %v1355 = vrot.slane %v1347, %v1354
        %v1357 = vunpack.c.l.s4 1983009808
        %v1358 = vunpack.c.0.s8 %v1357
        %v1359 = vlaneseq
        %v1360 = vshrl.u32 %v1359, 7
        %v1361 = vsub.s32 %v1358, %v1360
        %v1362 = vrot.slane %v1348, %v1361
        %v1363 = vcombine.low %v1162, %v1174
        %v1364 = vcombine.high %v1162, %v1174
        %v1366 = vunpack.c.l.s4 1983009808
        %v1367 = vunpack.c.0.s8 %v1366
        %v1368 = vlaneseq
        %v1369 = vshrl.u32 %v1368, 7
        %v1370 = vsub.s32 %v1367, %v1369
        %v1371 = vrot.slane %v1363, %v1370
        %v1373 = vunpack.c.l.s4 1983009808
        %v1374 = vunpack.c.0.s8 %v1373
        %v1375 = vlaneseq
        %v1376 = vshrl.u32 %v1375, 7
        %v1377 = vsub.s32 %v1374, %v1376
        %v1378 = vrot.slane %v1364, %v1377
        %v1379 = vcombine.low %v1323, %v1339
        %v1380 = vcombine.high %v1323, %v1339
        %v1382 = vunpack.c.l.s4 1934713408
        %v1383 = vunpack.c.0.s8 %v1382
        %v1384 = vlaneseq
        %v1385 = vshrl.u32 %v1384, 7
        %v1386 = vsub.s32 %v1383, %v1385
        %v1387 = vrot.slane %v1379, %v1386
        %v1389 = vunpack.c.l.s4 1934713408
        %v1390 = vunpack.c.0.s8 %v1389
        %v1391 = vlaneseq
        %v1392 = vshrl.u32 %v1391, 7
        %v1393 = vsub.s32 %v1390, %v1392
        %v1394 = vrot.slane %v1380, %v1393
        %v1395 = vcombine.low %v1330, %v1346
        %v1396 = vcombine.high %v1330, %v1346
        %v1398 = vunpack.c.l.s4 1934713408
        %v1399 = vunpack.c.0.s8 %v1398
        %v1400 = vlaneseq
        %v1401 = vshrl.u32 %v1400, 7
        %v1402 = vsub.s32 %v1399, %v1401
        %v1403 = vrot.slane %v1395, %v1402
        %v1405 = vunpack.c.l.s4 1934713408
        %v1406 = vunpack.c.0.s8 %v1405
        %v1407 = vlaneseq
        %v1408 = vshrl.u32 %v1407, 7
        %v1409 = vsub.s32 %v1406, %v1408
        %v1410 = vrot.slane %v1396, %v1409
        %v1411 = vcombine.low %v1355, %v1371
        %v1412 = vcombine.high %v1355, %v1371
        %v1414 = vunpack.c.l.s4 1934713408
        %v1415 = vunpack.c.0.s8 %v1414
        %v1416 = vlaneseq
        %v1417 = vshrl.u32 %v1416, 7
        %v1418 = vsub.s32 %v1415, %v1417
        %v1419 = vrot.slane %v1411, %v1418
        %v1421 = vunpack.c.l.s4 1934713408
        %v1422 = vunpack.c.0.s8 %v1421
        %v1423 = vlaneseq
        %v1424 = vshrl.u32 %v1423, 7
        %v1425 = vsub.s32 %v1422, %v1424
        %v1426 = vrot.slane %v1412, %v1425
        %v1427 = vcombine.low %v1362, %v1378
        %v1428 = vcombine.high %v1362, %v1378
        %v1430 = vunpack.c.l.s4 1934713408
        %v1431 = vunpack.c.0.s8 %v1430
        %v1432 = vlaneseq
        %v1433 = vshrl.u32 %v1432, 7
        %v1434 = vsub.s32 %v1431, %v1433
        %v1435 = vrot.slane %v1427, %v1434
        %v1437 = vunpack.c.l.s4 1934713408
        %v1438 = vunpack.c.0.s8 %v1437
        %v1439 = vlaneseq
        %v1440 = vshrl.u32 %v1439, 7
        %v1441 = vsub.s32 %v1438, %v1440
        %v1442 = vrot.slane %v1428, %v1441
        %v1443 = vcombine.low %v1387, %v1419
        %v1444 = vcombine.high %v1387, %v1419
        %v1445 = vcombine.low %v1394, %v1426
        %v1446 = vcombine.high %v1394, %v1426
        %v1447 = vcombine.low %v1403, %v1435
        %v1448 = vcombine.high %v1403, %v1435
        %v1449 = vcombine.low %v1410, %v1442
        %v1450 = vcombine.high %v1410, %v1442
        %v1451 = vcombine.low %v457, %v1102
        %v1452 = vcombine.high %v457, %v1102
        %v1454 = vunpack.c.l.s4 1983009808
        %v1455 = vunpack.c.0.s8 %v1454
        %v1456 = vlaneseq
        %v1457 = vshrl.u32 %v1456, 7
        %v1458 = vsub.s32 %v1455, %v1457
        %v1459 = vrot.slane %v1451, %v1458
        %v1461 = vunpack.c.l.s4 1983009808
        %v1462 = vunpack.c.0.s8 %v1461
        %v1463 = vlaneseq
        %v1464 = vshrl.u32 %v1463, 7
        %v1465 = vsub.s32 %v1462, %v1464
        %v1466 = vrot.slane %v1452, %v1465
        %v1467 = vcombine.low %v1096, %v1108
        %v1468 = vcombine.high %v1096, %v1108
        %v1470 = vunpack.c.l.s4 1983009808
        %v1471 = vunpack.c.0.s8 %v1470
        %v1472 = vlaneseq
        %v1473 = vshrl.u32 %v1472, 7
        %v1474 = vsub.s32 %v1471, %v1473
        %v1475 = vrot.slane %v1467, %v1474
        %v1477 = vunpack.c.l.s4 1983009808
        %v1478 = vunpack.c.0.s8 %v1477
        %v1479 = vlaneseq
        %v1480 = vshrl.u32 %v1479, 7
        %v1481 = vsub.s32 %v1478, %v1480
        %v1482 = vrot.slane %v1468, %v1481
        %v1483 = vcombine.low %v1114, %v1126
        %v1484 = vcombine.high %v1114, %v1126
        %v1486 = vunpack.c.l.s4 1983009808
        %v1487 = vunpack.c.0.s8 %v1486
        %v1488 = vlaneseq
        %v1489 = vshrl.u32 %v1488, 7
        %v1490 = vsub.s32 %v1487, %v1489
        %v1491 = vrot.slane %v1483, %v1490
        %v1493 = vunpack.c.l.s4 1983009808
        %v1494 = vunpack.c.0.s8 %v1493
        %v1495 = vlaneseq
        %v1496 = vshrl.u32 %v1495, 7
        %v1497 = vsub.s32 %v1494, %v1496
        %v1498 = vrot.slane %v1484, %v1497
        %v1499 = vcombine.low %v1120, %v1132
        %v1500 = vcombine.high %v1120, %v1132
        %v1502 = vunpack.c.l.s4 1983009808
        %v1503 = vunpack.c.0.s8 %v1502
        %v1504 = vlaneseq
        %v1505 = vshrl.u32 %v1504, 7
        %v1506 = vsub.s32 %v1503, %v1505
        %v1507 = vrot.slane %v1499, %v1506
        %v1509 = vunpack.c.l.s4 1983009808
        %v1510 = vunpack.c.0.s8 %v1509
        %v1511 = vlaneseq
        %v1512 = vshrl.u32 %v1511, 7
        %v1513 = vsub.s32 %v1510, %v1512
        %v1514 = vrot.slane %v1500, %v1513
        %v1515 = vcombine.low %v1459, %v1475
        %v1516 = vcombine.high %v1459, %v1475
        %v1518 = vunpack.c.l.s4 1934713408
        %v1519 = vunpack.c.0.s8 %v1518
        %v1520 = vlaneseq
        %v1521 = vshrl.u32 %v1520, 7
        %v1522 = vsub.s32 %v1519, %v1521
        %v1523 = vrot.slane %v1515, %v1522
        %v1525 = vunpack.c.l.s4 1934713408
        %v1526 = vunpack.c.0.s8 %v1525
        %v1527 = vlaneseq
        %v1528 = vshrl.u32 %v1527, 7
        %v1529 = vsub.s32 %v1526, %v1528
        %v1530 = vrot.slane %v1516, %v1529
        %v1531 = vcombine.low %v1466, %v1482
        %v1532 = vcombine.high %v1466, %v1482
        %v1534 = vunpack.c.l.s4 1934713408
        %v1535 = vunpack.c.0.s8 %v1534
        %v1536 = vlaneseq
        %v1537 = vshrl.u32 %v1536, 7
        %v1538 = vsub.s32 %v1535, %v1537
        %v1539 = vrot.slane %v1531, %v1538
        %v1541 = vunpack.c.l.s4 1934713408
        %v1542 = vunpack.c.0.s8 %v1541
        %v1543 = vlaneseq
        %v1544 = vshrl.u32 %v1543, 7
        %v1545 = vsub.s32 %v1542, %v1544
        %v1546 = vrot.slane %v1532, %v1545
        %v1547 = vcombine.low %v1491, %v1507
        %v1548 = vcombine.high %v1491, %v1507
        %v1550 = vunpack.c.l.s4 1934713408
        %v1551 = vunpack.c.0.s8 %v1550
        %v1552 = vlaneseq
        %v1553 = vshrl.u32 %v1552, 7
        %v1554 = vsub.s32 %v1551, %v1553
        %v1555 = vrot.slane %v1547, %v1554
        %v1557 = vunpack.c.l.s4 1934713408
        %v1558 = vunpack.c.0.s8 %v1557
        %v1559 = vlaneseq
        %v1560 = vshrl.u32 %v1559, 7
        %v1561 = vsub.s32 %v1558, %v1560
        %v1562 = vrot.slane %v1548, %v1561
        %v1563 = vcombine.low %v1498, %v1514
        %v1564 = vcombine.high %v1498, %v1514
        %v1566 = vunpack.c.l.s4 1934713408
        %v1567 = vunpack.c.0.s8 %v1566
        %v1568 = vlaneseq
        %v1569 = vshrl.u32 %v1568, 7
        %v1570 = vsub.s32 %v1567, %v1569
        %v1571 = vrot.slane %v1563, %v1570
        %v1573 = vunpack.c.l.s4 1934713408
        %v1574 = vunpack.c.0.s8 %v1573
        %v1575 = vlaneseq
        %v1576 = vshrl.u32 %v1575, 7
        %v1577 = vsub.s32 %v1574, %v1576
        %v1578 = vrot.slane %v1564, %v1577
        %v1579 = vcombine.low %v1523, %v1555
        %v1580 = vcombine.high %v1523, %v1555
        %v1581 = vcombine.low %v1530, %v1562
        %v1582 = vcombine.high %v1530, %v1562
        %v1583 = vcombine.low %v1539, %v1571
        %v1584 = vcombine.high %v1539, %v1571
        %v1585 = vcombine.low %v1546, %v1578
        %v1586 = vcombine.high %v1546, %v1578
        %v1587 = vcombine.low %v458, %v1146
        %v1588 = vcombine.high %v458, %v1146
        %v1590 = vunpack.c.l.s4 1983009808
        %v1591 = vunpack.c.0.s8 %v1590
        %v1592 = vlaneseq
        %v1593 = vshrl.u32 %v1592, 7
        %v1594 = vsub.s32 %v1591, %v1593
        %v1595 = vrot.slane %v1587, %v1594
        %v1597 = vunpack.c.l.s4 1983009808
        %v1598 = vunpack.c.0.s8 %v1597
        %v1599 = vlaneseq
        %v1600 = vshrl.u32 %v1599, 7
        %v1601 = vsub.s32 %v1598, %v1600
        %v1602 = vrot.slane %v1588, %v1601
        %v1603 = vcombine.low %v1140, %v1152
        %v1604 = vcombine.high %v1140, %v1152
        %v1606 = vunpack.c.l.s4 1983009808
        %v1607 = vunpack.c.0.s8 %v1606
        %v1608 = vlaneseq
        %v1609 = vshrl.u32 %v1608, 7
        %v1610 = vsub.s32 %v1607, %v1609
        %v1611 = vrot.slane %v1603, %v1610
        %v1613 = vunpack.c.l.s4 1983009808
        %v1614 = vunpack.c.0.s8 %v1613
        %v1615 = vlaneseq
        %v1616 = vshrl.u32 %v1615, 7
        %v1617 = vsub.s32 %v1614, %v1616
        %v1618 = vrot.slane %v1604, %v1617
        %v1619 = vcombine.low %v1158, %v1170
        %v1620 = vcombine.high %v1158, %v1170
        %v1622 = vunpack.c.l.s4 1983009808
        %v1623 = vunpack.c.0.s8 %v1622
        %v1624 = vlaneseq
        %v1625 = vshrl.u32 %v1624, 7
        %v1626 = vsub.s32 %v1623, %v1625
        %v1627 = vrot.slane %v1619, %v1626
        %v1629 = vunpack.c.l.s4 1983009808
        %v1630 = vunpack.c.0.s8 %v1629
        %v1631 = vlaneseq
        %v1632 = vshrl.u32 %v1631, 7
        %v1633 = vsub.s32 %v1630, %v1632
        %v1634 = vrot.slane %v1620, %v1633
        %v1635 = vcombine.low %v1164, %v1176
        %v1636 = vcombine.high %v1164, %v1176
        %v1638 = vunpack.c.l.s4 1983009808
        %v1639 = vunpack.c.0.s8 %v1638
        %v1640 = vlaneseq
        %v1641 = vshrl.u32 %v1640, 7
        %v1642 = vsub.s32 %v1639, %v1641
        %v1643 = vrot.slane %v1635, %v1642
        %v1645 = vunpack.c.l.s4 1983009808
        %v1646 = vunpack.c.0.s8 %v1645
        %v1647 = vlaneseq
        %v1648 = vshrl.u32 %v1647, 7
        %v1649 = vsub.s32 %v1646, %v1648
        %v1650 = vrot.slane %v1636, %v1649
        %v1651 = vcombine.low %v1595, %v1611
        %v1652 = vcombine.high %v1595, %v1611
        %v1654 = vunpack.c.l.s4 1934713408
        %v1655 = vunpack.c.0.s8 %v1654
        %v1656 = vlaneseq
        %v1657 = vshrl.u32 %v1656, 7
        %v1658 = vsub.s32 %v1655, %v1657
        %v1659 = vrot.slane %v1651, %v1658
        %v1661 = vunpack.c.l.s4 1934713408
        %v1662 = vunpack.c.0.s8 %v1661
        %v1663 = vlaneseq
        %v1664 = vshrl.u32 %v1663, 7
        %v1665 = vsub.s32 %v1662, %v1664
        %v1666 = vrot.slane %v1652, %v1665
        %v1667 = vcombine.low %v1602, %v1618
        %v1668 = vcombine.high %v1602, %v1618
        %v1670 = vunpack.c.l.s4 1934713408
        %v1671 = vunpack.c.0.s8 %v1670
        %v1672 = vlaneseq
        %v1673 = vshrl.u32 %v1672, 7
        %v1674 = vsub.s32 %v1671, %v1673
        %v1675 = vrot.slane %v1667, %v1674
        %v1677 = vunpack.c.l.s4 1934713408
        %v1678 = vunpack.c.0.s8 %v1677
        %v1679 = vlaneseq
        %v1680 = vshrl.u32 %v1679, 7
        %v1681 = vsub.s32 %v1678, %v1680
        %v1682 = vrot.slane %v1668, %v1681
        %v1683 = vcombine.low %v1627, %v1643
        %v1684 = vcombine.high %v1627, %v1643
        %v1686 = vunpack.c.l.s4 1934713408
        %v1687 = vunpack.c.0.s8 %v1686
        %v1688 = vlaneseq
        %v1689 = vshrl.u32 %v1688, 7
        %v1690 = vsub.s32 %v1687, %v1689
        %v1691 = vrot.slane %v1683, %v1690
        %v1693 = vunpack.c.l.s4 1934713408
        %v1694 = vunpack.c.0.s8 %v1693
        %v1695 = vlaneseq
        %v1696 = vshrl.u32 %v1695, 7
        %v1697 = vsub.s32 %v1694, %v1696
        %v1698 = vrot.slane %v1684, %v1697
        %v1699 = vcombine.low %v1634, %v1650
        %v1700 = vcombine.high %v1634, %v1650
        %v1702 = vunpack.c.l.s4 1934713408
        %v1703 = vunpack.c.0.s8 %v1702
        %v1704 = vlaneseq
        %v1705 = vshrl.u32 %v1704, 7
        %v1706 = vsub.s32 %v1703, %v1705
        %v1707 = vrot.slane %v1699, %v1706
        %v1709 = vunpack.c.l.s4 1934713408
        %v1710 = vunpack.c.0.s8 %v1709
        %v1711 = vlaneseq
        %v1712 = vshrl.u32 %v1711, 7
        %v1713 = vsub.s32 %v1710, %v1712
        %v1714 = vrot.slane %v1700, %v1713
        %v1715 = vcombine.low %v1659, %v1691
        %v1716 = vcombine.high %v1659, %v1691
        %v1717 = vcombine.low %v1666, %v1698
        %v1718 = vcombine.high %v1666, %v1698
        %v1719 = vcombine.low %v1675, %v1707
        %v1720 = vcombine.high %v1675, %v1707
        %v1721 = vcombine.low %v1682, %v1714
        %v1722 = vcombine.high %v1682, %v1714
        %vm1723 = vcmask 130048
        %v1725 = vsel %vm1723, %v675, 0
        %v1728 = vsel %vm1723, %v811, 0
        %1730 = vmatprep.subr.mxu0 0.0
        %1731 = vmatpush1.msra.mxu0 0.0
        %1732 = vmatprep.subr.mxu0 0.0
        %1733 = vmatpush1.msra.mxu0 0.0
        %1734 = vmatprep.subr.mxu0 0.0
        %1735 = vmatpush1.msra.mxu0 0.0
        %1736 = vmatprep.subr.mxu0 0.0
        %1737 = vmatpush1.msra.mxu0 0.0
        %1738 = vmatprep.subr.mxu0 0.0
        %1739 = vmatpush1.msra.mxu0 0.0
        %1740 = vmatprep.subr.mxu0 0.0
        %1741 = vmatpush1.msra.mxu0 0.0
        %1742 = vmatprep.subr.mxu0 0.0
        %1743 = vmatpush1.msra.mxu0 0.0
        %1744 = vmatprep.subr.mxu0 0.0
        %1745 = vmatpush1.msra.mxu0 0.0
        %1746 = vmatprep.subr.mxu0 0.0
        %1747 = vmatpush1.msra.mxu0 0.0
        %1748 = vmatprep.subr.mxu0 0.0
        %1749 = vmatpush1.msra.mxu0 0.0
        %1750 = vmatprep.subr.mxu0 0.0
        %1751 = vmatpush1.msra.mxu0 0.0
        %1752 = vmatprep.subr.mxu0 0.0
        %1753 = vmatpush1.msra.mxu0 0.0
        %1754 = vmatprep.subr.mxu0 0.0
        %1755 = vmatpush1.msra.mxu0 0.0
        %1756 = vmatprep.subr.mxu0 0.0
        %1757 = vmatpush1.msra.mxu0 0.0
        %1758 = vmatprep.subr.mxu0 0.0
        %1759 = vmatpush1.msra.mxu0 %v1443
        %1760 = vmatprep.subr.mxu0 0.0
        %1761 = vmatpush1.msra.mxu0 %v1307
        %1762 = vmatprep.subr.mxu0 0.0
        %1763 = vmatpush2.msra.mxu0 0.0
        %1764 = vmatprep.subr.mxu0 0.0
        %1765 = vmatpush2.msra.mxu0 0.0
        %1766 = vmatprep.subr.mxu0 0.0
        %1767 = vmatpush2.msra.mxu0 0.0
        %1768 = vmatprep.subr.mxu0 0.0
        %1769 = vmatpush2.msra.mxu0 0.0
        %1770 = vmatprep.subr.mxu0 0.0
        %1771 = vmatpush2.msra.mxu0 0.0
        %1772 = vmatprep.subr.mxu0 0.0
        %1773 = vmatpush2.msra.mxu0 0.0
        %1774 = vmatprep.subr.mxu0 0.0
        %1775 = vmatpush2.msra.mxu0 0.0
        %1776 = vmatprep.subr.mxu0 0.0
        %1777 = vmatpush2.msra.mxu0 0.0
        %1778 = vmatprep.subr.mxu0 0.0
        %1779 = vmatpush2.msra.mxu0 0.0
        %1780 = vmatprep.subr.mxu0 0.0
        %1781 = vmatpush2.msra.mxu0 0.0
        %1782 = vmatprep.subr.mxu0 0.0
        %1783 = vmatpush2.msra.mxu0 0.0
        %1784 = vmatprep.subr.mxu0 0.0
        %1785 = vmatpush2.msra.mxu0 0.0
        %1786 = vmatprep.subr.mxu0 0.0
        %1787 = vmatpush2.msra.mxu0 0.0
        %1788 = vmatprep.subr.mxu0 0.0
        %1789 = vmatpush2.msra.mxu0 0.0
        %1790 = vmatprep.subr.mxu0 0.0
        %1791 = vmatpush2.msra.mxu0 0.0
        %1792 = vmatprep.subr.mxu0 0.0
        %1793 = vmatpush2.msra.mxu0 0.0
        %1794 = vmatprep.mubr.f32.mxu0 0.0
        %1795 = vmatmul.mubr.f32.gmra.mxu0 %v1725
        %v1796 = vpop.f32.mrf.mxu0
        %v1797 = vadd.f32 0.0, %v1796
        %v1798 = vpop.f32.mrf.mxu0
        %1799 = vmatprep.mubr.f32.mxu0 0.0
        %1800 = vmatmul.mubr.f32.gmra.mxu0 %v1728
        %v1801 = vpop.f32.mrf.mxu0
        %v1802 = vadd.f32 0.0, %v1801
        %v1803 = vpop.f32.mrf.mxu0
        %1804 = vdwg.mxu0
        %v1806 = vsel %vm1723, %v676, 0
        %v1809 = vsel %vm1723, %v812, 0
        %1811 = vmatprep.subr.mxu0 0.0
        %1812 = vmatpush1.msra.mxu0 0.0
        %1813 = vmatprep.subr.mxu0 0.0
        %1814 = vmatpush1.msra.mxu0 0.0
        %1815 = vmatprep.subr.mxu0 0.0
        %1816 = vmatpush1.msra.mxu0 0.0
        %1817 = vmatprep.subr.mxu0 0.0
        %1818 = vmatpush1.msra.mxu0 0.0
        %1819 = vmatprep.subr.mxu0 0.0
        %1820 = vmatpush1.msra.mxu0 0.0
        %1821 = vmatprep.subr.mxu0 0.0
        %1822 = vmatpush1.msra.mxu0 0.0
        %1823 = vmatprep.subr.mxu0 0.0
        %1824 = vmatpush1.msra.mxu0 0.0
        %1825 = vmatprep.subr.mxu0 0.0
        %1826 = vmatpush1.msra.mxu0 0.0
        %1827 = vmatprep.subr.mxu0 0.0
        %1828 = vmatpush1.msra.mxu0 0.0
        %1829 = vmatprep.subr.mxu0 0.0
        %1830 = vmatpush1.msra.mxu0 0.0
        %1831 = vmatprep.subr.mxu0 0.0
        %1832 = vmatpush1.msra.mxu0 0.0
        %1833 = vmatprep.subr.mxu0 0.0
        %1834 = vmatpush1.msra.mxu0 0.0
        %1835 = vmatprep.subr.mxu0 0.0
        %1836 = vmatpush1.msra.mxu0 0.0
        %1837 = vmatprep.subr.mxu0 0.0
        %1838 = vmatpush1.msra.mxu0 0.0
        %1839 = vmatprep.subr.mxu0 0.0
        %1840 = vmatpush1.msra.mxu0 %v1444
        %1841 = vmatprep.subr.mxu0 0.0
        %1842 = vmatpush1.msra.mxu0 %v1308
        %1843 = vmatprep.subr.mxu0 0.0
        %1844 = vmatpush2.msra.mxu0 0.0
        %1845 = vmatprep.subr.mxu0 0.0
        %1846 = vmatpush2.msra.mxu0 0.0
        %1847 = vmatprep.subr.mxu0 0.0
        %1848 = vmatpush2.msra.mxu0 0.0
        %1849 = vmatprep.subr.mxu0 0.0
        %1850 = vmatpush2.msra.mxu0 0.0
        %1851 = vmatprep.subr.mxu0 0.0
        %1852 = vmatpush2.msra.mxu0 0.0
        %1853 = vmatprep.subr.mxu0 0.0
        %1854 = vmatpush2.msra.mxu0 0.0
        %1855 = vmatprep.subr.mxu0 0.0
        %1856 = vmatpush2.msra.mxu0 0.0
        %1857 = vmatprep.subr.mxu0 0.0
        %1858 = vmatpush2.msra.mxu0 0.0
        %1859 = vmatprep.subr.mxu0 0.0
        %1860 = vmatpush2.msra.mxu0 0.0
        %1861 = vmatprep.subr.mxu0 0.0
        %1862 = vmatpush2.msra.mxu0 0.0
        %1863 = vmatprep.subr.mxu0 0.0
        %1864 = vmatpush2.msra.mxu0 0.0
        %1865 = vmatprep.subr.mxu0 0.0
        %1866 = vmatpush2.msra.mxu0 0.0
        %1867 = vmatprep.subr.mxu0 0.0
        %1868 = vmatpush2.msra.mxu0 0.0
        %1869 = vmatprep.subr.mxu0 0.0
        %1870 = vmatpush2.msra.mxu0 0.0
        %1871 = vmatprep.subr.mxu0 0.0
        %1872 = vmatpush2.msra.mxu0 0.0
        %1873 = vmatprep.subr.mxu0 0.0
        %1874 = vmatpush2.msra.mxu0 0.0
        %1875 = vmatprep.mubr.f32.mxu0 0.0
        %1876 = vmatmul.mubr.f32.gmra.mxu0 %v1806
        %v1877 = vpop.f32.mrf.mxu0
        %v1878 = vadd.f32 0.0, %v1877
        %v1879 = vpop.f32.mrf.mxu0
        %1880 = vmatprep.mubr.f32.mxu0 0.0
        %1881 = vmatmul.mubr.f32.gmra.mxu0 %v1809
        %v1882 = vpop.f32.mrf.mxu0
        %v1883 = vadd.f32 0.0, %v1882
        %v1884 = vpop.f32.mrf.mxu0
        %1885 = vdwg.mxu0
        %v1887 = vsel %vm1723, %v677, 0
        %v1890 = vsel %vm1723, %v813, 0
        %1892 = vmatprep.subr.mxu0 0.0
        %1893 = vmatpush1.msra.mxu0 0.0
        %1894 = vmatprep.subr.mxu0 0.0
        %1895 = vmatpush1.msra.mxu0 0.0
        %1896 = vmatprep.subr.mxu0 0.0
        %1897 = vmatpush1.msra.mxu0 0.0
        %1898 = vmatprep.subr.mxu0 0.0
        %1899 = vmatpush1.msra.mxu0 0.0
        %1900 = vmatprep.subr.mxu0 0.0
        %1901 = vmatpush1.msra.mxu0 0.0
        %1902 = vmatprep.subr.mxu0 0.0
        %1903 = vmatpush1.msra.mxu0 0.0
        %1904 = vmatprep.subr.mxu0 0.0
        %1905 = vmatpush1.msra.mxu0 0.0
        %1906 = vmatprep.subr.mxu0 0.0
        %1907 = vmatpush1.msra.mxu0 0.0
        %1908 = vmatprep.subr.mxu0 0.0
        %1909 = vmatpush1.msra.mxu0 0.0
        %1910 = vmatprep.subr.mxu0 0.0
        %1911 = vmatpush1.msra.mxu0 0.0
        %1912 = vmatprep.subr.mxu0 0.0
        %1913 = vmatpush1.msra.mxu0 0.0
        %1914 = vmatprep.subr.mxu0 0.0
        %1915 = vmatpush1.msra.mxu0 0.0
        %1916 = vmatprep.subr.mxu0 0.0
        %1917 = vmatpush1.msra.mxu0 0.0
        %1918 = vmatprep.subr.mxu0 0.0
        %1919 = vmatpush1.msra.mxu0 0.0
        %1920 = vmatprep.subr.mxu0 0.0
        %1921 = vmatpush1.msra.mxu0 %v1445
        %1922 = vmatprep.subr.mxu0 0.0
        %1923 = vmatpush1.msra.mxu0 %v1309
        %1924 = vmatprep.subr.mxu0 0.0
        %1925 = vmatpush2.msra.mxu0 0.0
        %1926 = vmatprep.subr.mxu0 0.0
        %1927 = vmatpush2.msra.mxu0 0.0
        %1928 = vmatprep.subr.mxu0 0.0
        %1929 = vmatpush2.msra.mxu0 0.0
        %1930 = vmatprep.subr.mxu0 0.0
        %1931 = vmatpush2.msra.mxu0 0.0
        %1932 = vmatprep.subr.mxu0 0.0
        %1933 = vmatpush2.msra.mxu0 0.0
        %1934 = vmatprep.subr.mxu0 0.0
        %1935 = vmatpush2.msra.mxu0 0.0
        %1936 = vmatprep.subr.mxu0 0.0
        %1937 = vmatpush2.msra.mxu0 0.0
        %1938 = vmatprep.subr.mxu0 0.0
        %1939 = vmatpush2.msra.mxu0 0.0
        %1940 = vmatprep.subr.mxu0 0.0
        %1941 = vmatpush2.msra.mxu0 0.0
        %1942 = vmatprep.subr.mxu0 0.0
        %1943 = vmatpush2.msra.mxu0 0.0
        %1944 = vmatprep.subr.mxu0 0.0
        %1945 = vmatpush2.msra.mxu0 0.0
        %1946 = vmatprep.subr.mxu0 0.0
        %1947 = vmatpush2.msra.mxu0 0.0
        %1948 = vmatprep.subr.mxu0 0.0
        %1949 = vmatpush2.msra.mxu0 0.0
        %1950 = vmatprep.subr.mxu0 0.0
        %1951 = vmatpush2.msra.mxu0 0.0
        %1952 = vmatprep.subr.mxu0 0.0
        %1953 = vmatpush2.msra.mxu0 0.0
        %1954 = vmatprep.subr.mxu0 0.0
        %1955 = vmatpush2.msra.mxu0 0.0
        %1956 = vmatprep.mubr.f32.mxu0 0.0
        %1957 = vmatmul.mubr.f32.gmra.mxu0 %v1887
        %v1958 = vpop.f32.mrf.mxu0
        %v1959 = vadd.f32 0.0, %v1958
        %v1960 = vpop.f32.mrf.mxu0
        %1961 = vmatprep.mubr.f32.mxu0 0.0
        %1962 = vmatmul.mubr.f32.gmra.mxu0 %v1890
        %v1963 = vpop.f32.mrf.mxu0
        %v1964 = vadd.f32 0.0, %v1963
        %v1965 = vpop.f32.mrf.mxu0
        %1966 = vdwg.mxu0
        %v1968 = vsel %vm1723, %v678, 0
        %v1971 = vsel %vm1723, %v814, 0
        %1973 = vmatprep.subr.mxu0 0.0
        %1974 = vmatpush1.msra.mxu0 0.0
        %1975 = vmatprep.subr.mxu0 0.0
        %1976 = vmatpush1.msra.mxu0 0.0
        %1977 = vmatprep.subr.mxu0 0.0
        %1978 = vmatpush1.msra.mxu0 0.0
        %1979 = vmatprep.subr.mxu0 0.0
        %1980 = vmatpush1.msra.mxu0 0.0
        %1981 = vmatprep.subr.mxu0 0.0
        %1982 = vmatpush1.msra.mxu0 0.0
        %1983 = vmatprep.subr.mxu0 0.0
        %1984 = vmatpush1.msra.mxu0 0.0
        %1985 = vmatprep.subr.mxu0 0.0
        %1986 = vmatpush1.msra.mxu0 0.0
        %1987 = vmatprep.subr.mxu0 0.0
        %1988 = vmatpush1.msra.mxu0 0.0
        %1989 = vmatprep.subr.mxu0 0.0
        %1990 = vmatpush1.msra.mxu0 0.0
        %1991 = vmatprep.subr.mxu0 0.0
        %1992 = vmatpush1.msra.mxu0 0.0
        %1993 = vmatprep.subr.mxu0 0.0
        %1994 = vmatpush1.msra.mxu0 0.0
        %1995 = vmatprep.subr.mxu0 0.0
        %1996 = vmatpush1.msra.mxu0 0.0
        %1997 = vmatprep.subr.mxu0 0.0
        %1998 = vmatpush1.msra.mxu0 0.0
        %1999 = vmatprep.subr.mxu0 0.0
        %2000 = vmatpush1.msra.mxu0 0.0
        %2001 = vmatprep.subr.mxu0 0.0
        %2002 = vmatpush1.msra.mxu0 %v1446
        %2003 = vmatprep.subr.mxu0 0.0
        %2004 = vmatpush1.msra.mxu0 %v1310
        %2005 = vmatprep.subr.mxu0 0.0
        %2006 = vmatpush2.msra.mxu0 0.0
        %2007 = vmatprep.subr.mxu0 0.0
        %2008 = vmatpush2.msra.mxu0 0.0
        %2009 = vmatprep.subr.mxu0 0.0
        %2010 = vmatpush2.msra.mxu0 0.0
        %2011 = vmatprep.subr.mxu0 0.0
        %2012 = vmatpush2.msra.mxu0 0.0
        %2013 = vmatprep.subr.mxu0 0.0
        %2014 = vmatpush2.msra.mxu0 0.0
        %2015 = vmatprep.subr.mxu0 0.0
        %2016 = vmatpush2.msra.mxu0 0.0
        %2017 = vmatprep.subr.mxu0 0.0
        %2018 = vmatpush2.msra.mxu0 0.0
        %2019 = vmatprep.subr.mxu0 0.0
        %2020 = vmatpush2.msra.mxu0 0.0
        %2021 = vmatprep.subr.mxu0 0.0
        %2022 = vmatpush2.msra.mxu0 0.0
        %2023 = vmatprep.subr.mxu0 0.0
        %2024 = vmatpush2.msra.mxu0 0.0
        %2025 = vmatprep.subr.mxu0 0.0
        %2026 = vmatpush2.msra.mxu0 0.0
        %2027 = vmatprep.subr.mxu0 0.0
        %2028 = vmatpush2.msra.mxu0 0.0
        %2029 = vmatprep.subr.mxu0 0.0
        %2030 = vmatpush2.msra.mxu0 0.0
        %2031 = vmatprep.subr.mxu0 0.0
        %2032 = vmatpush2.msra.mxu0 0.0
        %2033 = vmatprep.subr.mxu0 0.0
        %2034 = vmatpush2.msra.mxu0 0.0
        %2035 = vmatprep.subr.mxu0 0.0
        %2036 = vmatpush2.msra.mxu0 0.0
        %2037 = vmatprep.mubr.f32.mxu0 0.0
        %2038 = vmatmul.mubr.f32.gmra.mxu0 %v1968
        %v2039 = vpop.f32.mrf.mxu0
        %v2040 = vadd.f32 0.0, %v2039
        %v2041 = vpop.f32.mrf.mxu0
        %2042 = vmatprep.mubr.f32.mxu0 0.0
        %2043 = vmatmul.mubr.f32.gmra.mxu0 %v1971
        %v2044 = vpop.f32.mrf.mxu0
        %v2045 = vadd.f32 0.0, %v2044
        %v2046 = vpop.f32.mrf.mxu0
        %2047 = vdwg.mxu0
        %v2049 = vsel %vm1723, %v679, 0
        %v2052 = vsel %vm1723, %v815, 0
        %2054 = vmatprep.subr.mxu0 0.0
        %2055 = vmatpush1.msra.mxu0 0.0
        %2056 = vmatprep.subr.mxu0 0.0
        %2057 = vmatpush1.msra.mxu0 0.0
        %2058 = vmatprep.subr.mxu0 0.0
        %2059 = vmatpush1.msra.mxu0 0.0
        %2060 = vmatprep.subr.mxu0 0.0
        %2061 = vmatpush1.msra.mxu0 0.0
        %2062 = vmatprep.subr.mxu0 0.0
        %2063 = vmatpush1.msra.mxu0 0.0
        %2064 = vmatprep.subr.mxu0 0.0
        %2065 = vmatpush1.msra.mxu0 0.0
        %2066 = vmatprep.subr.mxu0 0.0
        %2067 = vmatpush1.msra.mxu0 0.0
        %2068 = vmatprep.subr.mxu0 0.0
        %2069 = vmatpush1.msra.mxu0 0.0
        %2070 = vmatprep.subr.mxu0 0.0
        %2071 = vmatpush1.msra.mxu0 0.0
        %2072 = vmatprep.subr.mxu0 0.0
        %2073 = vmatpush1.msra.mxu0 0.0
        %2074 = vmatprep.subr.mxu0 0.0
        %2075 = vmatpush1.msra.mxu0 0.0
        %2076 = vmatprep.subr.mxu0 0.0
        %2077 = vmatpush1.msra.mxu0 0.0
        %2078 = vmatprep.subr.mxu0 0.0
        %2079 = vmatpush1.msra.mxu0 0.0
        %2080 = vmatprep.subr.mxu0 0.0
        %2081 = vmatpush1.msra.mxu0 0.0
        %2082 = vmatprep.subr.mxu0 0.0
        %2083 = vmatpush1.msra.mxu0 %v1447
        %2084 = vmatprep.subr.mxu0 0.0
        %2085 = vmatpush1.msra.mxu0 %v1311
        %2086 = vmatprep.subr.mxu0 0.0
        %2087 = vmatpush2.msra.mxu0 0.0
        %2088 = vmatprep.subr.mxu0 0.0
        %2089 = vmatpush2.msra.mxu0 0.0
        %2090 = vmatprep.subr.mxu0 0.0
        %2091 = vmatpush2.msra.mxu0 0.0
        %2092 = vmatprep.subr.mxu0 0.0
        %2093 = vmatpush2.msra.mxu0 0.0
        %2094 = vmatprep.subr.mxu0 0.0
        %2095 = vmatpush2.msra.mxu0 0.0
        %2096 = vmatprep.subr.mxu0 0.0
        %2097 = vmatpush2.msra.mxu0 0.0
        %2098 = vmatprep.subr.mxu0 0.0
        %2099 = vmatpush2.msra.mxu0 0.0
        %2100 = vmatprep.subr.mxu0 0.0
        %2101 = vmatpush2.msra.mxu0 0.0
        %2102 = vmatprep.subr.mxu0 0.0
        %2103 = vmatpush2.msra.mxu0 0.0
        %2104 = vmatprep.subr.mxu0 0.0
        %2105 = vmatpush2.msra.mxu0 0.0
        %2106 = vmatprep.subr.mxu0 0.0
        %2107 = vmatpush2.msra.mxu0 0.0
        %2108 = vmatprep.subr.mxu0 0.0
        %2109 = vmatpush2.msra.mxu0 0.0
        %2110 = vmatprep.subr.mxu0 0.0
        %2111 = vmatpush2.msra.mxu0 0.0
        %2112 = vmatprep.subr.mxu0 0.0
        %2113 = vmatpush2.msra.mxu0 0.0
        %2114 = vmatprep.subr.mxu0 0.0
        %2115 = vmatpush2.msra.mxu0 0.0
        %2116 = vmatprep.subr.mxu0 0.0
        %2117 = vmatpush2.msra.mxu0 0.0
        %2118 = vmatprep.mubr.f32.mxu0 0.0
        %2119 = vmatmul.mubr.f32.gmra.mxu0 %v2049
        %v2120 = vpop.f32.mrf.mxu0
        %v2121 = vadd.f32 0.0, %v2120
        %v2122 = vpop.f32.mrf.mxu0
        %2123 = vmatprep.mubr.f32.mxu0 0.0
        %2124 = vmatmul.mubr.f32.gmra.mxu0 %v2052
        %v2125 = vpop.f32.mrf.mxu0
        %v2126 = vadd.f32 0.0, %v2125
        %v2127 = vpop.f32.mrf.mxu0
        %2128 = vdwg.mxu0
        %v2130 = vsel %vm1723, %v680, 0
        %v2133 = vsel %vm1723, %v816, 0
        %2135 = vmatprep.subr.mxu0 0.0
        %2136 = vmatpush1.msra.mxu0 0.0
        %2137 = vmatprep.subr.mxu0 0.0
        %2138 = vmatpush1.msra.mxu0 0.0
        %2139 = vmatprep.subr.mxu0 0.0
        %2140 = vmatpush1.msra.mxu0 0.0
        %2141 = vmatprep.subr.mxu0 0.0
        %2142 = vmatpush1.msra.mxu0 0.0
        %2143 = vmatprep.subr.mxu0 0.0
        %2144 = vmatpush1.msra.mxu0 0.0
        %2145 = vmatprep.subr.mxu0 0.0
        %2146 = vmatpush1.msra.mxu0 0.0
        %2147 = vmatprep.subr.mxu0 0.0
        %2148 = vmatpush1.msra.mxu0 0.0
        %2149 = vmatprep.subr.mxu0 0.0
        %2150 = vmatpush1.msra.mxu0 0.0
        %2151 = vmatprep.subr.mxu0 0.0
        %2152 = vmatpush1.msra.mxu0 0.0
        %2153 = vmatprep.subr.mxu0 0.0
        %2154 = vmatpush1.msra.mxu0 0.0
        %2155 = vmatprep.subr.mxu0 0.0
        %2156 = vmatpush1.msra.mxu0 0.0
        %2157 = vmatprep.subr.mxu0 0.0
        %2158 = vmatpush1.msra.mxu0 0.0
        %2159 = vmatprep.subr.mxu0 0.0
        %2160 = vmatpush1.msra.mxu0 0.0
        %2161 = vmatprep.subr.mxu0 0.0
        %2162 = vmatpush1.msra.mxu0 0.0
        %2163 = vmatprep.subr.mxu0 0.0
        %2164 = vmatpush1.msra.mxu0 %v1448
        %2165 = vmatprep.subr.mxu0 0.0
        %2166 = vmatpush1.msra.mxu0 %v1312
        %2167 = vmatprep.subr.mxu0 0.0
        %2168 = vmatpush2.msra.mxu0 0.0
        %2169 = vmatprep.subr.mxu0 0.0
        %2170 = vmatpush2.msra.mxu0 0.0
        %2171 = vmatprep.subr.mxu0 0.0
        %2172 = vmatpush2.msra.mxu0 0.0
        %2173 = vmatprep.subr.mxu0 0.0
        %2174 = vmatpush2.msra.mxu0 0.0
        %2175 = vmatprep.subr.mxu0 0.0
        %2176 = vmatpush2.msra.mxu0 0.0
        %2177 = vmatprep.subr.mxu0 0.0
        %2178 = vmatpush2.msra.mxu0 0.0
        %2179 = vmatprep.subr.mxu0 0.0
        %2180 = vmatpush2.msra.mxu0 0.0
        %2181 = vmatprep.subr.mxu0 0.0
        %2182 = vmatpush2.msra.mxu0 0.0
        %2183 = vmatprep.subr.mxu0 0.0
        %2184 = vmatpush2.msra.mxu0 0.0
        %2185 = vmatprep.subr.mxu0 0.0
        %2186 = vmatpush2.msra.mxu0 0.0
        %2187 = vmatprep.subr.mxu0 0.0
        %2188 = vmatpush2.msra.mxu0 0.0
        %2189 = vmatprep.subr.mxu0 0.0
        %2190 = vmatpush2.msra.mxu0 0.0
        %2191 = vmatprep.subr.mxu0 0.0
        %2192 = vmatpush2.msra.mxu0 0.0
        %2193 = vmatprep.subr.mxu0 0.0
        %2194 = vmatpush2.msra.mxu0 0.0
        %2195 = vmatprep.subr.mxu0 0.0
        %2196 = vmatpush2.msra.mxu0 0.0
        %2197 = vmatprep.subr.mxu0 0.0
        %2198 = vmatpush2.msra.mxu0 0.0
        %2199 = vmatprep.mubr.f32.mxu0 0.0
        %2200 = vmatmul.mubr.f32.gmra.mxu0 %v2130
        %v2201 = vpop.f32.mrf.mxu0
        %v2202 = vadd.f32 0.0, %v2201
        %v2203 = vpop.f32.mrf.mxu0
        %2204 = vmatprep.mubr.f32.mxu0 0.0
        %2205 = vmatmul.mubr.f32.gmra.mxu0 %v2133
        %v2206 = vpop.f32.mrf.mxu0
        %v2207 = vadd.f32 0.0, %v2206
        %v2208 = vpop.f32.mrf.mxu0
        %2209 = vdwg.mxu0
        %v2211 = vsel %vm1723, %v681, 0
        %v2214 = vsel %vm1723, %v817, 0
        %2216 = vmatprep.subr.mxu0 0.0
        %2217 = vmatpush1.msra.mxu0 0.0
        %2218 = vmatprep.subr.mxu0 0.0
        %2219 = vmatpush1.msra.mxu0 0.0
        %2220 = vmatprep.subr.mxu0 0.0
        %2221 = vmatpush1.msra.mxu0 0.0
        %2222 = vmatprep.subr.mxu0 0.0
        %2223 = vmatpush1.msra.mxu0 0.0
        %2224 = vmatprep.subr.mxu0 0.0
        %2225 = vmatpush1.msra.mxu0 0.0
        %2226 = vmatprep.subr.mxu0 0.0
        %2227 = vmatpush1.msra.mxu0 0.0
        %2228 = vmatprep.subr.mxu0 0.0
        %2229 = vmatpush1.msra.mxu0 0.0
        %2230 = vmatprep.subr.mxu0 0.0
        %2231 = vmatpush1.msra.mxu0 0.0
        %2232 = vmatprep.subr.mxu0 0.0
        %2233 = vmatpush1.msra.mxu0 0.0
        %2234 = vmatprep.subr.mxu0 0.0
        %2235 = vmatpush1.msra.mxu0 0.0
        %2236 = vmatprep.subr.mxu0 0.0
        %2237 = vmatpush1.msra.mxu0 0.0
        %2238 = vmatprep.subr.mxu0 0.0
        %2239 = vmatpush1.msra.mxu0 0.0
        %2240 = vmatprep.subr.mxu0 0.0
        %2241 = vmatpush1.msra.mxu0 0.0
        %2242 = vmatprep.subr.mxu0 0.0
        %2243 = vmatpush1.msra.mxu0 0.0
        %2244 = vmatprep.subr.mxu0 0.0
        %2245 = vmatpush1.msra.mxu0 %v1449
        %2246 = vmatprep.subr.mxu0 0.0
        %2247 = vmatpush1.msra.mxu0 %v1313
        %2248 = vmatprep.subr.mxu0 0.0
        %2249 = vmatpush2.msra.mxu0 0.0
        %2250 = vmatprep.subr.mxu0 0.0
        %2251 = vmatpush2.msra.mxu0 0.0
        %2252 = vmatprep.subr.mxu0 0.0
        %2253 = vmatpush2.msra.mxu0 0.0
        %2254 = vmatprep.subr.mxu0 0.0
        %2255 = vmatpush2.msra.mxu0 0.0
        %2256 = vmatprep.subr.mxu0 0.0
        %2257 = vmatpush2.msra.mxu0 0.0
        %2258 = vmatprep.subr.mxu0 0.0
        %2259 = vmatpush2.msra.mxu0 0.0
        %2260 = vmatprep.subr.mxu0 0.0
        %2261 = vmatpush2.msra.mxu0 0.0
        %2262 = vmatprep.subr.mxu0 0.0
        %2263 = vmatpush2.msra.mxu0 0.0
        %2264 = vmatprep.subr.mxu0 0.0
        %2265 = vmatpush2.msra.mxu0 0.0
        %2266 = vmatprep.subr.mxu0 0.0
        %2267 = vmatpush2.msra.mxu0 0.0
        %2268 = vmatprep.subr.mxu0 0.0
        %2269 = vmatpush2.msra.mxu0 0.0
        %2270 = vmatprep.subr.mxu0 0.0
        %2271 = vmatpush2.msra.mxu0 0.0
        %2272 = vmatprep.subr.mxu0 0.0
        %2273 = vmatpush2.msra.mxu0 0.0
        %2274 = vmatprep.subr.mxu0 0.0
        %2275 = vmatpush2.msra.mxu0 0.0
        %2276 = vmatprep.subr.mxu0 0.0
        %2277 = vmatpush2.msra.mxu0 0.0
        %2278 = vmatprep.subr.mxu0 0.0
        %2279 = vmatpush2.msra.mxu0 0.0
        %2280 = vmatprep.mubr.f32.mxu0 0.0
        %2281 = vmatmul.mubr.f32.gmra.mxu0 %v2211
        %v2282 = vpop.f32.mrf.mxu0
        %v2283 = vadd.f32 0.0, %v2282
        %v2284 = vpop.f32.mrf.mxu0
        %2285 = vmatprep.mubr.f32.mxu0 0.0
        %2286 = vmatmul.mubr.f32.gmra.mxu0 %v2214
        %v2287 = vpop.f32.mrf.mxu0
        %v2288 = vadd.f32 0.0, %v2287
        %v2289 = vpop.f32.mrf.mxu0
        %2290 = vdwg.mxu0
        %v2292 = vsel %vm1723, %v682, 0
        %v2295 = vsel %vm1723, %v818, 0
        %2297 = vmatprep.subr.mxu0 0.0
        %2298 = vmatpush1.msra.mxu0 0.0
        %2299 = vmatprep.subr.mxu0 0.0
        %2300 = vmatpush1.msra.mxu0 0.0
        %2301 = vmatprep.subr.mxu0 0.0
        %2302 = vmatpush1.msra.mxu0 0.0
        %2303 = vmatprep.subr.mxu0 0.0
        %2304 = vmatpush1.msra.mxu0 0.0
        %2305 = vmatprep.subr.mxu0 0.0
        %2306 = vmatpush1.msra.mxu0 0.0
        %2307 = vmatprep.subr.mxu0 0.0
        %2308 = vmatpush1.msra.mxu0 0.0
        %2309 = vmatprep.subr.mxu0 0.0
        %2310 = vmatpush1.msra.mxu0 0.0
        %2311 = vmatprep.subr.mxu0 0.0
        %2312 = vmatpush1.msra.mxu0 0.0
        %2313 = vmatprep.subr.mxu0 0.0
        %2314 = vmatpush1.msra.mxu0 0.0
        %2315 = vmatprep.subr.mxu0 0.0
        %2316 = vmatpush1.msra.mxu0 0.0
        %2317 = vmatprep.subr.mxu0 0.0
        %2318 = vmatpush1.msra.mxu0 0.0
        %2319 = vmatprep.subr.mxu0 0.0
        %2320 = vmatpush1.msra.mxu0 0.0
        %2321 = vmatprep.subr.mxu0 0.0
        %2322 = vmatpush1.msra.mxu0 0.0
        %2323 = vmatprep.subr.mxu0 0.0
        %2324 = vmatpush1.msra.mxu0 0.0
        %2325 = vmatprep.subr.mxu0 0.0
        %2326 = vmatpush1.msra.mxu0 %v1450
        %2327 = vmatprep.subr.mxu0 0.0
        %2328 = vmatpush1.msra.mxu0 %v1314
        %2329 = vmatprep.subr.mxu0 0.0
        %2330 = vmatpush2.msra.mxu0 0.0
        %2331 = vmatprep.subr.mxu0 0.0
        %2332 = vmatpush2.msra.mxu0 0.0
        %2333 = vmatprep.subr.mxu0 0.0
        %2334 = vmatpush2.msra.mxu0 0.0
        %2335 = vmatprep.subr.mxu0 0.0
        %2336 = vmatpush2.msra.mxu0 0.0
        %2337 = vmatprep.subr.mxu0 0.0
        %2338 = vmatpush2.msra.mxu0 0.0
        %2339 = vmatprep.subr.mxu0 0.0
        %2340 = vmatpush2.msra.mxu0 0.0
        %2341 = vmatprep.subr.mxu0 0.0
        %2342 = vmatpush2.msra.mxu0 0.0
        %2343 = vmatprep.subr.mxu0 0.0
        %2344 = vmatpush2.msra.mxu0 0.0
        %2345 = vmatprep.subr.mxu0 0.0
        %2346 = vmatpush2.msra.mxu0 0.0
        %2347 = vmatprep.subr.mxu0 0.0
        %2348 = vmatpush2.msra.mxu0 0.0
        %2349 = vmatprep.subr.mxu0 0.0
        %2350 = vmatpush2.msra.mxu0 0.0
        %2351 = vmatprep.subr.mxu0 0.0
        %2352 = vmatpush2.msra.mxu0 0.0
        %2353 = vmatprep.subr.mxu0 0.0
        %2354 = vmatpush2.msra.mxu0 0.0
        %2355 = vmatprep.subr.mxu0 0.0
        %2356 = vmatpush2.msra.mxu0 0.0
        %2357 = vmatprep.subr.mxu0 0.0
        %2358 = vmatpush2.msra.mxu0 0.0
        %2359 = vmatprep.subr.mxu0 0.0
        %2360 = vmatpush2.msra.mxu0 0.0
        %2361 = vmatprep.mubr.f32.mxu0 0.0
        %2362 = vmatmul.mubr.f32.gmra.mxu0 %v2292
        %v2363 = vpop.f32.mrf.mxu0
        %v2364 = vadd.f32 0.0, %v2363
        %v2365 = vpop.f32.mrf.mxu0
        %2366 = vmatprep.mubr.f32.mxu0 0.0
        %2367 = vmatmul.mubr.f32.gmra.mxu0 %v2295
        %v2368 = vpop.f32.mrf.mxu0
        %v2369 = vadd.f32 0.0, %v2368
        %v2370 = vpop.f32.mrf.mxu0
        %2371 = vdwg.mxu0
        %v2373 = vsel %vm1723, %v947, 0
        %v2376 = vsel %vm1723, %v1083, 0
        %2378 = vmatprep.subr.mxu0 0.0
        %2379 = vmatpush1.msra.mxu0 0.0
        %2380 = vmatprep.subr.mxu0 0.0
        %2381 = vmatpush1.msra.mxu0 0.0
        %2382 = vmatprep.subr.mxu0 0.0
        %2383 = vmatpush1.msra.mxu0 0.0
        %2384 = vmatprep.subr.mxu0 0.0
        %2385 = vmatpush1.msra.mxu0 0.0
        %2386 = vmatprep.subr.mxu0 0.0
        %2387 = vmatpush1.msra.mxu0 0.0
        %2388 = vmatprep.subr.mxu0 0.0
        %2389 = vmatpush1.msra.mxu0 0.0
        %2390 = vmatprep.subr.mxu0 0.0
        %2391 = vmatpush1.msra.mxu0 0.0
        %2392 = vmatprep.subr.mxu0 0.0
        %2393 = vmatpush1.msra.mxu0 0.0
        %2394 = vmatprep.subr.mxu0 0.0
        %2395 = vmatpush1.msra.mxu0 0.0
        %2396 = vmatprep.subr.mxu0 0.0
        %2397 = vmatpush1.msra.mxu0 0.0
        %2398 = vmatprep.subr.mxu0 0.0
        %2399 = vmatpush1.msra.mxu0 0.0
        %2400 = vmatprep.subr.mxu0 0.0
        %2401 = vmatpush1.msra.mxu0 0.0
        %2402 = vmatprep.subr.mxu0 0.0
        %2403 = vmatpush1.msra.mxu0 0.0
        %2404 = vmatprep.subr.mxu0 0.0
        %2405 = vmatpush1.msra.mxu0 0.0
        %2406 = vmatprep.subr.mxu0 0.0
        %2407 = vmatpush1.msra.mxu0 %v1715
        %2408 = vmatprep.subr.mxu0 0.0
        %2409 = vmatpush1.msra.mxu0 %v1579
        %2410 = vmatprep.subr.mxu0 0.0
        %2411 = vmatpush2.msra.mxu0 0.0
        %2412 = vmatprep.subr.mxu0 0.0
        %2413 = vmatpush2.msra.mxu0 0.0
        %2414 = vmatprep.subr.mxu0 0.0
        %2415 = vmatpush2.msra.mxu0 0.0
        %2416 = vmatprep.subr.mxu0 0.0
        %2417 = vmatpush2.msra.mxu0 0.0
        %2418 = vmatprep.subr.mxu0 0.0
        %2419 = vmatpush2.msra.mxu0 0.0
        %2420 = vmatprep.subr.mxu0 0.0
        %2421 = vmatpush2.msra.mxu0 0.0
        %2422 = vmatprep.subr.mxu0 0.0
        %2423 = vmatpush2.msra.mxu0 0.0
        %2424 = vmatprep.subr.mxu0 0.0
        %2425 = vmatpush2.msra.mxu0 0.0
        %2426 = vmatprep.subr.mxu0 0.0
        %2427 = vmatpush2.msra.mxu0 0.0
        %2428 = vmatprep.subr.mxu0 0.0
        %2429 = vmatpush2.msra.mxu0 0.0
        %2430 = vmatprep.subr.mxu0 0.0
        %2431 = vmatpush2.msra.mxu0 0.0
        %2432 = vmatprep.subr.mxu0 0.0
        %2433 = vmatpush2.msra.mxu0 0.0
        %2434 = vmatprep.subr.mxu0 0.0
        %2435 = vmatpush2.msra.mxu0 0.0
        %2436 = vmatprep.subr.mxu0 0.0
        %2437 = vmatpush2.msra.mxu0 0.0
        %2438 = vmatprep.subr.mxu0 0.0
        %2439 = vmatpush2.msra.mxu0 0.0
        %2440 = vmatprep.subr.mxu0 0.0
        %2441 = vmatpush2.msra.mxu0 0.0
        %2442 = vmatprep.mubr.f32.mxu0 0.0
        %2443 = vmatmul.mubr.f32.gmra.mxu0 %v2373
        %v2444 = vpop.f32.mrf.mxu0
        %v2445 = vadd.f32 0.0, %v2444
        %v2446 = vpop.f32.mrf.mxu0
        %2447 = vmatprep.mubr.f32.mxu0 0.0
        %2448 = vmatmul.mubr.f32.gmra.mxu0 %v2376
        %v2449 = vpop.f32.mrf.mxu0
        %v2450 = vadd.f32 0.0, %v2449
        %v2451 = vpop.f32.mrf.mxu0
        %2452 = vdwg.mxu0
        %v2454 = vsel %vm1723, %v948, 0
        %v2457 = vsel %vm1723, %v1084, 0
        %2459 = vmatprep.subr.mxu0 0.0
        %2460 = vmatpush1.msra.mxu0 0.0
        %2461 = vmatprep.subr.mxu0 0.0
        %2462 = vmatpush1.msra.mxu0 0.0
        %2463 = vmatprep.subr.mxu0 0.0
        %2464 = vmatpush1.msra.mxu0 0.0
        %2465 = vmatprep.subr.mxu0 0.0
        %2466 = vmatpush1.msra.mxu0 0.0
        %2467 = vmatprep.subr.mxu0 0.0
        %2468 = vmatpush1.msra.mxu0 0.0
        %2469 = vmatprep.subr.mxu0 0.0
        %2470 = vmatpush1.msra.mxu0 0.0
        %2471 = vmatprep.subr.mxu0 0.0
        %2472 = vmatpush1.msra.mxu0 0.0
        %2473 = vmatprep.subr.mxu0 0.0
        %2474 = vmatpush1.msra.mxu0 0.0
        %2475 = vmatprep.subr.mxu0 0.0
        %2476 = vmatpush1.msra.mxu0 0.0
        %2477 = vmatprep.subr.mxu0 0.0
        %2478 = vmatpush1.msra.mxu0 0.0
        %2479 = vmatprep.subr.mxu0 0.0
        %2480 = vmatpush1.msra.mxu0 0.0
        %2481 = vmatprep.subr.mxu0 0.0
        %2482 = vmatpush1.msra.mxu0 0.0
        %2483 = vmatprep.subr.mxu0 0.0
        %2484 = vmatpush1.msra.mxu0 0.0
        %2485 = vmatprep.subr.mxu0 0.0
        %2486 = vmatpush1.msra.mxu0 0.0
        %2487 = vmatprep.subr.mxu0 0.0
        %2488 = vmatpush1.msra.mxu0 %v1716
        %2489 = vmatprep.subr.mxu0 0.0
        %2490 = vmatpush1.msra.mxu0 %v1580
        %2491 = vmatprep.subr.mxu0 0.0
        %2492 = vmatpush2.msra.mxu0 0.0
        %2493 = vmatprep.subr.mxu0 0.0
        %2494 = vmatpush2.msra.mxu0 0.0
        %2495 = vmatprep.subr.mxu0 0.0
        %2496 = vmatpush2.msra.mxu0 0.0
        %2497 = vmatprep.subr.mxu0 0.0
        %2498 = vmatpush2.msra.mxu0 0.0
        %2499 = vmatprep.subr.mxu0 0.0
        %2500 = vmatpush2.msra.mxu0 0.0
        %2501 = vmatprep.subr.mxu0 0.0
        %2502 = vmatpush2.msra.mxu0 0.0
        %2503 = vmatprep.subr.mxu0 0.0
        %2504 = vmatpush2.msra.mxu0 0.0
        %2505 = vmatprep.subr.mxu0 0.0
        %2506 = vmatpush2.msra.mxu0 0.0
        %2507 = vmatprep.subr.mxu0 0.0
        %2508 = vmatpush2.msra.mxu0 0.0
        %2509 = vmatprep.subr.mxu0 0.0
        %2510 = vmatpush2.msra.mxu0 0.0
        %2511 = vmatprep.subr.mxu0 0.0
        %2512 = vmatpush2.msra.mxu0 0.0
        %2513 = vmatprep.subr.mxu0 0.0
        %2514 = vmatpush2.msra.mxu0 0.0
        %2515 = vmatprep.subr.mxu0 0.0
        %2516 = vmatpush2.msra.mxu0 0.0
        %2517 = vmatprep.subr.mxu0 0.0
        %2518 = vmatpush2.msra.mxu0 0.0
        %2519 = vmatprep.subr.mxu0 0.0
        %2520 = vmatpush2.msra.mxu0 0.0
        %2521 = vmatprep.subr.mxu0 0.0
        %2522 = vmatpush2.msra.mxu0 0.0
        %2523 = vmatprep.mubr.f32.mxu0 0.0
        %2524 = vmatmul.mubr.f32.gmra.mxu0 %v2454
        %v2525 = vpop.f32.mrf.mxu0
        %v2526 = vadd.f32 0.0, %v2525
        %v2527 = vpop.f32.mrf.mxu0
        %2528 = vmatprep.mubr.f32.mxu0 0.0
        %2529 = vmatmul.mubr.f32.gmra.mxu0 %v2457
        %v2530 = vpop.f32.mrf.mxu0
        %v2531 = vadd.f32 0.0, %v2530
        %v2532 = vpop.f32.mrf.mxu0
        %2533 = vdwg.mxu0
        %v2535 = vsel %vm1723, %v949, 0
        %v2538 = vsel %vm1723, %v1085, 0
        %2540 = vmatprep.subr.mxu0 0.0
        %2541 = vmatpush1.msra.mxu0 0.0
        %2542 = vmatprep.subr.mxu0 0.0
        %2543 = vmatpush1.msra.mxu0 0.0
        %2544 = vmatprep.subr.mxu0 0.0
        %2545 = vmatpush1.msra.mxu0 0.0
        %2546 = vmatprep.subr.mxu0 0.0
        %2547 = vmatpush1.msra.mxu0 0.0
        %2548 = vmatprep.subr.mxu0 0.0
        %2549 = vmatpush1.msra.mxu0 0.0
        %2550 = vmatprep.subr.mxu0 0.0
        %2551 = vmatpush1.msra.mxu0 0.0
        %2552 = vmatprep.subr.mxu0 0.0
        %2553 = vmatpush1.msra.mxu0 0.0
        %2554 = vmatprep.subr.mxu0 0.0
        %2555 = vmatpush1.msra.mxu0 0.0
        %2556 = vmatprep.subr.mxu0 0.0
        %2557 = vmatpush1.msra.mxu0 0.0
        %2558 = vmatprep.subr.mxu0 0.0
        %2559 = vmatpush1.msra.mxu0 0.0
        %2560 = vmatprep.subr.mxu0 0.0
        %2561 = vmatpush1.msra.mxu0 0.0
        %2562 = vmatprep.subr.mxu0 0.0
        %2563 = vmatpush1.msra.mxu0 0.0
        %2564 = vmatprep.subr.mxu0 0.0
        %2565 = vmatpush1.msra.mxu0 0.0
        %2566 = vmatprep.subr.mxu0 0.0
        %2567 = vmatpush1.msra.mxu0 0.0
        %2568 = vmatprep.subr.mxu0 0.0
        %2569 = vmatpush1.msra.mxu0 %v1717
        %2570 = vmatprep.subr.mxu0 0.0
        %2571 = vmatpush1.msra.mxu0 %v1581
        %2572 = vmatprep.subr.mxu0 0.0
        %2573 = vmatpush2.msra.mxu0 0.0
        %2574 = vmatprep.subr.mxu0 0.0
        %2575 = vmatpush2.msra.mxu0 0.0
        %2576 = vmatprep.subr.mxu0 0.0
        %2577 = vmatpush2.msra.mxu0 0.0
        %2578 = vmatprep.subr.mxu0 0.0
        %2579 = vmatpush2.msra.mxu0 0.0
        %2580 = vmatprep.subr.mxu0 0.0
        %2581 = vmatpush2.msra.mxu0 0.0
        %2582 = vmatprep.subr.mxu0 0.0
        %2583 = vmatpush2.msra.mxu0 0.0
        %2584 = vmatprep.subr.mxu0 0.0
        %2585 = vmatpush2.msra.mxu0 0.0
        %2586 = vmatprep.subr.mxu0 0.0
        %2587 = vmatpush2.msra.mxu0 0.0
        %2588 = vmatprep.subr.mxu0 0.0
        %2589 = vmatpush2.msra.mxu0 0.0
        %2590 = vmatprep.subr.mxu0 0.0
        %2591 = vmatpush2.msra.mxu0 0.0
        %2592 = vmatprep.subr.mxu0 0.0
        %2593 = vmatpush2.msra.mxu0 0.0
        %2594 = vmatprep.subr.mxu0 0.0
        %2595 = vmatpush2.msra.mxu0 0.0
        %2596 = vmatprep.subr.mxu0 0.0
        %2597 = vmatpush2.msra.mxu0 0.0
        %2598 = vmatprep.subr.mxu0 0.0
        %2599 = vmatpush2.msra.mxu0 0.0
        %2600 = vmatprep.subr.mxu0 0.0
        %2601 = vmatpush2.msra.mxu0 0.0
        %2602 = vmatprep.subr.mxu0 0.0
        %2603 = vmatpush2.msra.mxu0 0.0
        %2604 = vmatprep.mubr.f32.mxu0 0.0
        %2605 = vmatmul.mubr.f32.gmra.mxu0 %v2535
        %v2606 = vpop.f32.mrf.mxu0
        %v2607 = vadd.f32 0.0, %v2606
        %v2608 = vpop.f32.mrf.mxu0
        %2609 = vmatprep.mubr.f32.mxu0 0.0
        %2610 = vmatmul.mubr.f32.gmra.mxu0 %v2538
        %v2611 = vpop.f32.mrf.mxu0
        %v2612 = vadd.f32 0.0, %v2611
        %v2613 = vpop.f32.mrf.mxu0
        %2614 = vdwg.mxu0
        %v2616 = vsel %vm1723, %v950, 0
        %v2619 = vsel %vm1723, %v1086, 0
        %2621 = vmatprep.subr.mxu0 0.0
        %2622 = vmatpush1.msra.mxu0 0.0
        %2623 = vmatprep.subr.mxu0 0.0
        %2624 = vmatpush1.msra.mxu0 0.0
        %2625 = vmatprep.subr.mxu0 0.0
        %2626 = vmatpush1.msra.mxu0 0.0
        %2627 = vmatprep.subr.mxu0 0.0
        %2628 = vmatpush1.msra.mxu0 0.0
        %2629 = vmatprep.subr.mxu0 0.0
        %2630 = vmatpush1.msra.mxu0 0.0
        %2631 = vmatprep.subr.mxu0 0.0
        %2632 = vmatpush1.msra.mxu0 0.0
        %2633 = vmatprep.subr.mxu0 0.0
        %2634 = vmatpush1.msra.mxu0 0.0
        %2635 = vmatprep.subr.mxu0 0.0
        %2636 = vmatpush1.msra.mxu0 0.0
        %2637 = vmatprep.subr.mxu0 0.0
        %2638 = vmatpush1.msra.mxu0 0.0
        %2639 = vmatprep.subr.mxu0 0.0
        %2640 = vmatpush1.msra.mxu0 0.0
        %2641 = vmatprep.subr.mxu0 0.0
        %2642 = vmatpush1.msra.mxu0 0.0
        %2643 = vmatprep.subr.mxu0 0.0
        %2644 = vmatpush1.msra.mxu0 0.0
        %2645 = vmatprep.subr.mxu0 0.0
        %2646 = vmatpush1.msra.mxu0 0.0
        %2647 = vmatprep.subr.mxu0 0.0
        %2648 = vmatpush1.msra.mxu0 0.0
        %2649 = vmatprep.subr.mxu0 0.0
        %2650 = vmatpush1.msra.mxu0 %v1718
        %2651 = vmatprep.subr.mxu0 0.0
        %2652 = vmatpush1.msra.mxu0 %v1582
        %2653 = vmatprep.subr.mxu0 0.0
        %2654 = vmatpush2.msra.mxu0 0.0
        %2655 = vmatprep.subr.mxu0 0.0
        %2656 = vmatpush2.msra.mxu0 0.0
        %2657 = vmatprep.subr.mxu0 0.0
        %2658 = vmatpush2.msra.mxu0 0.0
        %2659 = vmatprep.subr.mxu0 0.0
        %2660 = vmatpush2.msra.mxu0 0.0
        %2661 = vmatprep.subr.mxu0 0.0
        %2662 = vmatpush2.msra.mxu0 0.0
        %2663 = vmatprep.subr.mxu0 0.0
        %2664 = vmatpush2.msra.mxu0 0.0
        %2665 = vmatprep.subr.mxu0 0.0
        %2666 = vmatpush2.msra.mxu0 0.0
        %2667 = vmatprep.subr.mxu0 0.0
        %2668 = vmatpush2.msra.mxu0 0.0
        %2669 = vmatprep.subr.mxu0 0.0
        %2670 = vmatpush2.msra.mxu0 0.0
        %2671 = vmatprep.subr.mxu0 0.0
        %2672 = vmatpush2.msra.mxu0 0.0
        %2673 = vmatprep.subr.mxu0 0.0
        %2674 = vmatpush2.msra.mxu0 0.0
        %2675 = vmatprep.subr.mxu0 0.0
        %2676 = vmatpush2.msra.mxu0 0.0
        %2677 = vmatprep.subr.mxu0 0.0
        %2678 = vmatpush2.msra.mxu0 0.0
        %2679 = vmatprep.subr.mxu0 0.0
        %2680 = vmatpush2.msra.mxu0 0.0
        %2681 = vmatprep.subr.mxu0 0.0
        %2682 = vmatpush2.msra.mxu0 0.0
        %2683 = vmatprep.subr.mxu0 0.0
        %2684 = vmatpush2.msra.mxu0 0.0
        %2685 = vmatprep.mubr.f32.mxu0 0.0
        %2686 = vmatmul.mubr.f32.gmra.mxu0 %v2616
        %v2687 = vpop.f32.mrf.mxu0
        %v2688 = vadd.f32 0.0, %v2687
        %v2689 = vpop.f32.mrf.mxu0
        %2690 = vmatprep.mubr.f32.mxu0 0.0
        %2691 = vmatmul.mubr.f32.gmra.mxu0 %v2619
        %v2692 = vpop.f32.mrf.mxu0
        %v2693 = vadd.f32 0.0, %v2692
        %v2694 = vpop.f32.mrf.mxu0
        %2695 = vdwg.mxu0
        %v2697 = vsel %vm1723, %v951, 0
        %v2700 = vsel %vm1723, %v1087, 0
        %2702 = vmatprep.subr.mxu0 0.0
        %2703 = vmatpush1.msra.mxu0 0.0
        %2704 = vmatprep.subr.mxu0 0.0
        %2705 = vmatpush1.msra.mxu0 0.0
        %2706 = vmatprep.subr.mxu0 0.0
        %2707 = vmatpush1.msra.mxu0 0.0
        %2708 = vmatprep.subr.mxu0 0.0
        %2709 = vmatpush1.msra.mxu0 0.0
        %2710 = vmatprep.subr.mxu0 0.0
        %2711 = vmatpush1.msra.mxu0 0.0
        %2712 = vmatprep.subr.mxu0 0.0
        %2713 = vmatpush1.msra.mxu0 0.0
        %2714 = vmatprep.subr.mxu0 0.0
        %2715 = vmatpush1.msra.mxu0 0.0
        %2716 = vmatprep.subr.mxu0 0.0
        %2717 = vmatpush1.msra.mxu0 0.0
        %2718 = vmatprep.subr.mxu0 0.0
        %2719 = vmatpush1.msra.mxu0 0.0
        %2720 = vmatprep.subr.mxu0 0.0
        %2721 = vmatpush1.msra.mxu0 0.0
        %2722 = vmatprep.subr.mxu0 0.0
        %2723 = vmatpush1.msra.mxu0 0.0
        %2724 = vmatprep.subr.mxu0 0.0
        %2725 = vmatpush1.msra.mxu0 0.0
        %2726 = vmatprep.subr.mxu0 0.0
        %2727 = vmatpush1.msra.mxu0 0.0
        %2728 = vmatprep.subr.mxu0 0.0
        %2729 = vmatpush1.msra.mxu0 0.0
        %2730 = vmatprep.subr.mxu0 0.0
        %2731 = vmatpush1.msra.mxu0 %v1719
        %2732 = vmatprep.subr.mxu0 0.0
        %2733 = vmatpush1.msra.mxu0 %v1583
        %2734 = vmatprep.subr.mxu0 0.0
        %2735 = vmatpush2.msra.mxu0 0.0
        %2736 = vmatprep.subr.mxu0 0.0
        %2737 = vmatpush2.msra.mxu0 0.0
        %2738 = vmatprep.subr.mxu0 0.0
        %2739 = vmatpush2.msra.mxu0 0.0
        %2740 = vmatprep.subr.mxu0 0.0
        %2741 = vmatpush2.msra.mxu0 0.0
        %2742 = vmatprep.subr.mxu0 0.0
        %2743 = vmatpush2.msra.mxu0 0.0
        %2744 = vmatprep.subr.mxu0 0.0
        %2745 = vmatpush2.msra.mxu0 0.0
        %2746 = vmatprep.subr.mxu0 0.0
        %2747 = vmatpush2.msra.mxu0 0.0
        %2748 = vmatprep.subr.mxu0 0.0
        %2749 = vmatpush2.msra.mxu0 0.0
        %2750 = vmatprep.subr.mxu0 0.0
        %2751 = vmatpush2.msra.mxu0 0.0
        %2752 = vmatprep.subr.mxu0 0.0
        %2753 = vmatpush2.msra.mxu0 0.0
        %2754 = vmatprep.subr.mxu0 0.0
        %2755 = vmatpush2.msra.mxu0 0.0
        %2756 = vmatprep.subr.mxu0 0.0
        %2757 = vmatpush2.msra.mxu0 0.0
        %2758 = vmatprep.subr.mxu0 0.0
        %2759 = vmatpush2.msra.mxu0 0.0
        %2760 = vmatprep.subr.mxu0 0.0
        %2761 = vmatpush2.msra.mxu0 0.0
        %2762 = vmatprep.subr.mxu0 0.0
        %2763 = vmatpush2.msra.mxu0 0.0
        %2764 = vmatprep.subr.mxu0 0.0
        %2765 = vmatpush2.msra.mxu0 0.0
        %2766 = vmatprep.mubr.f32.mxu0 0.0
        %2767 = vmatmul.mubr.f32.gmra.mxu0 %v2697
        %v2768 = vpop.f32.mrf.mxu0
        %v2769 = vadd.f32 0.0, %v2768
        %v2770 = vpop.f32.mrf.mxu0
        %2771 = vmatprep.mubr.f32.mxu0 0.0
        %2772 = vmatmul.mubr.f32.gmra.mxu0 %v2700
        %v2773 = vpop.f32.mrf.mxu0
        %v2774 = vadd.f32 0.0, %v2773
        %v2775 = vpop.f32.mrf.mxu0
        %2776 = vdwg.mxu0
        %v2778 = vsel %vm1723, %v952, 0
        %v2781 = vsel %vm1723, %v1088, 0
        %2783 = vmatprep.subr.mxu0 0.0
        %2784 = vmatpush1.msra.mxu0 0.0
        %2785 = vmatprep.subr.mxu0 0.0
        %2786 = vmatpush1.msra.mxu0 0.0
        %2787 = vmatprep.subr.mxu0 0.0
        %2788 = vmatpush1.msra.mxu0 0.0
        %2789 = vmatprep.subr.mxu0 0.0
        %2790 = vmatpush1.msra.mxu0 0.0
        %2791 = vmatprep.subr.mxu0 0.0
        %2792 = vmatpush1.msra.mxu0 0.0
        %2793 = vmatprep.subr.mxu0 0.0
        %2794 = vmatpush1.msra.mxu0 0.0
        %2795 = vmatprep.subr.mxu0 0.0
        %2796 = vmatpush1.msra.mxu0 0.0
        %2797 = vmatprep.subr.mxu0 0.0
        %2798 = vmatpush1.msra.mxu0 0.0
        %2799 = vmatprep.subr.mxu0 0.0
        %2800 = vmatpush1.msra.mxu0 0.0
        %2801 = vmatprep.subr.mxu0 0.0
        %2802 = vmatpush1.msra.mxu0 0.0
        %2803 = vmatprep.subr.mxu0 0.0
        %2804 = vmatpush1.msra.mxu0 0.0
        %2805 = vmatprep.subr.mxu0 0.0
        %2806 = vmatpush1.msra.mxu0 0.0
        %2807 = vmatprep.subr.mxu0 0.0
        %2808 = vmatpush1.msra.mxu0 0.0
        %2809 = vmatprep.subr.mxu0 0.0
        %2810 = vmatpush1.msra.mxu0 0.0
        %2811 = vmatprep.subr.mxu0 0.0
        %2812 = vmatpush1.msra.mxu0 %v1720
        %2813 = vmatprep.subr.mxu0 0.0
        %2814 = vmatpush1.msra.mxu0 %v1584
        %2815 = vmatprep.subr.mxu0 0.0
        %2816 = vmatpush2.msra.mxu0 0.0
        %2817 = vmatprep.subr.mxu0 0.0
        %2818 = vmatpush2.msra.mxu0 0.0
        %2819 = vmatprep.subr.mxu0 0.0
        %2820 = vmatpush2.msra.mxu0 0.0
        %2821 = vmatprep.subr.mxu0 0.0
        %2822 = vmatpush2.msra.mxu0 0.0
        %2823 = vmatprep.subr.mxu0 0.0
        %2824 = vmatpush2.msra.mxu0 0.0
        %2825 = vmatprep.subr.mxu0 0.0
        %2826 = vmatpush2.msra.mxu0 0.0
        %2827 = vmatprep.subr.mxu0 0.0
        %2828 = vmatpush2.msra.mxu0 0.0
        %2829 = vmatprep.subr.mxu0 0.0
        %2830 = vmatpush2.msra.mxu0 0.0
        %2831 = vmatprep.subr.mxu0 0.0
        %2832 = vmatpush2.msra.mxu0 0.0
        %2833 = vmatprep.subr.mxu0 0.0
        %2834 = vmatpush2.msra.mxu0 0.0
        %2835 = vmatprep.subr.mxu0 0.0
        %2836 = vmatpush2.msra.mxu0 0.0
        %2837 = vmatprep.subr.mxu0 0.0
        %2838 = vmatpush2.msra.mxu0 0.0
        %2839 = vmatprep.subr.mxu0 0.0
        %2840 = vmatpush2.msra.mxu0 0.0
        %2841 = vmatprep.subr.mxu0 0.0
        %2842 = vmatpush2.msra.mxu0 0.0
        %2843 = vmatprep.subr.mxu0 0.0
        %2844 = vmatpush2.msra.mxu0 0.0
        %2845 = vmatprep.subr.mxu0 0.0
        %2846 = vmatpush2.msra.mxu0 0.0
        %2847 = vmatprep.mubr.f32.mxu0 0.0
        %2848 = vmatmul.mubr.f32.gmra.mxu0 %v2778
        %v2849 = vpop.f32.mrf.mxu0
        %v2850 = vadd.f32 0.0, %v2849
        %v2851 = vpop.f32.mrf.mxu0
        %2852 = vmatprep.mubr.f32.mxu0 0.0
        %2853 = vmatmul.mubr.f32.gmra.mxu0 %v2781
        %v2854 = vpop.f32.mrf.mxu0
        %v2855 = vadd.f32 0.0, %v2854
        %v2856 = vpop.f32.mrf.mxu0
        %2857 = vdwg.mxu0
        %v2859 = vsel %vm1723, %v953, 0
        %v2862 = vsel %vm1723, %v1089, 0
        %2864 = vmatprep.subr.mxu0 0.0
        %2865 = vmatpush1.msra.mxu0 0.0
        %2866 = vmatprep.subr.mxu0 0.0
        %2867 = vmatpush1.msra.mxu0 0.0
        %2868 = vmatprep.subr.mxu0 0.0
        %2869 = vmatpush1.msra.mxu0 0.0
        %2870 = vmatprep.subr.mxu0 0.0
        %2871 = vmatpush1.msra.mxu0 0.0
        %2872 = vmatprep.subr.mxu0 0.0
        %2873 = vmatpush1.msra.mxu0 0.0
        %2874 = vmatprep.subr.mxu0 0.0
        %2875 = vmatpush1.msra.mxu0 0.0
        %2876 = vmatprep.subr.mxu0 0.0
        %2877 = vmatpush1.msra.mxu0 0.0
        %2878 = vmatprep.subr.mxu0 0.0
        %2879 = vmatpush1.msra.mxu0 0.0
        %2880 = vmatprep.subr.mxu0 0.0
        %2881 = vmatpush1.msra.mxu0 0.0
        %2882 = vmatprep.subr.mxu0 0.0
        %2883 = vmatpush1.msra.mxu0 0.0
        %2884 = vmatprep.subr.mxu0 0.0
        %2885 = vmatpush1.msra.mxu0 0.0
        %2886 = vmatprep.subr.mxu0 0.0
        %2887 = vmatpush1.msra.mxu0 0.0
        %2888 = vmatprep.subr.mxu0 0.0
        %2889 = vmatpush1.msra.mxu0 0.0
        %2890 = vmatprep.subr.mxu0 0.0
        %2891 = vmatpush1.msra.mxu0 0.0
        %2892 = vmatprep.subr.mxu0 0.0
        %2893 = vmatpush1.msra.mxu0 %v1721
        %2894 = vmatprep.subr.mxu0 0.0
        %2895 = vmatpush1.msra.mxu0 %v1585
        %2896 = vmatprep.subr.mxu0 0.0
        %2897 = vmatpush2.msra.mxu0 0.0
        %2898 = vmatprep.subr.mxu0 0.0
        %2899 = vmatpush2.msra.mxu0 0.0
        %2900 = vmatprep.subr.mxu0 0.0
        %2901 = vmatpush2.msra.mxu0 0.0
        %2902 = vmatprep.subr.mxu0 0.0
        %2903 = vmatpush2.msra.mxu0 0.0
        %2904 = vmatprep.subr.mxu0 0.0
        %2905 = vmatpush2.msra.mxu0 0.0
        %2906 = vmatprep.subr.mxu0 0.0
        %2907 = vmatpush2.msra.mxu0 0.0
        %2908 = vmatprep.subr.mxu0 0.0
        %2909 = vmatpush2.msra.mxu0 0.0
        %2910 = vmatprep.subr.mxu0 0.0
        %2911 = vmatpush2.msra.mxu0 0.0
        %2912 = vmatprep.subr.mxu0 0.0
        %2913 = vmatpush2.msra.mxu0 0.0
        %2914 = vmatprep.subr.mxu0 0.0
        %2915 = vmatpush2.msra.mxu0 0.0
        %2916 = vmatprep.subr.mxu0 0.0
        %2917 = vmatpush2.msra.mxu0 0.0
        %2918 = vmatprep.subr.mxu0 0.0
        %2919 = vmatpush2.msra.mxu0 0.0
        %2920 = vmatprep.subr.mxu0 0.0
        %2921 = vmatpush2.msra.mxu0 0.0
        %2922 = vmatprep.subr.mxu0 0.0
        %2923 = vmatpush2.msra.mxu0 0.0
        %2924 = vmatprep.subr.mxu0 0.0
        %2925 = vmatpush2.msra.mxu0 0.0
        %2926 = vmatprep.subr.mxu0 0.0
        %2927 = vmatpush2.msra.mxu0 0.0
        %2928 = vmatprep.mubr.f32.mxu0 0.0
        %2929 = vmatmul.mubr.f32.gmra.mxu0 %v2859
        %v2930 = vpop.f32.mrf.mxu0
        %v2931 = vadd.f32 0.0, %v2930
        %v2932 = vpop.f32.mrf.mxu0
        %2933 = vmatprep.mubr.f32.mxu0 0.0
        %2934 = vmatmul.mubr.f32.gmra.mxu0 %v2862
        %v2935 = vpop.f32.mrf.mxu0
        %v2936 = vadd.f32 0.0, %v2935
        %v2937 = vpop.f32.mrf.mxu0
        %2938 = vdwg.mxu0
        %v2940 = vsel %vm1723, %v954, 0
        %v2943 = vsel %vm1723, %v1090, 0
        %2945 = vmatprep.subr.mxu0 0.0
        %2946 = vmatpush1.msra.mxu0 0.0
        %2947 = vmatprep.subr.mxu0 0.0
        %2948 = vmatpush1.msra.mxu0 0.0
        %2949 = vmatprep.subr.mxu0 0.0
        %2950 = vmatpush1.msra.mxu0 0.0
        %2951 = vmatprep.subr.mxu0 0.0
        %2952 = vmatpush1.msra.mxu0 0.0
        %2953 = vmatprep.subr.mxu0 0.0
        %2954 = vmatpush1.msra.mxu0 0.0
        %2955 = vmatprep.subr.mxu0 0.0
        %2956 = vmatpush1.msra.mxu0 0.0
        %2957 = vmatprep.subr.mxu0 0.0
        %2958 = vmatpush1.msra.mxu0 0.0
        %2959 = vmatprep.subr.mxu0 0.0
        %2960 = vmatpush1.msra.mxu0 0.0
        %2961 = vmatprep.subr.mxu0 0.0
        %2962 = vmatpush1.msra.mxu0 0.0
        %2963 = vmatprep.subr.mxu0 0.0
        %2964 = vmatpush1.msra.mxu0 0.0
        %2965 = vmatprep.subr.mxu0 0.0
        %2966 = vmatpush1.msra.mxu0 0.0
        %2967 = vmatprep.subr.mxu0 0.0
        %2968 = vmatpush1.msra.mxu0 0.0
        %2969 = vmatprep.subr.mxu0 0.0
        %2970 = vmatpush1.msra.mxu0 0.0
        %2971 = vmatprep.subr.mxu0 0.0
        %2972 = vmatpush1.msra.mxu0 0.0
        %2973 = vmatprep.subr.mxu0 0.0
        %2974 = vmatpush1.msra.mxu0 %v1722
        %2975 = vmatprep.subr.mxu0 0.0
        %2976 = vmatpush1.msra.mxu0 %v1586
        %2977 = vmatprep.subr.mxu0 0.0
        %2978 = vmatpush2.msra.mxu0 0.0
        %2979 = vmatprep.subr.mxu0 0.0
        %2980 = vmatpush2.msra.mxu0 0.0
        %2981 = vmatprep.subr.mxu0 0.0
        %2982 = vmatpush2.msra.mxu0 0.0
        %2983 = vmatprep.subr.mxu0 0.0
        %2984 = vmatpush2.msra.mxu0 0.0
        %2985 = vmatprep.subr.mxu0 0.0
        %2986 = vmatpush2.msra.mxu0 0.0
        %2987 = vmatprep.subr.mxu0 0.0
        %2988 = vmatpush2.msra.mxu0 0.0
        %2989 = vmatprep.subr.mxu0 0.0
        %2990 = vmatpush2.msra.mxu0 0.0
        %2991 = vmatprep.subr.mxu0 0.0
        %2992 = vmatpush2.msra.mxu0 0.0
        %2993 = vmatprep.subr.mxu0 0.0
        %2994 = vmatpush2.msra.mxu0 0.0
        %2995 = vmatprep.subr.mxu0 0.0
        %2996 = vmatpush2.msra.mxu0 0.0
        %2997 = vmatprep.subr.mxu0 0.0
        %2998 = vmatpush2.msra.mxu0 0.0
        %2999 = vmatprep.subr.mxu0 0.0
        %3000 = vmatpush2.msra.mxu0 0.0
        %3001 = vmatprep.subr.mxu0 0.0
        %3002 = vmatpush2.msra.mxu0 0.0
        %3003 = vmatprep.subr.mxu0 0.0
        %3004 = vmatpush2.msra.mxu0 0.0
        %3005 = vmatprep.subr.mxu0 0.0
        %3006 = vmatpush2.msra.mxu0 0.0
        %3007 = vmatprep.subr.mxu0 0.0
        %3008 = vmatpush2.msra.mxu0 0.0
        %3009 = vmatprep.mubr.f32.mxu0 0.0
        %3010 = vmatmul.mubr.f32.gmra.mxu0 %v2940
        %v3011 = vpop.f32.mrf.mxu0
        %v3012 = vadd.f32 0.0, %v3011
        %v3013 = vpop.f32.mrf.mxu0
        %3014 = vmatprep.mubr.f32.mxu0 0.0
        %3015 = vmatmul.mubr.f32.gmra.mxu0 %v2943
        %v3016 = vpop.f32.mrf.mxu0
        %v3017 = vadd.f32 0.0, %v3016
        %v3018 = vpop.f32.mrf.mxu0
        %3019 = vdwg.mxu0
        %v3020 = vcombine.low %v1797, %v1959
        %v3021 = vcombine.high %v1797, %v1959
        %v3023 = vunpack.c.l.s4 1983009808
        %v3024 = vunpack.c.0.s8 %v3023
        %v3025 = vlaneseq
        %v3026 = vshrl.u32 %v3025, 7
        %v3027 = vsub.s32 %v3024, %v3026
        %v3028 = vrot.slane %v3020, %v3027
        %v3030 = vunpack.c.l.s4 1983009808
        %v3031 = vunpack.c.0.s8 %v3030
        %v3032 = vlaneseq
        %v3033 = vshrl.u32 %v3032, 7
        %v3034 = vsub.s32 %v3031, %v3033
        %v3035 = vrot.slane %v3021, %v3034
        %v3036 = vcombine.low %v1878, %v2040
        %v3037 = vcombine.high %v1878, %v2040
        %v3039 = vunpack.c.l.s4 1983009808
        %v3040 = vunpack.c.0.s8 %v3039
        %v3041 = vlaneseq
        %v3042 = vshrl.u32 %v3041, 7
        %v3043 = vsub.s32 %v3040, %v3042
        %v3044 = vrot.slane %v3036, %v3043
        %v3046 = vunpack.c.l.s4 1983009808
        %v3047 = vunpack.c.0.s8 %v3046
        %v3048 = vlaneseq
        %v3049 = vshrl.u32 %v3048, 7
        %v3050 = vsub.s32 %v3047, %v3049
        %v3051 = vrot.slane %v3037, %v3050
        %v3052 = vcombine.low %v2121, %v2283
        %v3053 = vcombine.high %v2121, %v2283
        %v3055 = vunpack.c.l.s4 1983009808
        %v3056 = vunpack.c.0.s8 %v3055
        %v3057 = vlaneseq
        %v3058 = vshrl.u32 %v3057, 7
        %v3059 = vsub.s32 %v3056, %v3058
        %v3060 = vrot.slane %v3052, %v3059
        %v3062 = vunpack.c.l.s4 1983009808
        %v3063 = vunpack.c.0.s8 %v3062
        %v3064 = vlaneseq
        %v3065 = vshrl.u32 %v3064, 7
        %v3066 = vsub.s32 %v3063, %v3065
        %v3067 = vrot.slane %v3053, %v3066
        %v3068 = vcombine.low %v2202, %v2364
        %v3069 = vcombine.high %v2202, %v2364
        %v3071 = vunpack.c.l.s4 1983009808
        %v3072 = vunpack.c.0.s8 %v3071
        %v3073 = vlaneseq
        %v3074 = vshrl.u32 %v3073, 7
        %v3075 = vsub.s32 %v3072, %v3074
        %v3076 = vrot.slane %v3068, %v3075
        %v3078 = vunpack.c.l.s4 1983009808
        %v3079 = vunpack.c.0.s8 %v3078
        %v3080 = vlaneseq
        %v3081 = vshrl.u32 %v3080, 7
        %v3082 = vsub.s32 %v3079, %v3081
        %v3083 = vrot.slane %v3069, %v3082
        %v3084 = vcombine.low %v3028, %v3044
        %v3085 = vcombine.high %v3028, %v3044
        %v3087 = vunpack.c.l.s4 1934713408
        %v3088 = vunpack.c.0.s8 %v3087
        %v3089 = vlaneseq
        %v3090 = vshrl.u32 %v3089, 7
        %v3091 = vsub.s32 %v3088, %v3090
        %v3092 = vrot.slane %v3084, %v3091
        %v3094 = vunpack.c.l.s4 1934713408
        %v3095 = vunpack.c.0.s8 %v3094
        %v3096 = vlaneseq
        %v3097 = vshrl.u32 %v3096, 7
        %v3098 = vsub.s32 %v3095, %v3097
        %v3099 = vrot.slane %v3085, %v3098
        %v3100 = vcombine.low %v3035, %v3051
        %v3101 = vcombine.high %v3035, %v3051
        %v3103 = vunpack.c.l.s4 1934713408
        %v3104 = vunpack.c.0.s8 %v3103
        %v3105 = vlaneseq
        %v3106 = vshrl.u32 %v3105, 7
        %v3107 = vsub.s32 %v3104, %v3106
        %v3108 = vrot.slane %v3100, %v3107
        %v3110 = vunpack.c.l.s4 1934713408
        %v3111 = vunpack.c.0.s8 %v3110
        %v3112 = vlaneseq
        %v3113 = vshrl.u32 %v3112, 7
        %v3114 = vsub.s32 %v3111, %v3113
        %v3115 = vrot.slane %v3101, %v3114
        %v3116 = vcombine.low %v3060, %v3076
        %v3117 = vcombine.high %v3060, %v3076
        %v3119 = vunpack.c.l.s4 1934713408
        %v3120 = vunpack.c.0.s8 %v3119
        %v3121 = vlaneseq
        %v3122 = vshrl.u32 %v3121, 7
        %v3123 = vsub.s32 %v3120, %v3122
        %v3124 = vrot.slane %v3116, %v3123
        %v3126 = vunpack.c.l.s4 1934713408
        %v3127 = vunpack.c.0.s8 %v3126
        %v3128 = vlaneseq
        %v3129 = vshrl.u32 %v3128, 7
        %v3130 = vsub.s32 %v3127, %v3129
        %v3131 = vrot.slane %v3117, %v3130
        %v3132 = vcombine.low %v3067, %v3083
        %v3133 = vcombine.high %v3067, %v3083
        %v3135 = vunpack.c.l.s4 1934713408
        %v3136 = vunpack.c.0.s8 %v3135
        %v3137 = vlaneseq
        %v3138 = vshrl.u32 %v3137, 7
        %v3139 = vsub.s32 %v3136, %v3138
        %v3140 = vrot.slane %v3132, %v3139
        %v3142 = vunpack.c.l.s4 1934713408
        %v3143 = vunpack.c.0.s8 %v3142
        %v3144 = vlaneseq
        %v3145 = vshrl.u32 %v3144, 7
        %v3146 = vsub.s32 %v3143, %v3145
        %v3147 = vrot.slane %v3133, %v3146
        %v3148 = vcombine.low %v3092, %v3124
        %v3149 = vcombine.high %v3092, %v3124
        %v3150 = vcombine.low %v3099, %v3131
        %v3151 = vcombine.high %v3099, %v3131
        %v3152 = vcombine.low %v3108, %v3140
        %v3153 = vcombine.high %v3108, %v3140
        %v3154 = vcombine.low %v3115, %v3147
        %v3155 = vcombine.high %v3115, %v3147
        %v3156 = vcombine.low %v2445, %v2607
        %v3157 = vcombine.high %v2445, %v2607
        %v3159 = vunpack.c.l.s4 1983009808
        %v3160 = vunpack.c.0.s8 %v3159
        %v3161 = vlaneseq
        %v3162 = vshrl.u32 %v3161, 7
        %v3163 = vsub.s32 %v3160, %v3162
        %v3164 = vrot.slane %v3156, %v3163
        %v3166 = vunpack.c.l.s4 1983009808
        %v3167 = vunpack.c.0.s8 %v3166
        %v3168 = vlaneseq
        %v3169 = vshrl.u32 %v3168, 7
        %v3170 = vsub.s32 %v3167, %v3169
        %v3171 = vrot.slane %v3157, %v3170
        %v3172 = vcombine.low %v2526, %v2688
        %v3173 = vcombine.high %v2526, %v2688
        %v3175 = vunpack.c.l.s4 1983009808
        %v3176 = vunpack.c.0.s8 %v3175
        %v3177 = vlaneseq
        %v3178 = vshrl.u32 %v3177, 7
        %v3179 = vsub.s32 %v3176, %v3178
        %v3180 = vrot.slane %v3172, %v3179
        %v3182 = vunpack.c.l.s4 1983009808
        %v3183 = vunpack.c.0.s8 %v3182
        %v3184 = vlaneseq
        %v3185 = vshrl.u32 %v3184, 7
        %v3186 = vsub.s32 %v3183, %v3185
        %v3187 = vrot.slane %v3173, %v3186
        %v3188 = vcombine.low %v2769, %v2931
        %v3189 = vcombine.high %v2769, %v2931
        %v3191 = vunpack.c.l.s4 1983009808
        %v3192 = vunpack.c.0.s8 %v3191
        %v3193 = vlaneseq
        %v3194 = vshrl.u32 %v3193, 7
        %v3195 = vsub.s32 %v3192, %v3194
        %v3196 = vrot.slane %v3188, %v3195
        %v3198 = vunpack.c.l.s4 1983009808
        %v3199 = vunpack.c.0.s8 %v3198
        %v3200 = vlaneseq
        %v3201 = vshrl.u32 %v3200, 7
        %v3202 = vsub.s32 %v3199, %v3201
        %v3203 = vrot.slane %v3189, %v3202
        %v3204 = vcombine.low %v2850, %v3012
        %v3205 = vcombine.high %v2850, %v3012
        %v3207 = vunpack.c.l.s4 1983009808
        %v3208 = vunpack.c.0.s8 %v3207
        %v3209 = vlaneseq
        %v3210 = vshrl.u32 %v3209, 7
        %v3211 = vsub.s32 %v3208, %v3210
        %v3212 = vrot.slane %v3204, %v3211
        %v3214 = vunpack.c.l.s4 1983009808
        %v3215 = vunpack.c.0.s8 %v3214
        %v3216 = vlaneseq
        %v3217 = vshrl.u32 %v3216, 7
        %v3218 = vsub.s32 %v3215, %v3217
        %v3219 = vrot.slane %v3205, %v3218
        %v3220 = vcombine.low %v3164, %v3180
        %v3221 = vcombine.high %v3164, %v3180
        %v3223 = vunpack.c.l.s4 1934713408
        %v3224 = vunpack.c.0.s8 %v3223
        %v3225 = vlaneseq
        %v3226 = vshrl.u32 %v3225, 7
        %v3227 = vsub.s32 %v3224, %v3226
        %v3228 = vrot.slane %v3220, %v3227
        %v3230 = vunpack.c.l.s4 1934713408
        %v3231 = vunpack.c.0.s8 %v3230
        %v3232 = vlaneseq
        %v3233 = vshrl.u32 %v3232, 7
        %v3234 = vsub.s32 %v3231, %v3233
        %v3235 = vrot.slane %v3221, %v3234
        %v3236 = vcombine.low %v3171, %v3187
        %v3237 = vcombine.high %v3171, %v3187
        %v3239 = vunpack.c.l.s4 1934713408
        %v3240 = vunpack.c.0.s8 %v3239
        %v3241 = vlaneseq
        %v3242 = vshrl.u32 %v3241, 7
        %v3243 = vsub.s32 %v3240, %v3242
        %v3244 = vrot.slane %v3236, %v3243
        %v3246 = vunpack.c.l.s4 1934713408
        %v3247 = vunpack.c.0.s8 %v3246
        %v3248 = vlaneseq
        %v3249 = vshrl.u32 %v3248, 7
        %v3250 = vsub.s32 %v3247, %v3249
        %v3251 = vrot.slane %v3237, %v3250
        %v3252 = vcombine.low %v3196, %v3212
        %v3253 = vcombine.high %v3196, %v3212
        %v3255 = vunpack.c.l.s4 1934713408
        %v3256 = vunpack.c.0.s8 %v3255
        %v3257 = vlaneseq
        %v3258 = vshrl.u32 %v3257, 7
        %v3259 = vsub.s32 %v3256, %v3258
        %v3260 = vrot.slane %v3252, %v3259
        %v3262 = vunpack.c.l.s4 1934713408
        %v3263 = vunpack.c.0.s8 %v3262
        %v3264 = vlaneseq
        %v3265 = vshrl.u32 %v3264, 7
        %v3266 = vsub.s32 %v3263, %v3265
        %v3267 = vrot.slane %v3253, %v3266
        %v3268 = vcombine.low %v3203, %v3219
        %v3269 = vcombine.high %v3203, %v3219
        %v3271 = vunpack.c.l.s4 1934713408
        %v3272 = vunpack.c.0.s8 %v3271
        %v3273 = vlaneseq
        %v3274 = vshrl.u32 %v3273, 7
        %v3275 = vsub.s32 %v3272, %v3274
        %v3276 = vrot.slane %v3268, %v3275
        %v3278 = vunpack.c.l.s4 1934713408
        %v3279 = vunpack.c.0.s8 %v3278
        %v3280 = vlaneseq
        %v3281 = vshrl.u32 %v3280, 7
        %v3282 = vsub.s32 %v3279, %v3281
        %v3283 = vrot.slane %v3269, %v3282
        %v3284 = vcombine.low %v3228, %v3260
        %v3285 = vcombine.high %v3228, %v3260
        %v3286 = vcombine.low %v3235, %v3267
        %v3287 = vcombine.high %v3235, %v3267
        %v3288 = vcombine.low %v3244, %v3276
        %v3289 = vcombine.high %v3244, %v3276
        %v3290 = vcombine.low %v3251, %v3283
        %v3291 = vcombine.high %v3251, %v3283
        %v3292 = vcombine.low %v1802, %v1964
        %v3293 = vcombine.high %v1802, %v1964
        %v3295 = vunpack.c.l.s4 1983009808
        %v3296 = vunpack.c.0.s8 %v3295
        %v3297 = vlaneseq
        %v3298 = vshrl.u32 %v3297, 7
        %v3299 = vsub.s32 %v3296, %v3298
        %v3300 = vrot.slane %v3292, %v3299
        %v3302 = vunpack.c.l.s4 1983009808
        %v3303 = vunpack.c.0.s8 %v3302
        %v3304 = vlaneseq
        %v3305 = vshrl.u32 %v3304, 7
        %v3306 = vsub.s32 %v3303, %v3305
        %v3307 = vrot.slane %v3293, %v3306
        %v3308 = vcombine.low %v1883, %v2045
        %v3309 = vcombine.high %v1883, %v2045
        %v3311 = vunpack.c.l.s4 1983009808
        %v3312 = vunpack.c.0.s8 %v3311
        %v3313 = vlaneseq
        %v3314 = vshrl.u32 %v3313, 7
        %v3315 = vsub.s32 %v3312, %v3314
        %v3316 = vrot.slane %v3308, %v3315
        %v3318 = vunpack.c.l.s4 1983009808
        %v3319 = vunpack.c.0.s8 %v3318
        %v3320 = vlaneseq
        %v3321 = vshrl.u32 %v3320, 7
        %v3322 = vsub.s32 %v3319, %v3321
        %v3323 = vrot.slane %v3309, %v3322
        %v3324 = vcombine.low %v2126, %v2288
        %v3325 = vcombine.high %v2126, %v2288
        %v3327 = vunpack.c.l.s4 1983009808
        %v3328 = vunpack.c.0.s8 %v3327
        %v3329 = vlaneseq
        %v3330 = vshrl.u32 %v3329, 7
        %v3331 = vsub.s32 %v3328, %v3330
        %v3332 = vrot.slane %v3324, %v3331
        %v3334 = vunpack.c.l.s4 1983009808
        %v3335 = vunpack.c.0.s8 %v3334
        %v3336 = vlaneseq
        %v3337 = vshrl.u32 %v3336, 7
        %v3338 = vsub.s32 %v3335, %v3337
        %v3339 = vrot.slane %v3325, %v3338
        %v3340 = vcombine.low %v2207, %v2369
        %v3341 = vcombine.high %v2207, %v2369
        %v3343 = vunpack.c.l.s4 1983009808
        %v3344 = vunpack.c.0.s8 %v3343
        %v3345 = vlaneseq
        %v3346 = vshrl.u32 %v3345, 7
        %v3347 = vsub.s32 %v3344, %v3346
        %v3348 = vrot.slane %v3340, %v3347
        %v3350 = vunpack.c.l.s4 1983009808
        %v3351 = vunpack.c.0.s8 %v3350
        %v3352 = vlaneseq
        %v3353 = vshrl.u32 %v3352, 7
        %v3354 = vsub.s32 %v3351, %v3353
        %v3355 = vrot.slane %v3341, %v3354
        %v3356 = vcombine.low %v3300, %v3316
        %v3357 = vcombine.high %v3300, %v3316
        %v3359 = vunpack.c.l.s4 1934713408
        %v3360 = vunpack.c.0.s8 %v3359
        %v3361 = vlaneseq
        %v3362 = vshrl.u32 %v3361, 7
        %v3363 = vsub.s32 %v3360, %v3362
        %v3364 = vrot.slane %v3356, %v3363
        %v3366 = vunpack.c.l.s4 1934713408
        %v3367 = vunpack.c.0.s8 %v3366
        %v3368 = vlaneseq
        %v3369 = vshrl.u32 %v3368, 7
        %v3370 = vsub.s32 %v3367, %v3369
        %v3371 = vrot.slane %v3357, %v3370
        %v3372 = vcombine.low %v3307, %v3323
        %v3373 = vcombine.high %v3307, %v3323
        %v3375 = vunpack.c.l.s4 1934713408
        %v3376 = vunpack.c.0.s8 %v3375
        %v3377 = vlaneseq
        %v3378 = vshrl.u32 %v3377, 7
        %v3379 = vsub.s32 %v3376, %v3378
        %v3380 = vrot.slane %v3372, %v3379
        %v3382 = vunpack.c.l.s4 1934713408
        %v3383 = vunpack.c.0.s8 %v3382
        %v3384 = vlaneseq
        %v3385 = vshrl.u32 %v3384, 7
        %v3386 = vsub.s32 %v3383, %v3385
        %v3387 = vrot.slane %v3373, %v3386
        %v3388 = vcombine.low %v3332, %v3348
        %v3389 = vcombine.high %v3332, %v3348
        %v3391 = vunpack.c.l.s4 1934713408
        %v3392 = vunpack.c.0.s8 %v3391
        %v3393 = vlaneseq
        %v3394 = vshrl.u32 %v3393, 7
        %v3395 = vsub.s32 %v3392, %v3394
        %v3396 = vrot.slane %v3388, %v3395
        %v3398 = vunpack.c.l.s4 1934713408
        %v3399 = vunpack.c.0.s8 %v3398
        %v3400 = vlaneseq
        %v3401 = vshrl.u32 %v3400, 7
        %v3402 = vsub.s32 %v3399, %v3401
        %v3403 = vrot.slane %v3389, %v3402
        %v3404 = vcombine.low %v3339, %v3355
        %v3405 = vcombine.high %v3339, %v3355
        %v3407 = vunpack.c.l.s4 1934713408
        %v3408 = vunpack.c.0.s8 %v3407
        %v3409 = vlaneseq
        %v3410 = vshrl.u32 %v3409, 7
        %v3411 = vsub.s32 %v3408, %v3410
        %v3412 = vrot.slane %v3404, %v3411
        %v3414 = vunpack.c.l.s4 1934713408
        %v3415 = vunpack.c.0.s8 %v3414
        %v3416 = vlaneseq
        %v3417 = vshrl.u32 %v3416, 7
        %v3418 = vsub.s32 %v3415, %v3417
        %v3419 = vrot.slane %v3405, %v3418
        %v3420 = vcombine.low %v3364, %v3396
        %v3421 = vcombine.high %v3364, %v3396
        %v3422 = vcombine.low %v3371, %v3403
        %v3423 = vcombine.high %v3371, %v3403
        %v3424 = vcombine.low %v3380, %v3412
        %v3425 = vcombine.high %v3380, %v3412
        %v3426 = vcombine.low %v3387, %v3419
        %v3427 = vcombine.high %v3387, %v3419
        %v3428 = vcombine.low %v2450, %v2612
        %v3429 = vcombine.high %v2450, %v2612
        %v3431 = vunpack.c.l.s4 1983009808
        %v3432 = vunpack.c.0.s8 %v3431
        %v3433 = vlaneseq
        %v3434 = vshrl.u32 %v3433, 7
        %v3435 = vsub.s32 %v3432, %v3434
        %v3436 = vrot.slane %v3428, %v3435
        %v3438 = vunpack.c.l.s4 1983009808
        %v3439 = vunpack.c.0.s8 %v3438
        %v3440 = vlaneseq
        %v3441 = vshrl.u32 %v3440, 7
        %v3442 = vsub.s32 %v3439, %v3441
        %v3443 = vrot.slane %v3429, %v3442
        %v3444 = vcombine.low %v2531, %v2693
        %v3445 = vcombine.high %v2531, %v2693
        %v3447 = vunpack.c.l.s4 1983009808
        %v3448 = vunpack.c.0.s8 %v3447
        %v3449 = vlaneseq
        %v3450 = vshrl.u32 %v3449, 7
        %v3451 = vsub.s32 %v3448, %v3450
        %v3452 = vrot.slane %v3444, %v3451
        %v3454 = vunpack.c.l.s4 1983009808
        %v3455 = vunpack.c.0.s8 %v3454
        %v3456 = vlaneseq
        %v3457 = vshrl.u32 %v3456, 7
        %v3458 = vsub.s32 %v3455, %v3457
        %v3459 = vrot.slane %v3445, %v3458
        %v3460 = vcombine.low %v2774, %v2936
        %v3461 = vcombine.high %v2774, %v2936
        %v3463 = vunpack.c.l.s4 1983009808
        %v3464 = vunpack.c.0.s8 %v3463
        %v3465 = vlaneseq
        %v3466 = vshrl.u32 %v3465, 7
        %v3467 = vsub.s32 %v3464, %v3466
        %v3468 = vrot.slane %v3460, %v3467
        %v3470 = vunpack.c.l.s4 1983009808
        %v3471 = vunpack.c.0.s8 %v3470
        %v3472 = vlaneseq
        %v3473 = vshrl.u32 %v3472, 7
        %v3474 = vsub.s32 %v3471, %v3473
        %v3475 = vrot.slane %v3461, %v3474
        %v3476 = vcombine.low %v2855, %v3017
        %v3477 = vcombine.high %v2855, %v3017
        %v3479 = vunpack.c.l.s4 1983009808
        %v3480 = vunpack.c.0.s8 %v3479
        %v3481 = vlaneseq
        %v3482 = vshrl.u32 %v3481, 7
        %v3483 = vsub.s32 %v3480, %v3482
        %v3484 = vrot.slane %v3476, %v3483
        %v3486 = vunpack.c.l.s4 1983009808
        %v3487 = vunpack.c.0.s8 %v3486
        %v3488 = vlaneseq
        %v3489 = vshrl.u32 %v3488, 7
        %v3490 = vsub.s32 %v3487, %v3489
        %v3491 = vrot.slane %v3477, %v3490
        %v3492 = vcombine.low %v3436, %v3452
        %v3493 = vcombine.high %v3436, %v3452
        %v3495 = vunpack.c.l.s4 1934713408
        %v3496 = vunpack.c.0.s8 %v3495
        %v3497 = vlaneseq
        %v3498 = vshrl.u32 %v3497, 7
        %v3499 = vsub.s32 %v3496, %v3498
        %v3500 = vrot.slane %v3492, %v3499
        %v3502 = vunpack.c.l.s4 1934713408
        %v3503 = vunpack.c.0.s8 %v3502
        %v3504 = vlaneseq
        %v3505 = vshrl.u32 %v3504, 7
        %v3506 = vsub.s32 %v3503, %v3505
        %v3507 = vrot.slane %v3493, %v3506
        %v3508 = vcombine.low %v3443, %v3459
        %v3509 = vcombine.high %v3443, %v3459
        %v3511 = vunpack.c.l.s4 1934713408
        %v3512 = vunpack.c.0.s8 %v3511
        %v3513 = vlaneseq
        %v3514 = vshrl.u32 %v3513, 7
        %v3515 = vsub.s32 %v3512, %v3514
        %v3516 = vrot.slane %v3508, %v3515
        %v3518 = vunpack.c.l.s4 1934713408
        %v3519 = vunpack.c.0.s8 %v3518
        %v3520 = vlaneseq
        %v3521 = vshrl.u32 %v3520, 7
        %v3522 = vsub.s32 %v3519, %v3521
        %v3523 = vrot.slane %v3509, %v3522
        %v3524 = vcombine.low %v3468, %v3484
        %v3525 = vcombine.high %v3468, %v3484
        %v3527 = vunpack.c.l.s4 1934713408
        %v3528 = vunpack.c.0.s8 %v3527
        %v3529 = vlaneseq
        %v3530 = vshrl.u32 %v3529, 7
        %v3531 = vsub.s32 %v3528, %v3530
        %v3532 = vrot.slane %v3524, %v3531
        %v3534 = vunpack.c.l.s4 1934713408
        %v3535 = vunpack.c.0.s8 %v3534
        %v3536 = vlaneseq
        %v3537 = vshrl.u32 %v3536, 7
        %v3538 = vsub.s32 %v3535, %v3537
        %v3539 = vrot.slane %v3525, %v3538
        %v3540 = vcombine.low %v3475, %v3491
        %v3541 = vcombine.high %v3475, %v3491
        %v3543 = vunpack.c.l.s4 1934713408
        %v3544 = vunpack.c.0.s8 %v3543
        %v3545 = vlaneseq
        %v3546 = vshrl.u32 %v3545, 7
        %v3547 = vsub.s32 %v3544, %v3546
        %v3548 = vrot.slane %v3540, %v3547
        %v3550 = vunpack.c.l.s4 1934713408
        %v3551 = vunpack.c.0.s8 %v3550
        %v3552 = vlaneseq
        %v3553 = vshrl.u32 %v3552, 7
        %v3554 = vsub.s32 %v3551, %v3553
        %v3555 = vrot.slane %v3541, %v3554
        %v3556 = vcombine.low %v3500, %v3532
        %v3557 = vcombine.high %v3500, %v3532
        %v3558 = vcombine.low %v3507, %v3539
        %v3559 = vcombine.high %v3507, %v3539
        %v3560 = vcombine.low %v3516, %v3548
        %v3561 = vcombine.high %v3516, %v3548
        %v3562 = vcombine.low %v3523, %v3555
        %v3563 = vcombine.high %v3523, %v3555
        %3566 = vrot.lane.b32.xlu0 %v3149, 16
        %v3567 = vpop.permute.xlu0 %3566
        %3568 = vrot.lane.b32.xlu0 %v3285, 16
        %v3569 = vpop.permute.xlu0 %3568
        %3574 = vrot.lane.b32.xlu0 %v3150, 32
        %v3575 = vpop.permute.xlu0 %3574
        %3576 = vrot.lane.b32.xlu0 %v3286, 32
        %v3577 = vpop.permute.xlu0 %3576
        %3582 = vrot.lane.b32.xlu0 %v3151, 48
        %v3583 = vpop.permute.xlu0 %3582
        %3584 = vrot.lane.b32.xlu0 %v3287, 48
        %v3585 = vpop.permute.xlu0 %3584
        %3590 = vrot.lane.b32.xlu0 %v3152, 64
        %v3591 = vpop.permute.xlu0 %3590
        %3592 = vrot.lane.b32.xlu0 %v3288, 64
        %v3593 = vpop.permute.xlu0 %3592
        %3598 = vrot.lane.b32.xlu0 %v3153, 80
        %v3599 = vpop.permute.xlu0 %3598
        %3600 = vrot.lane.b32.xlu0 %v3289, 80
        %v3601 = vpop.permute.xlu0 %3600
        %3606 = vrot.lane.b32.xlu0 %v3154, 96
        %v3607 = vpop.permute.xlu0 %3606
        %3608 = vrot.lane.b32.xlu0 %v3290, 96
        %v3609 = vpop.permute.xlu0 %3608
        %3614 = vrot.lane.b32.xlu0 %v3155, 112
        %v3615 = vpop.permute.xlu0 %3614
        %3616 = vrot.lane.b32.xlu0 %v3291, 112
        %v3617 = vpop.permute.xlu0 %3616
        %3622 = vrot.lane.b32.xlu0 %v3421, 16
        %v3623 = vpop.permute.xlu0 %3622
        %3624 = vrot.lane.b32.xlu0 %v3557, 16
        %v3625 = vpop.permute.xlu0 %3624
        %3630 = vrot.lane.b32.xlu0 %v3422, 32
        %v3631 = vpop.permute.xlu0 %3630
        %3632 = vrot.lane.b32.xlu0 %v3558, 32
        %v3633 = vpop.permute.xlu0 %3632
        %3638 = vrot.lane.b32.xlu0 %v3423, 48
        %v3639 = vpop.permute.xlu0 %3638
        %3640 = vrot.lane.b32.xlu0 %v3559, 48
        %v3641 = vpop.permute.xlu0 %3640
        %3646 = vrot.lane.b32.xlu0 %v3424, 64
        %v3647 = vpop.permute.xlu0 %3646
        %3648 = vrot.lane.b32.xlu0 %v3560, 64
        %v3649 = vpop.permute.xlu0 %3648
        %3654 = vrot.lane.b32.xlu0 %v3425, 80
        %v3655 = vpop.permute.xlu0 %3654
        %3656 = vrot.lane.b32.xlu0 %v3561, 80
        %v3657 = vpop.permute.xlu0 %3656
        %3662 = vrot.lane.b32.xlu0 %v3426, 96
        %v3663 = vpop.permute.xlu0 %3662
        %3664 = vrot.lane.b32.xlu0 %v3562, 96
        %v3665 = vpop.permute.xlu0 %3664
        %3670 = vrot.lane.b32.xlu0 %v3427, 112
        %v3671 = vpop.permute.xlu0 %3670
        %3672 = vrot.lane.b32.xlu0 %v3563, 112
        %v3673 = vpop.permute.xlu0 %3672
        %v3676 = vsel %vm1723, %v3148, %v3567
        %v3677 = vsel %vm1723, %v3284, %v3569
        %v3678 = vsel %vm349, %v3676, %v3575
        %v3679 = vsel %vm349, %v3677, %v3577
        %vm3680 = vcmask 392192
        %v3681 = vsel %vm3680, %v3678, %v3583
        %v3682 = vsel %vm3680, %v3679, %v3585
        %vm3683 = vcmask 523264
        %v3684 = vsel %vm3683, %v3681, %v3591
        %v3685 = vsel %vm3683, %v3682, %v3593
        %vm3686 = vcmask 654336
        %v3687 = vsel %vm3686, %v3684, %v3599
        %v3688 = vsel %vm3686, %v3685, %v3601
        %vm3689 = vcmask 785408
        %v3690 = vsel %vm3689, %v3687, %v3607
        %v3691 = vsel %vm3689, %v3688, %v3609
        %vm3692 = vcmask 916480
        %v3693 = vsel %vm3692, %v3690, %v3615
        %v3694 = vsel %vm3692, %v3691, %v3617
        %v3695 = vsel %vm1723, %v3420, %v3623
        %v3696 = vsel %vm1723, %v3556, %v3625
        %v3697 = vsel %vm349, %v3695, %v3631
        %v3698 = vsel %vm349, %v3696, %v3633
        %v3699 = vsel %vm3680, %v3697, %v3639
        %v3700 = vsel %vm3680, %v3698, %v3641
        %v3701 = vsel %vm3683, %v3699, %v3647
        %v3702 = vsel %vm3683, %v3700, %v3649
        %v3703 = vsel %vm3686, %v3701, %v3655
        %v3704 = vsel %vm3686, %v3702, %v3657
        %v3705 = vsel %vm3689, %v3703, %v3663
        %v3706 = vsel %vm3689, %v3704, %v3665
        %v3707 = vsel %vm3692, %v3705, %v3671
        %v3708 = vsel %vm3692, %v3706, %v3673
        %v3709 = vld [vmem:[#allocation5 + $0x20] sm:$0xff]
        %v3710 = vld [vmem:[#allocation5 + $0x90] sm:$0xff]
        %v3711 = vld [vmem:[#allocation5 + $0x28] sm:$0xff]
        %v3712 = vld [vmem:[#allocation5 + $0x98] sm:$0xff]
        %v3714 = vsel %vm1723, %v3711, 0
        %v3717 = vsel %vm1723, %v3712, 0
        %3719 = vmatprep.subr.mxu0 0.0
        %3720 = vmatpush1.msra.mxu0 0.0
        %3721 = vmatprep.subr.mxu0 0.0
        %3722 = vmatpush1.msra.mxu0 0.0
        %3723 = vmatprep.subr.mxu0 0.0
        %3724 = vmatpush1.msra.mxu0 0.0
        %3725 = vmatprep.subr.mxu0 0.0
        %3726 = vmatpush1.msra.mxu0 0.0
        %3727 = vmatprep.subr.mxu0 0.0
        %3728 = vmatpush1.msra.mxu0 0.0
        %3729 = vmatprep.subr.mxu0 0.0
        %3730 = vmatpush1.msra.mxu0 0.0
        %3731 = vmatprep.subr.mxu0 0.0
        %3732 = vmatpush1.msra.mxu0 0.0
        %3733 = vmatprep.subr.mxu0 0.0
        %3734 = vmatpush1.msra.mxu0 0.0
        %3735 = vmatprep.subr.mxu0 0.0
        %3736 = vmatpush1.msra.mxu0 0.0
        %3737 = vmatprep.subr.mxu0 0.0
        %3738 = vmatpush1.msra.mxu0 0.0
        %3739 = vmatprep.subr.mxu0 0.0
        %3740 = vmatpush1.msra.mxu0 0.0
        %3741 = vmatprep.subr.mxu0 0.0
        %3742 = vmatpush1.msra.mxu0 0.0
        %3743 = vmatprep.subr.mxu0 0.0
        %3744 = vmatpush1.msra.mxu0 0.0
        %3745 = vmatprep.subr.mxu0 0.0
        %3746 = vmatpush1.msra.mxu0 0.0
        %3747 = vmatprep.subr.mxu0 %v3708
        %3748 = vmatpush1.msra.mxu0 %v3694
        %3749 = vmatprep.subr.mxu0 %v3707
        %3750 = vmatpush1.msra.mxu0 %v3693
        %3751 = vmatprep.subr.mxu0 0.0
        %3752 = vmatpush2.msra.mxu0 0.0
        %3753 = vmatprep.subr.mxu0 0.0
        %3754 = vmatpush2.msra.mxu0 0.0
        %3755 = vmatprep.subr.mxu0 0.0
        %3756 = vmatpush2.msra.mxu0 0.0
        %3757 = vmatprep.subr.mxu0 0.0
        %3758 = vmatpush2.msra.mxu0 0.0
        %3759 = vmatprep.subr.mxu0 0.0
        %3760 = vmatpush2.msra.mxu0 0.0
        %3761 = vmatprep.subr.mxu0 0.0
        %3762 = vmatpush2.msra.mxu0 0.0
        %3763 = vmatprep.subr.mxu0 0.0
        %3764 = vmatpush2.msra.mxu0 0.0
        %3765 = vmatprep.subr.mxu0 0.0
        %3766 = vmatpush2.msra.mxu0 0.0
        %3767 = vmatprep.subr.mxu0 0.0
        %3768 = vmatpush2.msra.mxu0 0.0
        %3769 = vmatprep.subr.mxu0 0.0
        %3770 = vmatpush2.msra.mxu0 0.0
        %3771 = vmatprep.subr.mxu0 0.0
        %3772 = vmatpush2.msra.mxu0 0.0
        %3773 = vmatprep.subr.mxu0 0.0
        %3774 = vmatpush2.msra.mxu0 0.0
        %3775 = vmatprep.subr.mxu0 0.0
        %3776 = vmatpush2.msra.mxu0 0.0
        %3777 = vmatprep.subr.mxu0 0.0
        %3778 = vmatpush2.msra.mxu0 0.0
        %3779 = vmatprep.subr.mxu0 0.0
        %3780 = vmatpush2.msra.mxu0 0.0
        %3781 = vmatprep.subr.mxu0 0.0
        %3782 = vmatpush2.msra.mxu0 0.0
        %3783 = vmatprep.mubr.f32.mxu0 0.0
        %3784 = vmatmul.mubr.f32.gmra.mxu0 %v3714
        %v3785 = vpop.f32.mrf.mxu0
        %v3786 = vadd.f32 0.0, %v3785
        %v3787 = vpop.f32.mrf.mxu0
        %v3788 = vadd.f32 0.0, %v3787
        %3789 = vmatprep.mubr.f32.mxu0 0.0
        %3790 = vmatmul.mubr.f32.gmra.mxu0 %v3717
        %v3791 = vpop.f32.mrf.mxu0
        %v3792 = vadd.f32 0.0, %v3791
        %v3793 = vpop.f32.mrf.mxu0
        %v3794 = vadd.f32 0.0, %v3793
        %3795 = vdwg.mxu0
        %v3797 = vsel %vm206, %v3709, 0
        %v3800 = vsel %vm206, %v3710, 0
        %3802 = vmatprep.subr.mxu0 0.0
        %3803 = vmatpush1.msra.mxu0 0.0
        %3804 = vmatprep.subr.mxu0 0.0
        %3805 = vmatpush1.msra.mxu0 0.0
        %3806 = vmatprep.subr.mxu0 0.0
        %3807 = vmatpush1.msra.mxu0 0.0
        %3808 = vmatprep.subr.mxu0 0.0
        %3809 = vmatpush1.msra.mxu0 0.0
        %3810 = vmatprep.subr.mxu0 0.0
        %3811 = vmatpush1.msra.mxu0 0.0
        %3812 = vmatprep.subr.mxu0 0.0
        %3813 = vmatpush1.msra.mxu0 0.0
        %3814 = vmatprep.subr.mxu0 0.0
        %3815 = vmatpush1.msra.mxu0 0.0
        %3816 = vmatprep.subr.mxu0 0.0
        %3817 = vmatpush1.msra.mxu0 0.0
        %3818 = vmatprep.subr.mxu0 0.0
        %3819 = vmatpush1.msra.mxu0 0.0
        %3820 = vmatprep.subr.mxu0 0.0
        %3821 = vmatpush1.msra.mxu0 0.0
        %3822 = vmatprep.subr.mxu0 0.0
        %3823 = vmatpush1.msra.mxu0 0.0
        %3824 = vmatprep.subr.mxu0 0.0
        %3825 = vmatpush1.msra.mxu0 0.0
        %3826 = vmatprep.subr.mxu0 0.0
        %3827 = vmatpush1.msra.mxu0 0.0
        %3828 = vmatprep.subr.mxu0 0.0
        %3829 = vmatpush1.msra.mxu0 0.0
        %3830 = vmatprep.subr.mxu0 0.0
        %3831 = vmatpush1.msra.mxu0 0.0
        %3832 = vmatprep.subr.mxu0 %v222
        %3833 = vmatpush1.msra.mxu0 %v220
        %3834 = vmatprep.subr.mxu0 0.0
        %3835 = vmatpush2.msra.mxu0 0.0
        %3836 = vmatprep.subr.mxu0 0.0
        %3837 = vmatpush2.msra.mxu0 0.0
        %3838 = vmatprep.subr.mxu0 0.0
        %3839 = vmatpush2.msra.mxu0 0.0
        %3840 = vmatprep.subr.mxu0 0.0
        %3841 = vmatpush2.msra.mxu0 0.0
        %3842 = vmatprep.subr.mxu0 0.0
        %3843 = vmatpush2.msra.mxu0 0.0
        %3844 = vmatprep.subr.mxu0 0.0
        %3845 = vmatpush2.msra.mxu0 0.0
        %3846 = vmatprep.subr.mxu0 0.0
        %3847 = vmatpush2.msra.mxu0 0.0
        %3848 = vmatprep.subr.mxu0 0.0
        %3849 = vmatpush2.msra.mxu0 0.0
        %3850 = vmatprep.subr.mxu0 0.0
        %3851 = vmatpush2.msra.mxu0 0.0
        %3852 = vmatprep.subr.mxu0 0.0
        %3853 = vmatpush2.msra.mxu0 0.0
        %3854 = vmatprep.subr.mxu0 0.0
        %3855 = vmatpush2.msra.mxu0 0.0
        %3856 = vmatprep.subr.mxu0 0.0
        %3857 = vmatpush2.msra.mxu0 0.0
        %3858 = vmatprep.subr.mxu0 0.0
        %3859 = vmatpush2.msra.mxu0 0.0
        %3860 = vmatprep.subr.mxu0 0.0
        %3861 = vmatpush2.msra.mxu0 0.0
        %3862 = vmatprep.subr.mxu0 0.0
        %3863 = vmatpush2.msra.mxu0 0.0
        %3864 = vmatprep.subr.mxu0 0.0
        %3865 = vmatpush2.msra.mxu0 0.0
        %3866 = vmatprep.mubr.f32.mxu0 0.0
        %3867 = vmatmul.mubr.f32.gmra.mxu0 %v3797
        %v3868 = vpop.f32.mrf.mxu0
        %v3869 = vadd.f32 %v3786, %v3868
        %v3870 = vpop.f32.mrf.mxu0
        %v3871 = vadd.f32 %v3788, %v3870
        %3872 = vmatprep.mubr.f32.mxu0 0.0
        %3873 = vmatmul.mubr.f32.gmra.mxu0 %v3800
        %v3874 = vpop.f32.mrf.mxu0
        %v3875 = vadd.f32 %v3792, %v3874
        %v3876 = vpop.f32.mrf.mxu0
        %v3877 = vadd.f32 %v3794, %v3876
        %3878 = vdwg.mxu0
        %v3879 = vld [vmem:[#allocation5 + $0x30] sm:$0xff]
        %v3880 = vld [vmem:[#allocation5 + $0xa0] sm:$0xff]
        %3882 = vset.pattern.permute.xlu0 0
        %3883 = vperm.xlu0 %3882, %v3879
        %v3884 = vpop.permute.xlu0 %3883
        %3887 = vset.pattern.permute.xlu0 0
        %3888 = vperm.xlu0 %3887, %v3880
        %v3889 = vpop.permute.xlu0 %3888
        %v3891 = vadd.f32 %v3869, %v3884
        %v3892 = vadd.f32 %v3871, %v3884
        %v3893 = vadd.f32 %v3875, %v3889
        %v3894 = vadd.f32 %v3877, %v3889
        %v3895 = vld [vmem:[#allocation5 + $0x38] sm:$0xff]
        %v3896 = vld [vmem:[#allocation5 + $0xa8] sm:$0xff]
        %v3897 = vld [vmem:[#allocation5 + $0x40] sm:$0xff]
        %v3898 = vld [vmem:[#allocation5 + $0xb0] sm:$0xff]
        %3900 = vset.pattern.permute.xlu0 0
        %3901 = vperm.xlu0 %3900, %v3897
        %v3902 = vpop.permute.xlu0 %3901
        %3905 = vset.pattern.permute.xlu0 0
        %3906 = vperm.xlu0 %3905, %v3898
        %v3907 = vpop.permute.xlu0 %3906
        %v3910 = vsel %vm1723, %v3895, 0
        %v3913 = vsel %vm1723, %v3896, 0
        %3915 = vmatprep.subr.mxu0 0.0
        %3916 = vmatpush1.msra.mxu0 0.0
        %3917 = vmatprep.subr.mxu0 0.0
        %3918 = vmatpush1.msra.mxu0 0.0
        %3919 = vmatprep.subr.mxu0 0.0
        %3920 = vmatpush1.msra.mxu0 0.0
        %3921 = vmatprep.subr.mxu0 0.0
        %3922 = vmatpush1.msra.mxu0 0.0
        %3923 = vmatprep.subr.mxu0 0.0
        %3924 = vmatpush1.msra.mxu0 0.0
        %3925 = vmatprep.subr.mxu0 0.0
        %3926 = vmatpush1.msra.mxu0 0.0
        %3927 = vmatprep.subr.mxu0 0.0
        %3928 = vmatpush1.msra.mxu0 0.0
        %3929 = vmatprep.subr.mxu0 0.0
        %3930 = vmatpush1.msra.mxu0 0.0
        %3931 = vmatprep.subr.mxu0 0.0
        %3932 = vmatpush1.msra.mxu0 0.0
        %3933 = vmatprep.subr.mxu0 0.0
        %3934 = vmatpush1.msra.mxu0 0.0
        %3935 = vmatprep.subr.mxu0 0.0
        %3936 = vmatpush1.msra.mxu0 0.0
        %3937 = vmatprep.subr.mxu0 0.0
        %3938 = vmatpush1.msra.mxu0 0.0
        %3939 = vmatprep.subr.mxu0 0.0
        %3940 = vmatpush1.msra.mxu0 0.0
        %3941 = vmatprep.subr.mxu0 0.0
        %3942 = vmatpush1.msra.mxu0 0.0
        %3943 = vmatprep.subr.mxu0 %v3894
        %3944 = vmatpush1.msra.mxu0 %v3893
        %3945 = vmatprep.subr.mxu0 %v3892
        %3946 = vmatpush1.msra.mxu0 %v3891
        %3947 = vmatprep.subr.mxu0 0.0
        %3948 = vmatpush2.msra.mxu0 0.0
        %3949 = vmatprep.subr.mxu0 0.0
        %3950 = vmatpush2.msra.mxu0 0.0
        %3951 = vmatprep.subr.mxu0 0.0
        %3952 = vmatpush2.msra.mxu0 0.0
        %3953 = vmatprep.subr.mxu0 0.0
        %3954 = vmatpush2.msra.mxu0 0.0
        %3955 = vmatprep.subr.mxu0 0.0
        %3956 = vmatpush2.msra.mxu0 0.0
        %3957 = vmatprep.subr.mxu0 0.0
        %3958 = vmatpush2.msra.mxu0 0.0
        %3959 = vmatprep.subr.mxu0 0.0
        %3960 = vmatpush2.msra.mxu0 0.0
        %3961 = vmatprep.subr.mxu0 0.0
        %3962 = vmatpush2.msra.mxu0 0.0
        %3963 = vmatprep.subr.mxu0 0.0
        %3964 = vmatpush2.msra.mxu0 0.0
        %3965 = vmatprep.subr.mxu0 0.0
        %3966 = vmatpush2.msra.mxu0 0.0
        %3967 = vmatprep.subr.mxu0 0.0
        %3968 = vmatpush2.msra.mxu0 0.0
        %3969 = vmatprep.subr.mxu0 0.0
        %3970 = vmatpush2.msra.mxu0 0.0
        %3971 = vmatprep.subr.mxu0 0.0
        %3972 = vmatpush2.msra.mxu0 0.0
        %3973 = vmatprep.subr.mxu0 0.0
        %3974 = vmatpush2.msra.mxu0 0.0
        %3975 = vmatprep.subr.mxu0 0.0
        %3976 = vmatpush2.msra.mxu0 0.0
        %3977 = vmatprep.subr.mxu0 0.0
        %3978 = vmatpush2.msra.mxu0 0.0
        %3979 = vmatprep.mubr.f32.mxu0 0.0
        %3980 = vmatmul.mubr.f32.gmra.mxu0 %v3910
        %v3981 = vpop.f32.mrf.mxu0
        %v3982 = vadd.f32 %v3902, %v3981
        %v3983 = vpop.f32.mrf.mxu0
        %v3984 = vadd.f32 %v3902, %v3983
        %3985 = vmatprep.mubr.f32.mxu0 0.0
        %3986 = vmatmul.mubr.f32.gmra.mxu0 %v3913
        %v3987 = vpop.f32.mrf.mxu0
        %v3988 = vadd.f32 %v3907, %v3987
        %v3989 = vpop.f32.mrf.mxu0
        %v3990 = vadd.f32 %v3907, %v3989
        %3991 = vdwg.mxu0
        %v3992 = vmax.f32 %v3982, 0.0
        %v3993 = vmax.f32 %v3984, 0.0
        %v3994 = vmax.f32 %v3988, 0.0
        %v3995 = vmax.f32 %v3990, 0.0
        %v3996 = vld [vmem:[#allocation5 + $0x48] sm:$0xff]
        %v3997 = vld [vmem:[#allocation5 + $0xb8] sm:$0xff]
        %v3998 = vld [vmem:[#allocation5 + $0x50] sm:$0xff]
        %v3999 = vld [vmem:[#allocation5 + $0xc0] sm:$0xff]
        %4001 = vset.pattern.permute.xlu0 0
        %4002 = vperm.xlu0 %4001, %v3998
        %v4003 = vpop.permute.xlu0 %4002
        %4006 = vset.pattern.permute.xlu0 0
        %4007 = vperm.xlu0 %4006, %v3999
        %v4008 = vpop.permute.xlu0 %4007
        %v4011 = vsel %vm1723, %v3996, 0
        %v4014 = vsel %vm1723, %v3997, 0
        %4016 = vmatprep.subr.mxu0 0.0
        %4017 = vmatpush1.msra.mxu0 0.0
        %4018 = vmatprep.subr.mxu0 0.0
        %4019 = vmatpush1.msra.mxu0 0.0
        %4020 = vmatprep.subr.mxu0 0.0
        %4021 = vmatpush1.msra.mxu0 0.0
        %4022 = vmatprep.subr.mxu0 0.0
        %4023 = vmatpush1.msra.mxu0 0.0
        %4024 = vmatprep.subr.mxu0 0.0
        %4025 = vmatpush1.msra.mxu0 0.0
        %4026 = vmatprep.subr.mxu0 0.0
        %4027 = vmatpush1.msra.mxu0 0.0
        %4028 = vmatprep.subr.mxu0 0.0
        %4029 = vmatpush1.msra.mxu0 0.0
        %4030 = vmatprep.subr.mxu0 0.0
        %4031 = vmatpush1.msra.mxu0 0.0
        %4032 = vmatprep.subr.mxu0 0.0
        %4033 = vmatpush1.msra.mxu0 0.0
        %4034 = vmatprep.subr.mxu0 0.0
        %4035 = vmatpush1.msra.mxu0 0.0
        %4036 = vmatprep.subr.mxu0 0.0
        %4037 = vmatpush1.msra.mxu0 0.0
        %4038 = vmatprep.subr.mxu0 0.0
        %4039 = vmatpush1.msra.mxu0 0.0
        %4040 = vmatprep.subr.mxu0 0.0
        %4041 = vmatpush1.msra.mxu0 0.0
        %4042 = vmatprep.subr.mxu0 0.0
        %4043 = vmatpush1.msra.mxu0 0.0
        %4044 = vmatprep.subr.mxu0 %v3995
        %4045 = vmatpush1.msra.mxu0 %v3994
        %4046 = vmatprep.subr.mxu0 %v3993
        %4047 = vmatpush1.msra.mxu0 %v3992
        %4048 = vmatprep.subr.mxu0 0.0
        %4049 = vmatpush2.msra.mxu0 0.0
        %4050 = vmatprep.subr.mxu0 0.0
        %4051 = vmatpush2.msra.mxu0 0.0
        %4052 = vmatprep.subr.mxu0 0.0
        %4053 = vmatpush2.msra.mxu0 0.0
        %4054 = vmatprep.subr.mxu0 0.0
        %4055 = vmatpush2.msra.mxu0 0.0
        %4056 = vmatprep.subr.mxu0 0.0
        %4057 = vmatpush2.msra.mxu0 0.0
        %4058 = vmatprep.subr.mxu0 0.0
        %4059 = vmatpush2.msra.mxu0 0.0
        %4060 = vmatprep.subr.mxu0 0.0
        %4061 = vmatpush2.msra.mxu0 0.0
        %4062 = vmatprep.subr.mxu0 0.0
        %4063 = vmatpush2.msra.mxu0 0.0
        %4064 = vmatprep.subr.mxu0 0.0
        %4065 = vmatpush2.msra.mxu0 0.0
        %4066 = vmatprep.subr.mxu0 0.0
        %4067 = vmatpush2.msra.mxu0 0.0
        %4068 = vmatprep.subr.mxu0 0.0
        %4069 = vmatpush2.msra.mxu0 0.0
        %4070 = vmatprep.subr.mxu0 0.0
        %4071 = vmatpush2.msra.mxu0 0.0
        %4072 = vmatprep.subr.mxu0 0.0
        %4073 = vmatpush2.msra.mxu0 0.0
        %4074 = vmatprep.subr.mxu0 0.0
        %4075 = vmatpush2.msra.mxu0 0.0
        %4076 = vmatprep.subr.mxu0 0.0
        %4077 = vmatpush2.msra.mxu0 0.0
        %4078 = vmatprep.subr.mxu0 0.0
        %4079 = vmatpush2.msra.mxu0 0.0
        %4080 = vmatprep.mubr.f32.mxu0 0.0
        %4081 = vmatmul.mubr.f32.gmra.mxu0 %v4011
        %v4082 = vpop.f32.mrf.mxu0
        %v4083 = vadd.f32 %v4003, %v4082
        %v4084 = vpop.f32.mrf.mxu0
        %v4085 = vadd.f32 %v4003, %v4084
        %4086 = vmatprep.mubr.f32.mxu0 0.0
        %4087 = vmatmul.mubr.f32.gmra.mxu0 %v4014
        %v4088 = vpop.f32.mrf.mxu0
        %v4089 = vadd.f32 %v4008, %v4088
        %v4090 = vpop.f32.mrf.mxu0
        %v4091 = vadd.f32 %v4008, %v4090
        %4092 = vdwg.mxu0
        %v4093 = vmax.f32 %v4083, 0.0
        %v4094 = vmax.f32 %v4085, 0.0
        %v4095 = vmax.f32 %v4089, 0.0
        %v4096 = vmax.f32 %v4091, 0.0
        %4098 = vrot.lane.b32.xlu0 %v4093, 112
        %v4099 = vpop.permute.xlu0 %4098
        %4101 = vrot.lane.b32.xlu0 %v4093, 96
        %v4102 = vpop.permute.xlu0 %4101
        %4104 = vrot.lane.b32.xlu0 %v4093, 80
        %v4105 = vpop.permute.xlu0 %4104
        %4107 = vrot.lane.b32.xlu0 %v4093, 64
        %v4108 = vpop.permute.xlu0 %4107
        %4110 = vrot.lane.b32.xlu0 %v4093, 48
        %v4111 = vpop.permute.xlu0 %4110
        %4113 = vrot.lane.b32.xlu0 %v4093, 32
        %v4114 = vpop.permute.xlu0 %4113
        %4116 = vrot.lane.b32.xlu0 %v4093, 16
        %v4117 = vpop.permute.xlu0 %4116
        %4120 = vrot.lane.b32.xlu0 %v4094, 112
        %v4121 = vpop.permute.xlu0 %4120
        %4123 = vrot.lane.b32.xlu0 %v4094, 96
        %v4124 = vpop.permute.xlu0 %4123
        %4126 = vrot.lane.b32.xlu0 %v4094, 80
        %v4127 = vpop.permute.xlu0 %4126
        %4129 = vrot.lane.b32.xlu0 %v4094, 64
        %v4130 = vpop.permute.xlu0 %4129
        %4132 = vrot.lane.b32.xlu0 %v4094, 48
        %v4133 = vpop.permute.xlu0 %4132
        %4135 = vrot.lane.b32.xlu0 %v4094, 32
        %v4136 = vpop.permute.xlu0 %4135
        %4138 = vrot.lane.b32.xlu0 %v4094, 16
        %v4139 = vpop.permute.xlu0 %4138
        %v4141 = vcombine.low %v4093, %v4102
        %v4142 = vcombine.high %v4093, %v4102
        %v4144 = vunpack.c.l.s4 1983009808
        %v4145 = vunpack.c.0.s8 %v4144
        %v4146 = vlaneseq
        %v4147 = vshrl.u32 %v4146, 7
        %v4148 = vsub.s32 %v4145, %v4147
        %v4149 = vrot.slane %v4141, %v4148
        %v4151 = vunpack.c.l.s4 1983009808
        %v4152 = vunpack.c.0.s8 %v4151
        %v4153 = vlaneseq
        %v4154 = vshrl.u32 %v4153, 7
        %v4155 = vsub.s32 %v4152, %v4154
        %v4156 = vrot.slane %v4142, %v4155
        %v4157 = vcombine.low %v4099, %v4105
        %v4158 = vcombine.high %v4099, %v4105
        %v4160 = vunpack.c.l.s4 1983009808
        %v4161 = vunpack.c.0.s8 %v4160
        %v4162 = vlaneseq
        %v4163 = vshrl.u32 %v4162, 7
        %v4164 = vsub.s32 %v4161, %v4163
        %v4165 = vrot.slane %v4157, %v4164
        %v4167 = vunpack.c.l.s4 1983009808
        %v4168 = vunpack.c.0.s8 %v4167
        %v4169 = vlaneseq
        %v4170 = vshrl.u32 %v4169, 7
        %v4171 = vsub.s32 %v4168, %v4170
        %v4172 = vrot.slane %v4158, %v4171
        %v4173 = vcombine.low %v4108, %v4114
        %v4174 = vcombine.high %v4108, %v4114
        %v4176 = vunpack.c.l.s4 1983009808
        %v4177 = vunpack.c.0.s8 %v4176
        %v4178 = vlaneseq
        %v4179 = vshrl.u32 %v4178, 7
        %v4180 = vsub.s32 %v4177, %v4179
        %v4181 = vrot.slane %v4173, %v4180
        %v4183 = vunpack.c.l.s4 1983009808
        %v4184 = vunpack.c.0.s8 %v4183
        %v4185 = vlaneseq
        %v4186 = vshrl.u32 %v4185, 7
        %v4187 = vsub.s32 %v4184, %v4186
        %v4188 = vrot.slane %v4174, %v4187
        %v4189 = vcombine.low %v4111, %v4117
        %v4190 = vcombine.high %v4111, %v4117
        %v4192 = vunpack.c.l.s4 1983009808
        %v4193 = vunpack.c.0.s8 %v4192
        %v4194 = vlaneseq
        %v4195 = vshrl.u32 %v4194, 7
        %v4196 = vsub.s32 %v4193, %v4195
        %v4197 = vrot.slane %v4189, %v4196
        %v4199 = vunpack.c.l.s4 1983009808
        %v4200 = vunpack.c.0.s8 %v4199
        %v4201 = vlaneseq
        %v4202 = vshrl.u32 %v4201, 7
        %v4203 = vsub.s32 %v4200, %v4202
        %v4204 = vrot.slane %v4190, %v4203
        %v4205 = vcombine.low %v4149, %v4165
        %v4206 = vcombine.high %v4149, %v4165
        %v4208 = vunpack.c.l.s4 1934713408
        %v4209 = vunpack.c.0.s8 %v4208
        %v4210 = vlaneseq
        %v4211 = vshrl.u32 %v4210, 7
        %v4212 = vsub.s32 %v4209, %v4211
        %v4213 = vrot.slane %v4205, %v4212
        %v4215 = vunpack.c.l.s4 1934713408
        %v4216 = vunpack.c.0.s8 %v4215
        %v4217 = vlaneseq
        %v4218 = vshrl.u32 %v4217, 7
        %v4219 = vsub.s32 %v4216, %v4218
        %v4220 = vrot.slane %v4206, %v4219
        %v4221 = vcombine.low %v4156, %v4172
        %v4222 = vcombine.high %v4156, %v4172
        %v4224 = vunpack.c.l.s4 1934713408
        %v4225 = vunpack.c.0.s8 %v4224
        %v4226 = vlaneseq
        %v4227 = vshrl.u32 %v4226, 7
        %v4228 = vsub.s32 %v4225, %v4227
        %v4229 = vrot.slane %v4221, %v4228
        %v4231 = vunpack.c.l.s4 1934713408
        %v4232 = vunpack.c.0.s8 %v4231
        %v4233 = vlaneseq
        %v4234 = vshrl.u32 %v4233, 7
        %v4235 = vsub.s32 %v4232, %v4234
        %v4236 = vrot.slane %v4222, %v4235
        %v4237 = vcombine.low %v4181, %v4197
        %v4238 = vcombine.high %v4181, %v4197
        %v4240 = vunpack.c.l.s4 1934713408
        %v4241 = vunpack.c.0.s8 %v4240
        %v4242 = vlaneseq
        %v4243 = vshrl.u32 %v4242, 7
        %v4244 = vsub.s32 %v4241, %v4243
        %v4245 = vrot.slane %v4237, %v4244
        %v4247 = vunpack.c.l.s4 1934713408
        %v4248 = vunpack.c.0.s8 %v4247
        %v4249 = vlaneseq
        %v4250 = vshrl.u32 %v4249, 7
        %v4251 = vsub.s32 %v4248, %v4250
        %v4252 = vrot.slane %v4238, %v4251
        %v4253 = vcombine.low %v4188, %v4204
        %v4254 = vcombine.high %v4188, %v4204
        %v4256 = vunpack.c.l.s4 1934713408
        %v4257 = vunpack.c.0.s8 %v4256
        %v4258 = vlaneseq
        %v4259 = vshrl.u32 %v4258, 7
        %v4260 = vsub.s32 %v4257, %v4259
        %v4261 = vrot.slane %v4253, %v4260
        %v4263 = vunpack.c.l.s4 1934713408
        %v4264 = vunpack.c.0.s8 %v4263
        %v4265 = vlaneseq
        %v4266 = vshrl.u32 %v4265, 7
        %v4267 = vsub.s32 %v4264, %v4266
        %v4268 = vrot.slane %v4254, %v4267
        %v4269 = vcombine.low %v4213, %v4245
        %v4270 = vcombine.high %v4213, %v4245
        %v4271 = vcombine.low %v4220, %v4252
        %v4272 = vcombine.high %v4220, %v4252
        %v4273 = vcombine.low %v4229, %v4261
        %v4274 = vcombine.high %v4229, %v4261
        %v4275 = vcombine.low %v4236, %v4268
        %v4276 = vcombine.high %v4236, %v4268
        %v4277 = vcombine.low %v4094, %v4124
        %v4278 = vcombine.high %v4094, %v4124
        %v4280 = vunpack.c.l.s4 1983009808
        %v4281 = vunpack.c.0.s8 %v4280
        %v4282 = vlaneseq
        %v4283 = vshrl.u32 %v4282, 7
        %v4284 = vsub.s32 %v4281, %v4283
        %v4285 = vrot.slane %v4277, %v4284
        %v4287 = vunpack.c.l.s4 1983009808
        %v4288 = vunpack.c.0.s8 %v4287
        %v4289 = vlaneseq
        %v4290 = vshrl.u32 %v4289, 7
        %v4291 = vsub.s32 %v4288, %v4290
        %v4292 = vrot.slane %v4278, %v4291
        %v4293 = vcombine.low %v4121, %v4127
        %v4294 = vcombine.high %v4121, %v4127
        %v4296 = vunpack.c.l.s4 1983009808
        %v4297 = vunpack.c.0.s8 %v4296
        %v4298 = vlaneseq
        %v4299 = vshrl.u32 %v4298, 7
        %v4300 = vsub.s32 %v4297, %v4299
        %v4301 = vrot.slane %v4293, %v4300
        %v4303 = vunpack.c.l.s4 1983009808
        %v4304 = vunpack.c.0.s8 %v4303
        %v4305 = vlaneseq
        %v4306 = vshrl.u32 %v4305, 7
        %v4307 = vsub.s32 %v4304, %v4306
        %v4308 = vrot.slane %v4294, %v4307
        %v4309 = vcombine.low %v4130, %v4136
        %v4310 = vcombine.high %v4130, %v4136
        %v4312 = vunpack.c.l.s4 1983009808
        %v4313 = vunpack.c.0.s8 %v4312
        %v4314 = vlaneseq
        %v4315 = vshrl.u32 %v4314, 7
        %v4316 = vsub.s32 %v4313, %v4315
        %v4317 = vrot.slane %v4309, %v4316
        %v4319 = vunpack.c.l.s4 1983009808
        %v4320 = vunpack.c.0.s8 %v4319
        %v4321 = vlaneseq
        %v4322 = vshrl.u32 %v4321, 7
        %v4323 = vsub.s32 %v4320, %v4322
        %v4324 = vrot.slane %v4310, %v4323
        %v4325 = vcombine.low %v4133, %v4139
        %v4326 = vcombine.high %v4133, %v4139
        %v4328 = vunpack.c.l.s4 1983009808
        %v4329 = vunpack.c.0.s8 %v4328
        %v4330 = vlaneseq
        %v4331 = vshrl.u32 %v4330, 7
        %v4332 = vsub.s32 %v4329, %v4331
        %v4333 = vrot.slane %v4325, %v4332
        %v4335 = vunpack.c.l.s4 1983009808
        %v4336 = vunpack.c.0.s8 %v4335
        %v4337 = vlaneseq
        %v4338 = vshrl.u32 %v4337, 7
        %v4339 = vsub.s32 %v4336, %v4338
        %v4340 = vrot.slane %v4326, %v4339
        %v4341 = vcombine.low %v4285, %v4301
        %v4342 = vcombine.high %v4285, %v4301
        %v4344 = vunpack.c.l.s4 1934713408
        %v4345 = vunpack.c.0.s8 %v4344
        %v4346 = vlaneseq
        %v4347 = vshrl.u32 %v4346, 7
        %v4348 = vsub.s32 %v4345, %v4347
        %v4349 = vrot.slane %v4341, %v4348
        %v4351 = vunpack.c.l.s4 1934713408
        %v4352 = vunpack.c.0.s8 %v4351
        %v4353 = vlaneseq
        %v4354 = vshrl.u32 %v4353, 7
        %v4355 = vsub.s32 %v4352, %v4354
        %v4356 = vrot.slane %v4342, %v4355
        %v4357 = vcombine.low %v4292, %v4308
        %v4358 = vcombine.high %v4292, %v4308
        %v4360 = vunpack.c.l.s4 1934713408
        %v4361 = vunpack.c.0.s8 %v4360
        %v4362 = vlaneseq
        %v4363 = vshrl.u32 %v4362, 7
        %v4364 = vsub.s32 %v4361, %v4363
        %v4365 = vrot.slane %v4357, %v4364
        %v4367 = vunpack.c.l.s4 1934713408
        %v4368 = vunpack.c.0.s8 %v4367
        %v4369 = vlaneseq
        %v4370 = vshrl.u32 %v4369, 7
        %v4371 = vsub.s32 %v4368, %v4370
        %v4372 = vrot.slane %v4358, %v4371
        %v4373 = vcombine.low %v4317, %v4333
        %v4374 = vcombine.high %v4317, %v4333
        %v4376 = vunpack.c.l.s4 1934713408
        %v4377 = vunpack.c.0.s8 %v4376
        %v4378 = vlaneseq
        %v4379 = vshrl.u32 %v4378, 7
        %v4380 = vsub.s32 %v4377, %v4379
        %v4381 = vrot.slane %v4373, %v4380
        %v4383 = vunpack.c.l.s4 1934713408
        %v4384 = vunpack.c.0.s8 %v4383
        %v4385 = vlaneseq
        %v4386 = vshrl.u32 %v4385, 7
        %v4387 = vsub.s32 %v4384, %v4386
        %v4388 = vrot.slane %v4374, %v4387
        %v4389 = vcombine.low %v4324, %v4340
        %v4390 = vcombine.high %v4324, %v4340
        %v4392 = vunpack.c.l.s4 1934713408
        %v4393 = vunpack.c.0.s8 %v4392
        %v4394 = vlaneseq
        %v4395 = vshrl.u32 %v4394, 7
        %v4396 = vsub.s32 %v4393, %v4395
        %v4397 = vrot.slane %v4389, %v4396
        %v4399 = vunpack.c.l.s4 1934713408
        %v4400 = vunpack.c.0.s8 %v4399
        %v4401 = vlaneseq
        %v4402 = vshrl.u32 %v4401, 7
        %v4403 = vsub.s32 %v4400, %v4402
        %v4404 = vrot.slane %v4390, %v4403
        %v4405 = vcombine.low %v4349, %v4381
        %v4406 = vcombine.high %v4349, %v4381
        %v4407 = vcombine.low %v4356, %v4388
        %v4408 = vcombine.high %v4356, %v4388
        %v4409 = vcombine.low %v4365, %v4397
        %v4410 = vcombine.high %v4365, %v4397
        %v4411 = vcombine.low %v4372, %v4404
        %v4412 = vcombine.high %v4372, %v4404
        %4414 = vrot.lane.b32.xlu0 %v4095, 112
        %v4415 = vpop.permute.xlu0 %4414
        %4417 = vrot.lane.b32.xlu0 %v4095, 96
        %v4418 = vpop.permute.xlu0 %4417
        %4420 = vrot.lane.b32.xlu0 %v4095, 80
        %v4421 = vpop.permute.xlu0 %4420
        %4423 = vrot.lane.b32.xlu0 %v4095, 64
        %v4424 = vpop.permute.xlu0 %4423
        %4426 = vrot.lane.b32.xlu0 %v4095, 48
        %v4427 = vpop.permute.xlu0 %4426
        %4429 = vrot.lane.b32.xlu0 %v4095, 32
        %v4430 = vpop.permute.xlu0 %4429
        %4432 = vrot.lane.b32.xlu0 %v4095, 16
        %v4433 = vpop.permute.xlu0 %4432
        %4436 = vrot.lane.b32.xlu0 %v4096, 112
        %v4437 = vpop.permute.xlu0 %4436
        %4439 = vrot.lane.b32.xlu0 %v4096, 96
        %v4440 = vpop.permute.xlu0 %4439
        %4442 = vrot.lane.b32.xlu0 %v4096, 80
        %v4443 = vpop.permute.xlu0 %4442
        %4445 = vrot.lane.b32.xlu0 %v4096, 64
        %v4446 = vpop.permute.xlu0 %4445
        %4448 = vrot.lane.b32.xlu0 %v4096, 48
        %v4449 = vpop.permute.xlu0 %4448
        %4451 = vrot.lane.b32.xlu0 %v4096, 32
        %v4452 = vpop.permute.xlu0 %4451
        %4454 = vrot.lane.b32.xlu0 %v4096, 16
        %v4455 = vpop.permute.xlu0 %4454
        %v4457 = vcombine.low %v4095, %v4418
        %v4458 = vcombine.high %v4095, %v4418
        %v4460 = vunpack.c.l.s4 1983009808
        %v4461 = vunpack.c.0.s8 %v4460
        %v4462 = vlaneseq
        %v4463 = vshrl.u32 %v4462, 7
        %v4464 = vsub.s32 %v4461, %v4463
        %v4465 = vrot.slane %v4457, %v4464
        %v4467 = vunpack.c.l.s4 1983009808
        %v4468 = vunpack.c.0.s8 %v4467
        %v4469 = vlaneseq
        %v4470 = vshrl.u32 %v4469, 7
        %v4471 = vsub.s32 %v4468, %v4470
        %v4472 = vrot.slane %v4458, %v4471
        %v4473 = vcombine.low %v4415, %v4421
        %v4474 = vcombine.high %v4415, %v4421
        %v4476 = vunpack.c.l.s4 1983009808
        %v4477 = vunpack.c.0.s8 %v4476
        %v4478 = vlaneseq
        %v4479 = vshrl.u32 %v4478, 7
        %v4480 = vsub.s32 %v4477, %v4479
        %v4481 = vrot.slane %v4473, %v4480
        %v4483 = vunpack.c.l.s4 1983009808
        %v4484 = vunpack.c.0.s8 %v4483
        %v4485 = vlaneseq
        %v4486 = vshrl.u32 %v4485, 7
        %v4487 = vsub.s32 %v4484, %v4486
        %v4488 = vrot.slane %v4474, %v4487
        %v4489 = vcombine.low %v4424, %v4430
        %v4490 = vcombine.high %v4424, %v4430
        %v4492 = vunpack.c.l.s4 1983009808
        %v4493 = vunpack.c.0.s8 %v4492
        %v4494 = vlaneseq
        %v4495 = vshrl.u32 %v4494, 7
        %v4496 = vsub.s32 %v4493, %v4495
        %v4497 = vrot.slane %v4489, %v4496
        %v4499 = vunpack.c.l.s4 1983009808
        %v4500 = vunpack.c.0.s8 %v4499
        %v4501 = vlaneseq
        %v4502 = vshrl.u32 %v4501, 7
        %v4503 = vsub.s32 %v4500, %v4502
        %v4504 = vrot.slane %v4490, %v4503
        %v4505 = vcombine.low %v4427, %v4433
        %v4506 = vcombine.high %v4427, %v4433
        %v4508 = vunpack.c.l.s4 1983009808
        %v4509 = vunpack.c.0.s8 %v4508
        %v4510 = vlaneseq
        %v4511 = vshrl.u32 %v4510, 7
        %v4512 = vsub.s32 %v4509, %v4511
        %v4513 = vrot.slane %v4505, %v4512
        %v4515 = vunpack.c.l.s4 1983009808
        %v4516 = vunpack.c.0.s8 %v4515
        %v4517 = vlaneseq
        %v4518 = vshrl.u32 %v4517, 7
        %v4519 = vsub.s32 %v4516, %v4518
        %v4520 = vrot.slane %v4506, %v4519
        %v4521 = vcombine.low %v4465, %v4481
        %v4522 = vcombine.high %v4465, %v4481
        %v4524 = vunpack.c.l.s4 1934713408
        %v4525 = vunpack.c.0.s8 %v4524
        %v4526 = vlaneseq
        %v4527 = vshrl.u32 %v4526, 7
        %v4528 = vsub.s32 %v4525, %v4527
        %v4529 = vrot.slane %v4521, %v4528
        %v4531 = vunpack.c.l.s4 1934713408
        %v4532 = vunpack.c.0.s8 %v4531
        %v4533 = vlaneseq
        %v4534 = vshrl.u32 %v4533, 7
        %v4535 = vsub.s32 %v4532, %v4534
        %v4536 = vrot.slane %v4522, %v4535
        %v4537 = vcombine.low %v4472, %v4488
        %v4538 = vcombine.high %v4472, %v4488
        %v4540 = vunpack.c.l.s4 1934713408
        %v4541 = vunpack.c.0.s8 %v4540
        %v4542 = vlaneseq
        %v4543 = vshrl.u32 %v4542, 7
        %v4544 = vsub.s32 %v4541, %v4543
        %v4545 = vrot.slane %v4537, %v4544
        %v4547 = vunpack.c.l.s4 1934713408
        %v4548 = vunpack.c.0.s8 %v4547
        %v4549 = vlaneseq
        %v4550 = vshrl.u32 %v4549, 7
        %v4551 = vsub.s32 %v4548, %v4550
        %v4552 = vrot.slane %v4538, %v4551
        %v4553 = vcombine.low %v4497, %v4513
        %v4554 = vcombine.high %v4497, %v4513
        %v4556 = vunpack.c.l.s4 1934713408
        %v4557 = vunpack.c.0.s8 %v4556
        %v4558 = vlaneseq
        %v4559 = vshrl.u32 %v4558, 7
        %v4560 = vsub.s32 %v4557, %v4559
        %v4561 = vrot.slane %v4553, %v4560
        %v4563 = vunpack.c.l.s4 1934713408
        %v4564 = vunpack.c.0.s8 %v4563
        %v4565 = vlaneseq
        %v4566 = vshrl.u32 %v4565, 7
        %v4567 = vsub.s32 %v4564, %v4566
        %v4568 = vrot.slane %v4554, %v4567
        %v4569 = vcombine.low %v4504, %v4520
        %v4570 = vcombine.high %v4504, %v4520
        %v4572 = vunpack.c.l.s4 1934713408
        %v4573 = vunpack.c.0.s8 %v4572
        %v4574 = vlaneseq
        %v4575 = vshrl.u32 %v4574, 7
        %v4576 = vsub.s32 %v4573, %v4575
        %v4577 = vrot.slane %v4569, %v4576
        %v4579 = vunpack.c.l.s4 1934713408
        %v4580 = vunpack.c.0.s8 %v4579
        %v4581 = vlaneseq
        %v4582 = vshrl.u32 %v4581, 7
        %v4583 = vsub.s32 %v4580, %v4582
        %v4584 = vrot.slane %v4570, %v4583
        %v4585 = vcombine.low %v4529, %v4561
        %v4586 = vcombine.high %v4529, %v4561
        %v4587 = vcombine.low %v4536, %v4568
        %v4588 = vcombine.high %v4536, %v4568
        %v4589 = vcombine.low %v4545, %v4577
        %v4590 = vcombine.high %v4545, %v4577
        %v4591 = vcombine.low %v4552, %v4584
        %v4592 = vcombine.high %v4552, %v4584
        %v4593 = vcombine.low %v4096, %v4440
        %v4594 = vcombine.high %v4096, %v4440
        %v4596 = vunpack.c.l.s4 1983009808
        %v4597 = vunpack.c.0.s8 %v4596
        %v4598 = vlaneseq
        %v4599 = vshrl.u32 %v4598, 7
        %v4600 = vsub.s32 %v4597, %v4599
        %v4601 = vrot.slane %v4593, %v4600
        %v4603 = vunpack.c.l.s4 1983009808
        %v4604 = vunpack.c.0.s8 %v4603
        %v4605 = vlaneseq
        %v4606 = vshrl.u32 %v4605, 7
        %v4607 = vsub.s32 %v4604, %v4606
        %v4608 = vrot.slane %v4594, %v4607
        %v4609 = vcombine.low %v4437, %v4443
        %v4610 = vcombine.high %v4437, %v4443
        %v4612 = vunpack.c.l.s4 1983009808
        %v4613 = vunpack.c.0.s8 %v4612
        %v4614 = vlaneseq
        %v4615 = vshrl.u32 %v4614, 7
        %v4616 = vsub.s32 %v4613, %v4615
        %v4617 = vrot.slane %v4609, %v4616
        %v4619 = vunpack.c.l.s4 1983009808
        %v4620 = vunpack.c.0.s8 %v4619
        %v4621 = vlaneseq
        %v4622 = vshrl.u32 %v4621, 7
        %v4623 = vsub.s32 %v4620, %v4622
        %v4624 = vrot.slane %v4610, %v4623
        %v4625 = vcombine.low %v4446, %v4452
        %v4626 = vcombine.high %v4446, %v4452
        %v4628 = vunpack.c.l.s4 1983009808
        %v4629 = vunpack.c.0.s8 %v4628
        %v4630 = vlaneseq
        %v4631 = vshrl.u32 %v4630, 7
        %v4632 = vsub.s32 %v4629, %v4631
        %v4633 = vrot.slane %v4625, %v4632
        %v4635 = vunpack.c.l.s4 1983009808
        %v4636 = vunpack.c.0.s8 %v4635
        %v4637 = vlaneseq
        %v4638 = vshrl.u32 %v4637, 7
        %v4639 = vsub.s32 %v4636, %v4638
        %v4640 = vrot.slane %v4626, %v4639
        %v4641 = vcombine.low %v4449, %v4455
        %v4642 = vcombine.high %v4449, %v4455
        %v4644 = vunpack.c.l.s4 1983009808
        %v4645 = vunpack.c.0.s8 %v4644
        %v4646 = vlaneseq
        %v4647 = vshrl.u32 %v4646, 7
        %v4648 = vsub.s32 %v4645, %v4647
        %v4649 = vrot.slane %v4641, %v4648
        %v4651 = vunpack.c.l.s4 1983009808
        %v4652 = vunpack.c.0.s8 %v4651
        %v4653 = vlaneseq
        %v4654 = vshrl.u32 %v4653, 7
        %v4655 = vsub.s32 %v4652, %v4654
        %v4656 = vrot.slane %v4642, %v4655
        %v4657 = vcombine.low %v4601, %v4617
        %v4658 = vcombine.high %v4601, %v4617
        %v4660 = vunpack.c.l.s4 1934713408
        %v4661 = vunpack.c.0.s8 %v4660
        %v4662 = vlaneseq
        %v4663 = vshrl.u32 %v4662, 7
        %v4664 = vsub.s32 %v4661, %v4663
        %v4665 = vrot.slane %v4657, %v4664
        %v4667 = vunpack.c.l.s4 1934713408
        %v4668 = vunpack.c.0.s8 %v4667
        %v4669 = vlaneseq
        %v4670 = vshrl.u32 %v4669, 7
        %v4671 = vsub.s32 %v4668, %v4670
        %v4672 = vrot.slane %v4658, %v4671
        %v4673 = vcombine.low %v4608, %v4624
        %v4674 = vcombine.high %v4608, %v4624
        %v4676 = vunpack.c.l.s4 1934713408
        %v4677 = vunpack.c.0.s8 %v4676
        %v4678 = vlaneseq
        %v4679 = vshrl.u32 %v4678, 7
        %v4680 = vsub.s32 %v4677, %v4679
        %v4681 = vrot.slane %v4673, %v4680
        %v4683 = vunpack.c.l.s4 1934713408
        %v4684 = vunpack.c.0.s8 %v4683
        %v4685 = vlaneseq
        %v4686 = vshrl.u32 %v4685, 7
        %v4687 = vsub.s32 %v4684, %v4686
        %v4688 = vrot.slane %v4674, %v4687
        %v4689 = vcombine.low %v4633, %v4649
        %v4690 = vcombine.high %v4633, %v4649
        %v4692 = vunpack.c.l.s4 1934713408
        %v4693 = vunpack.c.0.s8 %v4692
        %v4694 = vlaneseq
        %v4695 = vshrl.u32 %v4694, 7
        %v4696 = vsub.s32 %v4693, %v4695
        %v4697 = vrot.slane %v4689, %v4696
        %v4699 = vunpack.c.l.s4 1934713408
        %v4700 = vunpack.c.0.s8 %v4699
        %v4701 = vlaneseq
        %v4702 = vshrl.u32 %v4701, 7
        %v4703 = vsub.s32 %v4700, %v4702
        %v4704 = vrot.slane %v4690, %v4703
        %v4705 = vcombine.low %v4640, %v4656
        %v4706 = vcombine.high %v4640, %v4656
        %v4708 = vunpack.c.l.s4 1934713408
        %v4709 = vunpack.c.0.s8 %v4708
        %v4710 = vlaneseq
        %v4711 = vshrl.u32 %v4710, 7
        %v4712 = vsub.s32 %v4709, %v4711
        %v4713 = vrot.slane %v4705, %v4712
        %v4715 = vunpack.c.l.s4 1934713408
        %v4716 = vunpack.c.0.s8 %v4715
        %v4717 = vlaneseq
        %v4718 = vshrl.u32 %v4717, 7
        %v4719 = vsub.s32 %v4716, %v4718
        %v4720 = vrot.slane %v4706, %v4719
        %v4721 = vcombine.low %v4665, %v4697
        %v4722 = vcombine.high %v4665, %v4697
        %v4723 = vcombine.low %v4672, %v4704
        %v4724 = vcombine.high %v4672, %v4704
        %v4725 = vcombine.low %v4681, %v4713
        %v4726 = vcombine.high %v4681, %v4713
        %v4727 = vcombine.low %v4688, %v4720
        %v4728 = vcombine.high %v4688, %v4720
        %v4730 = vsel %vm1723, %v4269, 0
        %v4733 = vsel %vm1723, %v4405, 0
        %4735 = vmatprep.subr.mxu0 0.0
        %4736 = vmatpush1.msra.mxu0 0.0
        %4737 = vmatprep.subr.mxu0 0.0
        %4738 = vmatpush1.msra.mxu0 0.0
        %4739 = vmatprep.subr.mxu0 0.0
        %4740 = vmatpush1.msra.mxu0 0.0
        %4741 = vmatprep.subr.mxu0 0.0
        %4742 = vmatpush1.msra.mxu0 0.0
        %4743 = vmatprep.subr.mxu0 0.0
        %4744 = vmatpush1.msra.mxu0 0.0
        %4745 = vmatprep.subr.mxu0 0.0
        %4746 = vmatpush1.msra.mxu0 0.0
        %4747 = vmatprep.subr.mxu0 0.0
        %4748 = vmatpush1.msra.mxu0 0.0
        %4749 = vmatprep.subr.mxu0 0.0
        %4750 = vmatpush1.msra.mxu0 0.0
        %4751 = vmatprep.subr.mxu0 0.0
        %4752 = vmatpush1.msra.mxu0 0.0
        %4753 = vmatprep.subr.mxu0 0.0
        %4754 = vmatpush1.msra.mxu0 0.0
        %4755 = vmatprep.subr.mxu0 0.0
        %4756 = vmatpush1.msra.mxu0 0.0
        %4757 = vmatprep.subr.mxu0 0.0
        %4758 = vmatpush1.msra.mxu0 0.0
        %4759 = vmatprep.subr.mxu0 0.0
        %4760 = vmatpush1.msra.mxu0 0.0
        %4761 = vmatprep.subr.mxu0 0.0
        %4762 = vmatpush1.msra.mxu0 0.0
        %4763 = vmatprep.subr.mxu0 0.0
        %4764 = vmatpush1.msra.mxu0 %v4721
        %4765 = vmatprep.subr.mxu0 0.0
        %4766 = vmatpush1.msra.mxu0 %v4585
        %4767 = vmatprep.subr.mxu0 0.0
        %4768 = vmatpush2.msra.mxu0 0.0
        %4769 = vmatprep.subr.mxu0 0.0
        %4770 = vmatpush2.msra.mxu0 0.0
        %4771 = vmatprep.subr.mxu0 0.0
        %4772 = vmatpush2.msra.mxu0 0.0
        %4773 = vmatprep.subr.mxu0 0.0
        %4774 = vmatpush2.msra.mxu0 0.0
        %4775 = vmatprep.subr.mxu0 0.0
        %4776 = vmatpush2.msra.mxu0 0.0
        %4777 = vmatprep.subr.mxu0 0.0
        %4778 = vmatpush2.msra.mxu0 0.0
        %4779 = vmatprep.subr.mxu0 0.0
        %4780 = vmatpush2.msra.mxu0 0.0
        %4781 = vmatprep.subr.mxu0 0.0
        %4782 = vmatpush2.msra.mxu0 0.0
        %4783 = vmatprep.subr.mxu0 0.0
        %4784 = vmatpush2.msra.mxu0 0.0
        %4785 = vmatprep.subr.mxu0 0.0
        %4786 = vmatpush2.msra.mxu0 0.0
        %4787 = vmatprep.subr.mxu0 0.0
        %4788 = vmatpush2.msra.mxu0 0.0
        %4789 = vmatprep.subr.mxu0 0.0
        %4790 = vmatpush2.msra.mxu0 0.0
        %4791 = vmatprep.subr.mxu0 0.0
        %4792 = vmatpush2.msra.mxu0 0.0
        %4793 = vmatprep.subr.mxu0 0.0
        %4794 = vmatpush2.msra.mxu0 0.0
        %4795 = vmatprep.subr.mxu0 0.0
        %4796 = vmatpush2.msra.mxu0 0.0
        %4797 = vmatprep.subr.mxu0 0.0
        %4798 = vmatpush2.msra.mxu0 0.0
        %4799 = vmatprep.mubr.f32.mxu0 0.0
        %4800 = vmatmul.mubr.f32.gmra.mxu0 %v4730
        %v4801 = vpop.f32.mrf.mxu0
        %v4802 = vadd.f32 0.0, %v4801
        %v4803 = vpop.f32.mrf.mxu0
        %4804 = vmatprep.mubr.f32.mxu0 0.0
        %4805 = vmatmul.mubr.f32.gmra.mxu0 %v4733
        %v4806 = vpop.f32.mrf.mxu0
        %v4807 = vadd.f32 0.0, %v4806
        %v4808 = vpop.f32.mrf.mxu0
        %4809 = vdwg.mxu0
        %v4811 = vsel %vm1723, %v4270, 0
        %v4814 = vsel %vm1723, %v4406, 0
        %4816 = vmatprep.subr.mxu0 0.0
        %4817 = vmatpush1.msra.mxu0 0.0
        %4818 = vmatprep.subr.mxu0 0.0
        %4819 = vmatpush1.msra.mxu0 0.0
        %4820 = vmatprep.subr.mxu0 0.0
        %4821 = vmatpush1.msra.mxu0 0.0
        %4822 = vmatprep.subr.mxu0 0.0
        %4823 = vmatpush1.msra.mxu0 0.0
        %4824 = vmatprep.subr.mxu0 0.0
        %4825 = vmatpush1.msra.mxu0 0.0
        %4826 = vmatprep.subr.mxu0 0.0
        %4827 = vmatpush1.msra.mxu0 0.0
        %4828 = vmatprep.subr.mxu0 0.0
        %4829 = vmatpush1.msra.mxu0 0.0
        %4830 = vmatprep.subr.mxu0 0.0
        %4831 = vmatpush1.msra.mxu0 0.0
        %4832 = vmatprep.subr.mxu0 0.0
        %4833 = vmatpush1.msra.mxu0 0.0
        %4834 = vmatprep.subr.mxu0 0.0
        %4835 = vmatpush1.msra.mxu0 0.0
        %4836 = vmatprep.subr.mxu0 0.0
        %4837 = vmatpush1.msra.mxu0 0.0
        %4838 = vmatprep.subr.mxu0 0.0
        %4839 = vmatpush1.msra.mxu0 0.0
        %4840 = vmatprep.subr.mxu0 0.0
        %4841 = vmatpush1.msra.mxu0 0.0
        %4842 = vmatprep.subr.mxu0 0.0
        %4843 = vmatpush1.msra.mxu0 0.0
        %4844 = vmatprep.subr.mxu0 0.0
        %4845 = vmatpush1.msra.mxu0 %v4722
        %4846 = vmatprep.subr.mxu0 0.0
        %4847 = vmatpush1.msra.mxu0 %v4586
        %4848 = vmatprep.subr.mxu0 0.0
        %4849 = vmatpush2.msra.mxu0 0.0
        %4850 = vmatprep.subr.mxu0 0.0
        %4851 = vmatpush2.msra.mxu0 0.0
        %4852 = vmatprep.subr.mxu0 0.0
        %4853 = vmatpush2.msra.mxu0 0.0
        %4854 = vmatprep.subr.mxu0 0.0
        %4855 = vmatpush2.msra.mxu0 0.0
        %4856 = vmatprep.subr.mxu0 0.0
        %4857 = vmatpush2.msra.mxu0 0.0
        %4858 = vmatprep.subr.mxu0 0.0
        %4859 = vmatpush2.msra.mxu0 0.0
        %4860 = vmatprep.subr.mxu0 0.0
        %4861 = vmatpush2.msra.mxu0 0.0
        %4862 = vmatprep.subr.mxu0 0.0
        %4863 = vmatpush2.msra.mxu0 0.0
        %4864 = vmatprep.subr.mxu0 0.0
        %4865 = vmatpush2.msra.mxu0 0.0
        %4866 = vmatprep.subr.mxu0 0.0
        %4867 = vmatpush2.msra.mxu0 0.0
        %4868 = vmatprep.subr.mxu0 0.0
        %4869 = vmatpush2.msra.mxu0 0.0
        %4870 = vmatprep.subr.mxu0 0.0
        %4871 = vmatpush2.msra.mxu0 0.0
        %4872 = vmatprep.subr.mxu0 0.0
        %4873 = vmatpush2.msra.mxu0 0.0
        %4874 = vmatprep.subr.mxu0 0.0
        %4875 = vmatpush2.msra.mxu0 0.0
        %4876 = vmatprep.subr.mxu0 0.0
        %4877 = vmatpush2.msra.mxu0 0.0
        %4878 = vmatprep.subr.mxu0 0.0
        %4879 = vmatpush2.msra.mxu0 0.0
        %4880 = vmatprep.mubr.f32.mxu0 0.0
        %4881 = vmatmul.mubr.f32.gmra.mxu0 %v4811
        %v4882 = vpop.f32.mrf.mxu0
        %v4883 = vadd.f32 0.0, %v4882
        %v4884 = vpop.f32.mrf.mxu0
        %4885 = vmatprep.mubr.f32.mxu0 0.0
        %4886 = vmatmul.mubr.f32.gmra.mxu0 %v4814
        %v4887 = vpop.f32.mrf.mxu0
        %v4888 = vadd.f32 0.0, %v4887
        %v4889 = vpop.f32.mrf.mxu0
        %4890 = vdwg.mxu0
        %v4892 = vsel %vm1723, %v4271, 0
        %v4895 = vsel %vm1723, %v4407, 0
        %4897 = vmatprep.subr.mxu0 0.0
        %4898 = vmatpush1.msra.mxu0 0.0
        %4899 = vmatprep.subr.mxu0 0.0
        %4900 = vmatpush1.msra.mxu0 0.0
        %4901 = vmatprep.subr.mxu0 0.0
        %4902 = vmatpush1.msra.mxu0 0.0
        %4903 = vmatprep.subr.mxu0 0.0
        %4904 = vmatpush1.msra.mxu0 0.0
        %4905 = vmatprep.subr.mxu0 0.0
        %4906 = vmatpush1.msra.mxu0 0.0
        %4907 = vmatprep.subr.mxu0 0.0
        %4908 = vmatpush1.msra.mxu0 0.0
        %4909 = vmatprep.subr.mxu0 0.0
        %4910 = vmatpush1.msra.mxu0 0.0
        %4911 = vmatprep.subr.mxu0 0.0
        %4912 = vmatpush1.msra.mxu0 0.0
        %4913 = vmatprep.subr.mxu0 0.0
        %4914 = vmatpush1.msra.mxu0 0.0
        %4915 = vmatprep.subr.mxu0 0.0
        %4916 = vmatpush1.msra.mxu0 0.0
        %4917 = vmatprep.subr.mxu0 0.0
        %4918 = vmatpush1.msra.mxu0 0.0
        %4919 = vmatprep.subr.mxu0 0.0
        %4920 = vmatpush1.msra.mxu0 0.0
        %4921 = vmatprep.subr.mxu0 0.0
        %4922 = vmatpush1.msra.mxu0 0.0
        %4923 = vmatprep.subr.mxu0 0.0
        %4924 = vmatpush1.msra.mxu0 0.0
        %4925 = vmatprep.subr.mxu0 0.0
        %4926 = vmatpush1.msra.mxu0 %v4723
        %4927 = vmatprep.subr.mxu0 0.0
        %4928 = vmatpush1.msra.mxu0 %v4587
        %4929 = vmatprep.subr.mxu0 0.0
        %4930 = vmatpush2.msra.mxu0 0.0
        %4931 = vmatprep.subr.mxu0 0.0
        %4932 = vmatpush2.msra.mxu0 0.0
        %4933 = vmatprep.subr.mxu0 0.0
        %4934 = vmatpush2.msra.mxu0 0.0
        %4935 = vmatprep.subr.mxu0 0.0
        %4936 = vmatpush2.msra.mxu0 0.0
        %4937 = vmatprep.subr.mxu0 0.0
        %4938 = vmatpush2.msra.mxu0 0.0
        %4939 = vmatprep.subr.mxu0 0.0
        %4940 = vmatpush2.msra.mxu0 0.0
        %4941 = vmatprep.subr.mxu0 0.0
        %4942 = vmatpush2.msra.mxu0 0.0
        %4943 = vmatprep.subr.mxu0 0.0
        %4944 = vmatpush2.msra.mxu0 0.0
        %4945 = vmatprep.subr.mxu0 0.0
        %4946 = vmatpush2.msra.mxu0 0.0
        %4947 = vmatprep.subr.mxu0 0.0
        %4948 = vmatpush2.msra.mxu0 0.0
        %4949 = vmatprep.subr.mxu0 0.0
        %4950 = vmatpush2.msra.mxu0 0.0
        %4951 = vmatprep.subr.mxu0 0.0
        %4952 = vmatpush2.msra.mxu0 0.0
        %4953 = vmatprep.subr.mxu0 0.0
        %4954 = vmatpush2.msra.mxu0 0.0
        %4955 = vmatprep.subr.mxu0 0.0
        %4956 = vmatpush2.msra.mxu0 0.0
        %4957 = vmatprep.subr.mxu0 0.0
        %4958 = vmatpush2.msra.mxu0 0.0
        %4959 = vmatprep.subr.mxu0 0.0
        %4960 = vmatpush2.msra.mxu0 0.0
        %4961 = vmatprep.mubr.f32.mxu0 0.0
        %4962 = vmatmul.mubr.f32.gmra.mxu0 %v4892
        %v4963 = vpop.f32.mrf.mxu0
        %v4964 = vadd.f32 0.0, %v4963
        %v4965 = vpop.f32.mrf.mxu0
        %4966 = vmatprep.mubr.f32.mxu0 0.0
        %4967 = vmatmul.mubr.f32.gmra.mxu0 %v4895
        %v4968 = vpop.f32.mrf.mxu0
        %v4969 = vadd.f32 0.0, %v4968
        %v4970 = vpop.f32.mrf.mxu0
        %4971 = vdwg.mxu0
        %v4973 = vsel %vm1723, %v4272, 0
        %v4976 = vsel %vm1723, %v4408, 0
        %4978 = vmatprep.subr.mxu0 0.0
        %4979 = vmatpush1.msra.mxu0 0.0
        %4980 = vmatprep.subr.mxu0 0.0
        %4981 = vmatpush1.msra.mxu0 0.0
        %4982 = vmatprep.subr.mxu0 0.0
        %4983 = vmatpush1.msra.mxu0 0.0
        %4984 = vmatprep.subr.mxu0 0.0
        %4985 = vmatpush1.msra.mxu0 0.0
        %4986 = vmatprep.subr.mxu0 0.0
        %4987 = vmatpush1.msra.mxu0 0.0
        %4988 = vmatprep.subr.mxu0 0.0
        %4989 = vmatpush1.msra.mxu0 0.0
        %4990 = vmatprep.subr.mxu0 0.0
        %4991 = vmatpush1.msra.mxu0 0.0
        %4992 = vmatprep.subr.mxu0 0.0
        %4993 = vmatpush1.msra.mxu0 0.0
        %4994 = vmatprep.subr.mxu0 0.0
        %4995 = vmatpush1.msra.mxu0 0.0
        %4996 = vmatprep.subr.mxu0 0.0
        %4997 = vmatpush1.msra.mxu0 0.0
        %4998 = vmatprep.subr.mxu0 0.0
        %4999 = vmatpush1.msra.mxu0 0.0
        %5000 = vmatprep.subr.mxu0 0.0
        %5001 = vmatpush1.msra.mxu0 0.0
        %5002 = vmatprep.subr.mxu0 0.0
        %5003 = vmatpush1.msra.mxu0 0.0
        %5004 = vmatprep.subr.mxu0 0.0
        %5005 = vmatpush1.msra.mxu0 0.0
        %5006 = vmatprep.subr.mxu0 0.0
        %5007 = vmatpush1.msra.mxu0 %v4724
        %5008 = vmatprep.subr.mxu0 0.0
        %5009 = vmatpush1.msra.mxu0 %v4588
        %5010 = vmatprep.subr.mxu0 0.0
        %5011 = vmatpush2.msra.mxu0 0.0
        %5012 = vmatprep.subr.mxu0 0.0
        %5013 = vmatpush2.msra.mxu0 0.0
        %5014 = vmatprep.subr.mxu0 0.0
        %5015 = vmatpush2.msra.mxu0 0.0
        %5016 = vmatprep.subr.mxu0 0.0
        %5017 = vmatpush2.msra.mxu0 0.0
        %5018 = vmatprep.subr.mxu0 0.0
        %5019 = vmatpush2.msra.mxu0 0.0
        %5020 = vmatprep.subr.mxu0 0.0
        %5021 = vmatpush2.msra.mxu0 0.0
        %5022 = vmatprep.subr.mxu0 0.0
        %5023 = vmatpush2.msra.mxu0 0.0
        %5024 = vmatprep.subr.mxu0 0.0
        %5025 = vmatpush2.msra.mxu0 0.0
        %5026 = vmatprep.subr.mxu0 0.0
        %5027 = vmatpush2.msra.mxu0 0.0
        %5028 = vmatprep.subr.mxu0 0.0
        %5029 = vmatpush2.msra.mxu0 0.0
        %5030 = vmatprep.subr.mxu0 0.0
        %5031 = vmatpush2.msra.mxu0 0.0
        %5032 = vmatprep.subr.mxu0 0.0
        %5033 = vmatpush2.msra.mxu0 0.0
        %5034 = vmatprep.subr.mxu0 0.0
        %5035 = vmatpush2.msra.mxu0 0.0
        %5036 = vmatprep.subr.mxu0 0.0
        %5037 = vmatpush2.msra.mxu0 0.0
        %5038 = vmatprep.subr.mxu0 0.0
        %5039 = vmatpush2.msra.mxu0 0.0
        %5040 = vmatprep.subr.mxu0 0.0
        %5041 = vmatpush2.msra.mxu0 0.0
        %5042 = vmatprep.mubr.f32.mxu0 0.0
        %5043 = vmatmul.mubr.f32.gmra.mxu0 %v4973
        %v5044 = vpop.f32.mrf.mxu0
        %v5045 = vadd.f32 0.0, %v5044
        %v5046 = vpop.f32.mrf.mxu0
        %5047 = vmatprep.mubr.f32.mxu0 0.0
        %5048 = vmatmul.mubr.f32.gmra.mxu0 %v4976
        %v5049 = vpop.f32.mrf.mxu0
        %v5050 = vadd.f32 0.0, %v5049
        %v5051 = vpop.f32.mrf.mxu0
        %5052 = vdwg.mxu0
        %v5054 = vsel %vm1723, %v4273, 0
        %v5057 = vsel %vm1723, %v4409, 0
        %5059 = vmatprep.subr.mxu0 0.0
        %5060 = vmatpush1.msra.mxu0 0.0
        %5061 = vmatprep.subr.mxu0 0.0
        %5062 = vmatpush1.msra.mxu0 0.0
        %5063 = vmatprep.subr.mxu0 0.0
        %5064 = vmatpush1.msra.mxu0 0.0
        %5065 = vmatprep.subr.mxu0 0.0
        %5066 = vmatpush1.msra.mxu0 0.0
        %5067 = vmatprep.subr.mxu0 0.0
        %5068 = vmatpush1.msra.mxu0 0.0
        %5069 = vmatprep.subr.mxu0 0.0
        %5070 = vmatpush1.msra.mxu0 0.0
        %5071 = vmatprep.subr.mxu0 0.0
        %5072 = vmatpush1.msra.mxu0 0.0
        %5073 = vmatprep.subr.mxu0 0.0
        %5074 = vmatpush1.msra.mxu0 0.0
        %5075 = vmatprep.subr.mxu0 0.0
        %5076 = vmatpush1.msra.mxu0 0.0
        %5077 = vmatprep.subr.mxu0 0.0
        %5078 = vmatpush1.msra.mxu0 0.0
        %5079 = vmatprep.subr.mxu0 0.0
        %5080 = vmatpush1.msra.mxu0 0.0
        %5081 = vmatprep.subr.mxu0 0.0
        %5082 = vmatpush1.msra.mxu0 0.0
        %5083 = vmatprep.subr.mxu0 0.0
        %5084 = vmatpush1.msra.mxu0 0.0
        %5085 = vmatprep.subr.mxu0 0.0
        %5086 = vmatpush1.msra.mxu0 0.0
        %5087 = vmatprep.subr.mxu0 0.0
        %5088 = vmatpush1.msra.mxu0 %v4725
        %5089 = vmatprep.subr.mxu0 0.0
        %5090 = vmatpush1.msra.mxu0 %v4589
        %5091 = vmatprep.subr.mxu0 0.0
        %5092 = vmatpush2.msra.mxu0 0.0
        %5093 = vmatprep.subr.mxu0 0.0
        %5094 = vmatpush2.msra.mxu0 0.0
        %5095 = vmatprep.subr.mxu0 0.0
        %5096 = vmatpush2.msra.mxu0 0.0
        %5097 = vmatprep.subr.mxu0 0.0
        %5098 = vmatpush2.msra.mxu0 0.0
        %5099 = vmatprep.subr.mxu0 0.0
        %5100 = vmatpush2.msra.mxu0 0.0
        %5101 = vmatprep.subr.mxu0 0.0
        %5102 = vmatpush2.msra.mxu0 0.0
        %5103 = vmatprep.subr.mxu0 0.0
        %5104 = vmatpush2.msra.mxu0 0.0
        %5105 = vmatprep.subr.mxu0 0.0
        %5106 = vmatpush2.msra.mxu0 0.0
        %5107 = vmatprep.subr.mxu0 0.0
        %5108 = vmatpush2.msra.mxu0 0.0
        %5109 = vmatprep.subr.mxu0 0.0
        %5110 = vmatpush2.msra.mxu0 0.0
        %5111 = vmatprep.subr.mxu0 0.0
        %5112 = vmatpush2.msra.mxu0 0.0
        %5113 = vmatprep.subr.mxu0 0.0
        %5114 = vmatpush2.msra.mxu0 0.0
        %5115 = vmatprep.subr.mxu0 0.0
        %5116 = vmatpush2.msra.mxu0 0.0
        %5117 = vmatprep.subr.mxu0 0.0
        %5118 = vmatpush2.msra.mxu0 0.0
        %5119 = vmatprep.subr.mxu0 0.0
        %5120 = vmatpush2.msra.mxu0 0.0
        %5121 = vmatprep.subr.mxu0 0.0
        %5122 = vmatpush2.msra.mxu0 0.0
        %5123 = vmatprep.mubr.f32.mxu0 0.0
        %5124 = vmatmul.mubr.f32.gmra.mxu0 %v5054
        %v5125 = vpop.f32.mrf.mxu0
        %v5126 = vadd.f32 0.0, %v5125
        %v5127 = vpop.f32.mrf.mxu0
        %5128 = vmatprep.mubr.f32.mxu0 0.0
        %5129 = vmatmul.mubr.f32.gmra.mxu0 %v5057
        %v5130 = vpop.f32.mrf.mxu0
        %v5131 = vadd.f32 0.0, %v5130
        %v5132 = vpop.f32.mrf.mxu0
        %5133 = vdwg.mxu0
        %v5135 = vsel %vm1723, %v4274, 0
        %v5138 = vsel %vm1723, %v4410, 0
        %5140 = vmatprep.subr.mxu0 0.0
        %5141 = vmatpush1.msra.mxu0 0.0
        %5142 = vmatprep.subr.mxu0 0.0
        %5143 = vmatpush1.msra.mxu0 0.0
        %5144 = vmatprep.subr.mxu0 0.0
        %5145 = vmatpush1.msra.mxu0 0.0
        %5146 = vmatprep.subr.mxu0 0.0
        %5147 = vmatpush1.msra.mxu0 0.0
        %5148 = vmatprep.subr.mxu0 0.0
        %5149 = vmatpush1.msra.mxu0 0.0
        %5150 = vmatprep.subr.mxu0 0.0
        %5151 = vmatpush1.msra.mxu0 0.0
        %5152 = vmatprep.subr.mxu0 0.0
        %5153 = vmatpush1.msra.mxu0 0.0
        %5154 = vmatprep.subr.mxu0 0.0
        %5155 = vmatpush1.msra.mxu0 0.0
        %5156 = vmatprep.subr.mxu0 0.0
        %5157 = vmatpush1.msra.mxu0 0.0
        %5158 = vmatprep.subr.mxu0 0.0
        %5159 = vmatpush1.msra.mxu0 0.0
        %5160 = vmatprep.subr.mxu0 0.0
        %5161 = vmatpush1.msra.mxu0 0.0
        %5162 = vmatprep.subr.mxu0 0.0
        %5163 = vmatpush1.msra.mxu0 0.0
        %5164 = vmatprep.subr.mxu0 0.0
        %5165 = vmatpush1.msra.mxu0 0.0
        %5166 = vmatprep.subr.mxu0 0.0
        %5167 = vmatpush1.msra.mxu0 0.0
        %5168 = vmatprep.subr.mxu0 0.0
        %5169 = vmatpush1.msra.mxu0 %v4726
        %5170 = vmatprep.subr.mxu0 0.0
        %5171 = vmatpush1.msra.mxu0 %v4590
        %5172 = vmatprep.subr.mxu0 0.0
        %5173 = vmatpush2.msra.mxu0 0.0
        %5174 = vmatprep.subr.mxu0 0.0
        %5175 = vmatpush2.msra.mxu0 0.0
        %5176 = vmatprep.subr.mxu0 0.0
        %5177 = vmatpush2.msra.mxu0 0.0
        %5178 = vmatprep.subr.mxu0 0.0
        %5179 = vmatpush2.msra.mxu0 0.0
        %5180 = vmatprep.subr.mxu0 0.0
        %5181 = vmatpush2.msra.mxu0 0.0
        %5182 = vmatprep.subr.mxu0 0.0
        %5183 = vmatpush2.msra.mxu0 0.0
        %5184 = vmatprep.subr.mxu0 0.0
        %5185 = vmatpush2.msra.mxu0 0.0
        %5186 = vmatprep.subr.mxu0 0.0
        %5187 = vmatpush2.msra.mxu0 0.0
        %5188 = vmatprep.subr.mxu0 0.0
        %5189 = vmatpush2.msra.mxu0 0.0
        %5190 = vmatprep.subr.mxu0 0.0
        %5191 = vmatpush2.msra.mxu0 0.0
        %5192 = vmatprep.subr.mxu0 0.0
        %5193 = vmatpush2.msra.mxu0 0.0
        %5194 = vmatprep.subr.mxu0 0.0
        %5195 = vmatpush2.msra.mxu0 0.0
        %5196 = vmatprep.subr.mxu0 0.0
        %5197 = vmatpush2.msra.mxu0 0.0
        %5198 = vmatprep.subr.mxu0 0.0
        %5199 = vmatpush2.msra.mxu0 0.0
        %5200 = vmatprep.subr.mxu0 0.0
        %5201 = vmatpush2.msra.mxu0 0.0
        %5202 = vmatprep.subr.mxu0 0.0
        %5203 = vmatpush2.msra.mxu0 0.0
        %5204 = vmatprep.mubr.f32.mxu0 0.0
        %5205 = vmatmul.mubr.f32.gmra.mxu0 %v5135
        %v5206 = vpop.f32.mrf.mxu0
        %v5207 = vadd.f32 0.0, %v5206
        %v5208 = vpop.f32.mrf.mxu0
        %5209 = vmatprep.mubr.f32.mxu0 0.0
        %5210 = vmatmul.mubr.f32.gmra.mxu0 %v5138
        %v5211 = vpop.f32.mrf.mxu0
        %v5212 = vadd.f32 0.0, %v5211
        %v5213 = vpop.f32.mrf.mxu0
        %5214 = vdwg.mxu0
        %v5216 = vsel %vm1723, %v4275, 0
        %v5219 = vsel %vm1723, %v4411, 0
        %5221 = vmatprep.subr.mxu0 0.0
        %5222 = vmatpush1.msra.mxu0 0.0
        %5223 = vmatprep.subr.mxu0 0.0
        %5224 = vmatpush1.msra.mxu0 0.0
        %5225 = vmatprep.subr.mxu0 0.0
        %5226 = vmatpush1.msra.mxu0 0.0
        %5227 = vmatprep.subr.mxu0 0.0
        %5228 = vmatpush1.msra.mxu0 0.0
        %5229 = vmatprep.subr.mxu0 0.0
        %5230 = vmatpush1.msra.mxu0 0.0
        %5231 = vmatprep.subr.mxu0 0.0
        %5232 = vmatpush1.msra.mxu0 0.0
        %5233 = vmatprep.subr.mxu0 0.0
        %5234 = vmatpush1.msra.mxu0 0.0
        %5235 = vmatprep.subr.mxu0 0.0
        %5236 = vmatpush1.msra.mxu0 0.0
        %5237 = vmatprep.subr.mxu0 0.0
        %5238 = vmatpush1.msra.mxu0 0.0
        %5239 = vmatprep.subr.mxu0 0.0
        %5240 = vmatpush1.msra.mxu0 0.0
        %5241 = vmatprep.subr.mxu0 0.0
        %5242 = vmatpush1.msra.mxu0 0.0
        %5243 = vmatprep.subr.mxu0 0.0
        %5244 = vmatpush1.msra.mxu0 0.0
        %5245 = vmatprep.subr.mxu0 0.0
        %5246 = vmatpush1.msra.mxu0 0.0
        %5247 = vmatprep.subr.mxu0 0.0
        %5248 = vmatpush1.msra.mxu0 0.0
        %5249 = vmatprep.subr.mxu0 0.0
        %5250 = vmatpush1.msra.mxu0 %v4727
        %5251 = vmatprep.subr.mxu0 0.0
        %5252 = vmatpush1.msra.mxu0 %v4591
        %5253 = vmatprep.subr.mxu0 0.0
        %5254 = vmatpush2.msra.mxu0 0.0
        %5255 = vmatprep.subr.mxu0 0.0
        %5256 = vmatpush2.msra.mxu0 0.0
        %5257 = vmatprep.subr.mxu0 0.0
        %5258 = vmatpush2.msra.mxu0 0.0
        %5259 = vmatprep.subr.mxu0 0.0
        %5260 = vmatpush2.msra.mxu0 0.0
        %5261 = vmatprep.subr.mxu0 0.0
        %5262 = vmatpush2.msra.mxu0 0.0
        %5263 = vmatprep.subr.mxu0 0.0
        %5264 = vmatpush2.msra.mxu0 0.0
        %5265 = vmatprep.subr.mxu0 0.0
        %5266 = vmatpush2.msra.mxu0 0.0
        %5267 = vmatprep.subr.mxu0 0.0
        %5268 = vmatpush2.msra.mxu0 0.0
        %5269 = vmatprep.subr.mxu0 0.0
        %5270 = vmatpush2.msra.mxu0 0.0
        %5271 = vmatprep.subr.mxu0 0.0
        %5272 = vmatpush2.msra.mxu0 0.0
        %5273 = vmatprep.subr.mxu0 0.0
        %5274 = vmatpush2.msra.mxu0 0.0
        %5275 = vmatprep.subr.mxu0 0.0
        %5276 = vmatpush2.msra.mxu0 0.0
        %5277 = vmatprep.subr.mxu0 0.0
        %5278 = vmatpush2.msra.mxu0 0.0
        %5279 = vmatprep.subr.mxu0 0.0
        %5280 = vmatpush2.msra.mxu0 0.0
        %5281 = vmatprep.subr.mxu0 0.0
        %5282 = vmatpush2.msra.mxu0 0.0
        %5283 = vmatprep.subr.mxu0 0.0
        %5284 = vmatpush2.msra.mxu0 0.0
        %5285 = vmatprep.mubr.f32.mxu0 0.0
        %5286 = vmatmul.mubr.f32.gmra.mxu0 %v5216
        %v5287 = vpop.f32.mrf.mxu0
        %v5288 = vadd.f32 0.0, %v5287
        %v5289 = vpop.f32.mrf.mxu0
        %5290 = vmatprep.mubr.f32.mxu0 0.0
        %5291 = vmatmul.mubr.f32.gmra.mxu0 %v5219
        %v5292 = vpop.f32.mrf.mxu0
        %v5293 = vadd.f32 0.0, %v5292
        %v5294 = vpop.f32.mrf.mxu0
        %5295 = vdwg.mxu0
        %v5297 = vsel %vm1723, %v4276, 0
        %v5300 = vsel %vm1723, %v4412, 0
        %5302 = vmatprep.subr.mxu0 0.0
        %5303 = vmatpush1.msra.mxu0 0.0
        %5304 = vmatprep.subr.mxu0 0.0
        %5305 = vmatpush1.msra.mxu0 0.0
        %5306 = vmatprep.subr.mxu0 0.0
        %5307 = vmatpush1.msra.mxu0 0.0
        %5308 = vmatprep.subr.mxu0 0.0
        %5309 = vmatpush1.msra.mxu0 0.0
        %5310 = vmatprep.subr.mxu0 0.0
        %5311 = vmatpush1.msra.mxu0 0.0
        %5312 = vmatprep.subr.mxu0 0.0
        %5313 = vmatpush1.msra.mxu0 0.0
        %5314 = vmatprep.subr.mxu0 0.0
        %5315 = vmatpush1.msra.mxu0 0.0
        %5316 = vmatprep.subr.mxu0 0.0
        %5317 = vmatpush1.msra.mxu0 0.0
        %5318 = vmatprep.subr.mxu0 0.0
        %5319 = vmatpush1.msra.mxu0 0.0
        %5320 = vmatprep.subr.mxu0 0.0
        %5321 = vmatpush1.msra.mxu0 0.0
        %5322 = vmatprep.subr.mxu0 0.0
        %5323 = vmatpush1.msra.mxu0 0.0
        %5324 = vmatprep.subr.mxu0 0.0
        %5325 = vmatpush1.msra.mxu0 0.0
        %5326 = vmatprep.subr.mxu0 0.0
        %5327 = vmatpush1.msra.mxu0 0.0
        %5328 = vmatprep.subr.mxu0 0.0
        %5329 = vmatpush1.msra.mxu0 0.0
        %5330 = vmatprep.subr.mxu0 0.0
        %5331 = vmatpush1.msra.mxu0 %v4728
        %5332 = vmatprep.subr.mxu0 0.0
        %5333 = vmatpush1.msra.mxu0 %v4592
        %5334 = vmatprep.subr.mxu0 0.0
        %5335 = vmatpush2.msra.mxu0 0.0
        %5336 = vmatprep.subr.mxu0 0.0
        %5337 = vmatpush2.msra.mxu0 0.0
        %5338 = vmatprep.subr.mxu0 0.0
        %5339 = vmatpush2.msra.mxu0 0.0
        %5340 = vmatprep.subr.mxu0 0.0
        %5341 = vmatpush2.msra.mxu0 0.0
        %5342 = vmatprep.subr.mxu0 0.0
        %5343 = vmatpush2.msra.mxu0 0.0
        %5344 = vmatprep.subr.mxu0 0.0
        %5345 = vmatpush2.msra.mxu0 0.0
        %5346 = vmatprep.subr.mxu0 0.0
        %5347 = vmatpush2.msra.mxu0 0.0
        %5348 = vmatprep.subr.mxu0 0.0
        %5349 = vmatpush2.msra.mxu0 0.0
        %5350 = vmatprep.subr.mxu0 0.0
        %5351 = vmatpush2.msra.mxu0 0.0
        %5352 = vmatprep.subr.mxu0 0.0
        %5353 = vmatpush2.msra.mxu0 0.0
        %5354 = vmatprep.subr.mxu0 0.0
        %5355 = vmatpush2.msra.mxu0 0.0
        %5356 = vmatprep.subr.mxu0 0.0
        %5357 = vmatpush2.msra.mxu0 0.0
        %5358 = vmatprep.subr.mxu0 0.0
        %5359 = vmatpush2.msra.mxu0 0.0
        %5360 = vmatprep.subr.mxu0 0.0
        %5361 = vmatpush2.msra.mxu0 0.0
        %5362 = vmatprep.subr.mxu0 0.0
        %5363 = vmatpush2.msra.mxu0 0.0
        %5364 = vmatprep.subr.mxu0 0.0
        %5365 = vmatpush2.msra.mxu0 0.0
        %5366 = vmatprep.mubr.f32.mxu0 0.0
        %5367 = vmatmul.mubr.f32.gmra.mxu0 %v5297
        %v5368 = vpop.f32.mrf.mxu0
        %v5369 = vadd.f32 0.0, %v5368
        %v5370 = vpop.f32.mrf.mxu0
        %5371 = vmatprep.mubr.f32.mxu0 0.0
        %5372 = vmatmul.mubr.f32.gmra.mxu0 %v5300
        %v5373 = vpop.f32.mrf.mxu0
        %v5374 = vadd.f32 0.0, %v5373
        %v5375 = vpop.f32.mrf.mxu0
        %5376 = vdwg.mxu0
        %v5377 = vcombine.low %v4802, %v4964
        %v5378 = vcombine.high %v4802, %v4964
        %v5380 = vunpack.c.l.s4 1983009808
        %v5381 = vunpack.c.0.s8 %v5380
        %v5382 = vlaneseq
        %v5383 = vshrl.u32 %v5382, 7
        %v5384 = vsub.s32 %v5381, %v5383
        %v5385 = vrot.slane %v5377, %v5384
        %v5387 = vunpack.c.l.s4 1983009808
        %v5388 = vunpack.c.0.s8 %v5387
        %v5389 = vlaneseq
        %v5390 = vshrl.u32 %v5389, 7
        %v5391 = vsub.s32 %v5388, %v5390
        %v5392 = vrot.slane %v5378, %v5391
        %v5393 = vcombine.low %v4883, %v5045
        %v5394 = vcombine.high %v4883, %v5045
        %v5396 = vunpack.c.l.s4 1983009808
        %v5397 = vunpack.c.0.s8 %v5396
        %v5398 = vlaneseq
        %v5399 = vshrl.u32 %v5398, 7
        %v5400 = vsub.s32 %v5397, %v5399
        %v5401 = vrot.slane %v5393, %v5400
        %v5403 = vunpack.c.l.s4 1983009808
        %v5404 = vunpack.c.0.s8 %v5403
        %v5405 = vlaneseq
        %v5406 = vshrl.u32 %v5405, 7
        %v5407 = vsub.s32 %v5404, %v5406
        %v5408 = vrot.slane %v5394, %v5407
        %v5409 = vcombine.low %v5126, %v5288
        %v5410 = vcombine.high %v5126, %v5288
        %v5412 = vunpack.c.l.s4 1983009808
        %v5413 = vunpack.c.0.s8 %v5412
        %v5414 = vlaneseq
        %v5415 = vshrl.u32 %v5414, 7
        %v5416 = vsub.s32 %v5413, %v5415
        %v5417 = vrot.slane %v5409, %v5416
        %v5419 = vunpack.c.l.s4 1983009808
        %v5420 = vunpack.c.0.s8 %v5419
        %v5421 = vlaneseq
        %v5422 = vshrl.u32 %v5421, 7
        %v5423 = vsub.s32 %v5420, %v5422
        %v5424 = vrot.slane %v5410, %v5423
        %v5425 = vcombine.low %v5207, %v5369
        %v5426 = vcombine.high %v5207, %v5369
        %v5428 = vunpack.c.l.s4 1983009808
        %v5429 = vunpack.c.0.s8 %v5428
        %v5430 = vlaneseq
        %v5431 = vshrl.u32 %v5430, 7
        %v5432 = vsub.s32 %v5429, %v5431
        %v5433 = vrot.slane %v5425, %v5432
        %v5435 = vunpack.c.l.s4 1983009808
        %v5436 = vunpack.c.0.s8 %v5435
        %v5437 = vlaneseq
        %v5438 = vshrl.u32 %v5437, 7
        %v5439 = vsub.s32 %v5436, %v5438
        %v5440 = vrot.slane %v5426, %v5439
        %v5441 = vcombine.low %v5385, %v5401
        %v5442 = vcombine.high %v5385, %v5401
        %v5444 = vunpack.c.l.s4 1934713408
        %v5445 = vunpack.c.0.s8 %v5444
        %v5446 = vlaneseq
        %v5447 = vshrl.u32 %v5446, 7
        %v5448 = vsub.s32 %v5445, %v5447
        %v5449 = vrot.slane %v5441, %v5448
        %v5451 = vunpack.c.l.s4 1934713408
        %v5452 = vunpack.c.0.s8 %v5451
        %v5453 = vlaneseq
        %v5454 = vshrl.u32 %v5453, 7
        %v5455 = vsub.s32 %v5452, %v5454
        %v5456 = vrot.slane %v5442, %v5455
        %v5457 = vcombine.low %v5392, %v5408
        %v5458 = vcombine.high %v5392, %v5408
        %v5460 = vunpack.c.l.s4 1934713408
        %v5461 = vunpack.c.0.s8 %v5460
        %v5462 = vlaneseq
        %v5463 = vshrl.u32 %v5462, 7
        %v5464 = vsub.s32 %v5461, %v5463
        %v5465 = vrot.slane %v5457, %v5464
        %v5467 = vunpack.c.l.s4 1934713408
        %v5468 = vunpack.c.0.s8 %v5467
        %v5469 = vlaneseq
        %v5470 = vshrl.u32 %v5469, 7
        %v5471 = vsub.s32 %v5468, %v5470
        %v5472 = vrot.slane %v5458, %v5471
        %v5473 = vcombine.low %v5417, %v5433
        %v5474 = vcombine.high %v5417, %v5433
        %v5476 = vunpack.c.l.s4 1934713408
        %v5477 = vunpack.c.0.s8 %v5476
        %v5478 = vlaneseq
        %v5479 = vshrl.u32 %v5478, 7
        %v5480 = vsub.s32 %v5477, %v5479
        %v5481 = vrot.slane %v5473, %v5480
        %v5483 = vunpack.c.l.s4 1934713408
        %v5484 = vunpack.c.0.s8 %v5483
        %v5485 = vlaneseq
        %v5486 = vshrl.u32 %v5485, 7
        %v5487 = vsub.s32 %v5484, %v5486
        %v5488 = vrot.slane %v5474, %v5487
        %v5489 = vcombine.low %v5424, %v5440
        %v5490 = vcombine.high %v5424, %v5440
        %v5492 = vunpack.c.l.s4 1934713408
        %v5493 = vunpack.c.0.s8 %v5492
        %v5494 = vlaneseq
        %v5495 = vshrl.u32 %v5494, 7
        %v5496 = vsub.s32 %v5493, %v5495
        %v5497 = vrot.slane %v5489, %v5496
        %v5499 = vunpack.c.l.s4 1934713408
        %v5500 = vunpack.c.0.s8 %v5499
        %v5501 = vlaneseq
        %v5502 = vshrl.u32 %v5501, 7
        %v5503 = vsub.s32 %v5500, %v5502
        %v5504 = vrot.slane %v5490, %v5503
        %v5505 = vcombine.low %v5449, %v5481
        %v5506 = vcombine.high %v5449, %v5481
        %v5507 = vcombine.low %v5456, %v5488
        %v5508 = vcombine.high %v5456, %v5488
        %v5509 = vcombine.low %v5465, %v5497
        %v5510 = vcombine.high %v5465, %v5497
        %v5511 = vcombine.low %v5472, %v5504
        %v5512 = vcombine.high %v5472, %v5504
        %v5513 = vcombine.low %v4807, %v4969
        %v5514 = vcombine.high %v4807, %v4969
        %v5516 = vunpack.c.l.s4 1983009808
        %v5517 = vunpack.c.0.s8 %v5516
        %v5518 = vlaneseq
        %v5519 = vshrl.u32 %v5518, 7
        %v5520 = vsub.s32 %v5517, %v5519
        %v5521 = vrot.slane %v5513, %v5520
        %v5523 = vunpack.c.l.s4 1983009808
        %v5524 = vunpack.c.0.s8 %v5523
        %v5525 = vlaneseq
        %v5526 = vshrl.u32 %v5525, 7
        %v5527 = vsub.s32 %v5524, %v5526
        %v5528 = vrot.slane %v5514, %v5527
        %v5529 = vcombine.low %v4888, %v5050
        %v5530 = vcombine.high %v4888, %v5050
        %v5532 = vunpack.c.l.s4 1983009808
        %v5533 = vunpack.c.0.s8 %v5532
        %v5534 = vlaneseq
        %v5535 = vshrl.u32 %v5534, 7
        %v5536 = vsub.s32 %v5533, %v5535
        %v5537 = vrot.slane %v5529, %v5536
        %v5539 = vunpack.c.l.s4 1983009808
        %v5540 = vunpack.c.0.s8 %v5539
        %v5541 = vlaneseq
        %v5542 = vshrl.u32 %v5541, 7
        %v5543 = vsub.s32 %v5540, %v5542
        %v5544 = vrot.slane %v5530, %v5543
        %v5545 = vcombine.low %v5131, %v5293
        %v5546 = vcombine.high %v5131, %v5293
        %v5548 = vunpack.c.l.s4 1983009808
        %v5549 = vunpack.c.0.s8 %v5548
        %v5550 = vlaneseq
        %v5551 = vshrl.u32 %v5550, 7
        %v5552 = vsub.s32 %v5549, %v5551
        %v5553 = vrot.slane %v5545, %v5552
        %v5555 = vunpack.c.l.s4 1983009808
        %v5556 = vunpack.c.0.s8 %v5555
        %v5557 = vlaneseq
        %v5558 = vshrl.u32 %v5557, 7
        %v5559 = vsub.s32 %v5556, %v5558
        %v5560 = vrot.slane %v5546, %v5559
        %v5561 = vcombine.low %v5212, %v5374
        %v5562 = vcombine.high %v5212, %v5374
        %v5564 = vunpack.c.l.s4 1983009808
        %v5565 = vunpack.c.0.s8 %v5564
        %v5566 = vlaneseq
        %v5567 = vshrl.u32 %v5566, 7
        %v5568 = vsub.s32 %v5565, %v5567
        %v5569 = vrot.slane %v5561, %v5568
        %v5571 = vunpack.c.l.s4 1983009808
        %v5572 = vunpack.c.0.s8 %v5571
        %v5573 = vlaneseq
        %v5574 = vshrl.u32 %v5573, 7
        %v5575 = vsub.s32 %v5572, %v5574
        %v5576 = vrot.slane %v5562, %v5575
        %v5577 = vcombine.low %v5521, %v5537
        %v5578 = vcombine.high %v5521, %v5537
        %v5580 = vunpack.c.l.s4 1934713408
        %v5581 = vunpack.c.0.s8 %v5580
        %v5582 = vlaneseq
        %v5583 = vshrl.u32 %v5582, 7
        %v5584 = vsub.s32 %v5581, %v5583
        %v5585 = vrot.slane %v5577, %v5584
        %v5587 = vunpack.c.l.s4 1934713408
        %v5588 = vunpack.c.0.s8 %v5587
        %v5589 = vlaneseq
        %v5590 = vshrl.u32 %v5589, 7
        %v5591 = vsub.s32 %v5588, %v5590
        %v5592 = vrot.slane %v5578, %v5591
        %v5593 = vcombine.low %v5528, %v5544
        %v5594 = vcombine.high %v5528, %v5544
        %v5596 = vunpack.c.l.s4 1934713408
        %v5597 = vunpack.c.0.s8 %v5596
        %v5598 = vlaneseq
        %v5599 = vshrl.u32 %v5598, 7
        %v5600 = vsub.s32 %v5597, %v5599
        %v5601 = vrot.slane %v5593, %v5600
        %v5603 = vunpack.c.l.s4 1934713408
        %v5604 = vunpack.c.0.s8 %v5603
        %v5605 = vlaneseq
        %v5606 = vshrl.u32 %v5605, 7
        %v5607 = vsub.s32 %v5604, %v5606
        %v5608 = vrot.slane %v5594, %v5607
        %v5609 = vcombine.low %v5553, %v5569
        %v5610 = vcombine.high %v5553, %v5569
        %v5612 = vunpack.c.l.s4 1934713408
        %v5613 = vunpack.c.0.s8 %v5612
        %v5614 = vlaneseq
        %v5615 = vshrl.u32 %v5614, 7
        %v5616 = vsub.s32 %v5613, %v5615
        %v5617 = vrot.slane %v5609, %v5616
        %v5619 = vunpack.c.l.s4 1934713408
        %v5620 = vunpack.c.0.s8 %v5619
        %v5621 = vlaneseq
        %v5622 = vshrl.u32 %v5621, 7
        %v5623 = vsub.s32 %v5620, %v5622
        %v5624 = vrot.slane %v5610, %v5623
        %v5625 = vcombine.low %v5560, %v5576
        %v5626 = vcombine.high %v5560, %v5576
        %v5628 = vunpack.c.l.s4 1934713408
        %v5629 = vunpack.c.0.s8 %v5628
        %v5630 = vlaneseq
        %v5631 = vshrl.u32 %v5630, 7
        %v5632 = vsub.s32 %v5629, %v5631
        %v5633 = vrot.slane %v5625, %v5632
        %v5635 = vunpack.c.l.s4 1934713408
        %v5636 = vunpack.c.0.s8 %v5635
        %v5637 = vlaneseq
        %v5638 = vshrl.u32 %v5637, 7
        %v5639 = vsub.s32 %v5636, %v5638
        %v5640 = vrot.slane %v5626, %v5639
        %v5641 = vcombine.low %v5585, %v5617
        %v5642 = vcombine.high %v5585, %v5617
        %v5643 = vcombine.low %v5592, %v5624
        %v5644 = vcombine.high %v5592, %v5624
        %v5645 = vcombine.low %v5601, %v5633
        %v5646 = vcombine.high %v5601, %v5633
        %v5647 = vcombine.low %v5608, %v5640
        %v5648 = vcombine.high %v5608, %v5640
        %5650 = vrot.lane.b32.xlu0 %v5506, 16
        %v5651 = vpop.permute.xlu0 %5650
        %5654 = vrot.lane.b32.xlu0 %v5507, 32
        %v5655 = vpop.permute.xlu0 %5654
        %5658 = vrot.lane.b32.xlu0 %v5508, 48
        %v5659 = vpop.permute.xlu0 %5658
        %5662 = vrot.lane.b32.xlu0 %v5509, 64
        %v5663 = vpop.permute.xlu0 %5662
        %5666 = vrot.lane.b32.xlu0 %v5510, 80
        %v5667 = vpop.permute.xlu0 %5666
        %5670 = vrot.lane.b32.xlu0 %v5511, 96
        %v5671 = vpop.permute.xlu0 %5670
        %5674 = vrot.lane.b32.xlu0 %v5512, 112
        %v5675 = vpop.permute.xlu0 %5674
        %5678 = vrot.lane.b32.xlu0 %v5642, 16
        %v5679 = vpop.permute.xlu0 %5678
        %5682 = vrot.lane.b32.xlu0 %v5643, 32
        %v5683 = vpop.permute.xlu0 %5682
        %5686 = vrot.lane.b32.xlu0 %v5644, 48
        %v5687 = vpop.permute.xlu0 %5686
        %5690 = vrot.lane.b32.xlu0 %v5645, 64
        %v5691 = vpop.permute.xlu0 %5690
        %5694 = vrot.lane.b32.xlu0 %v5646, 80
        %v5695 = vpop.permute.xlu0 %5694
        %5698 = vrot.lane.b32.xlu0 %v5647, 96
        %v5699 = vpop.permute.xlu0 %5698
        %5702 = vrot.lane.b32.xlu0 %v5648, 112
        %v5703 = vpop.permute.xlu0 %5702
        %v5705 = vsel %vm1723, %v5505, %v5651
        %v5706 = vsel %vm349, %v5705, %v5655
        %v5707 = vsel %vm3680, %v5706, %v5659
        %v5708 = vsel %vm3683, %v5707, %v5663
        %v5709 = vsel %vm3686, %v5708, %v5667
        %v5710 = vsel %vm3689, %v5709, %v5671
        %v5711 = vsel %vm3692, %v5710, %v5675
        %v5712 = vsel %vm1723, %v5641, %v5679
        %v5713 = vsel %vm349, %v5712, %v5683
        %v5714 = vsel %vm3680, %v5713, %v5687
        %v5715 = vsel %vm3683, %v5714, %v5691
        %v5716 = vsel %vm3686, %v5715, %v5695
        %v5717 = vsel %vm3689, %v5716, %v5699
        %v5718 = vsel %vm3692, %v5717, %v5703
        %v5719 = vld [vmem:[#allocation5 + $0x58] sm:$0xff]
        %v5720 = vld [vmem:[#allocation5 + $0x60] sm:$0xff]
        %vm5721 = vcmask 64512
        %v5723 = vsel %vm5721, %v5720, 0
        %5725 = vmatprep.subr.mxu0 0.0
        %5726 = vmatpush1.msra.mxu0 0.0
        %5727 = vmatprep.subr.mxu0 0.0
        %5728 = vmatpush1.msra.mxu0 0.0
        %5729 = vmatprep.subr.mxu0 0.0
        %5730 = vmatpush1.msra.mxu0 0.0
        %5731 = vmatprep.subr.mxu0 0.0
        %5732 = vmatpush1.msra.mxu0 0.0
        %5733 = vmatprep.subr.mxu0 0.0
        %5734 = vmatpush1.msra.mxu0 0.0
        %5735 = vmatprep.subr.mxu0 0.0
        %5736 = vmatpush1.msra.mxu0 0.0
        %5737 = vmatprep.subr.mxu0 0.0
        %5738 = vmatpush1.msra.mxu0 0.0
        %5739 = vmatprep.subr.mxu0 0.0
        %5740 = vmatpush1.msra.mxu0 0.0
        %5741 = vmatprep.subr.mxu0 0.0
        %5742 = vmatpush1.msra.mxu0 0.0
        %5743 = vmatprep.subr.mxu0 0.0
        %5744 = vmatpush1.msra.mxu0 0.0
        %5745 = vmatprep.subr.mxu0 0.0
        %5746 = vmatpush1.msra.mxu0 0.0
        %5747 = vmatprep.subr.mxu0 0.0
        %5748 = vmatpush1.msra.mxu0 0.0
        %5749 = vmatprep.subr.mxu0 0.0
        %5750 = vmatpush1.msra.mxu0 0.0
        %5751 = vmatprep.subr.mxu0 0.0
        %5752 = vmatpush1.msra.mxu0 0.0
        %5753 = vmatprep.subr.mxu0 0.0
        %5754 = vmatpush1.msra.mxu0 0.0
        %5755 = vmatprep.subr.mxu0 %v5718
        %5756 = vmatpush1.msra.mxu0 %v5711
        %5757 = vmatprep.subr.mxu0 0.0
        %5758 = vmatpush2.msra.mxu0 0.0
        %5759 = vmatprep.subr.mxu0 0.0
        %5760 = vmatpush2.msra.mxu0 0.0
        %5761 = vmatprep.subr.mxu0 0.0
        %5762 = vmatpush2.msra.mxu0 0.0
        %5763 = vmatprep.subr.mxu0 0.0
        %5764 = vmatpush2.msra.mxu0 0.0
        %5765 = vmatprep.subr.mxu0 0.0
        %5766 = vmatpush2.msra.mxu0 0.0
        %5767 = vmatprep.subr.mxu0 0.0
        %5768 = vmatpush2.msra.mxu0 0.0
        %5769 = vmatprep.subr.mxu0 0.0
        %5770 = vmatpush2.msra.mxu0 0.0
        %5771 = vmatprep.subr.mxu0 0.0
        %5772 = vmatpush2.msra.mxu0 0.0
        %5773 = vmatprep.subr.mxu0 0.0
        %5774 = vmatpush2.msra.mxu0 0.0
        %5775 = vmatprep.subr.mxu0 0.0
        %5776 = vmatpush2.msra.mxu0 0.0
        %5777 = vmatprep.subr.mxu0 0.0
        %5778 = vmatpush2.msra.mxu0 0.0
        %5779 = vmatprep.subr.mxu0 0.0
        %5780 = vmatpush2.msra.mxu0 0.0
        %5781 = vmatprep.subr.mxu0 0.0
        %5782 = vmatpush2.msra.mxu0 0.0
        %5783 = vmatprep.subr.mxu0 0.0
        %5784 = vmatpush2.msra.mxu0 0.0
        %5785 = vmatprep.subr.mxu0 0.0
        %5786 = vmatpush2.msra.mxu0 0.0
        %5787 = vmatprep.subr.mxu0 0.0
        %5788 = vmatpush2.msra.mxu0 0.0
        %5789 = vmatprep.mubr.f32.mxu0 0.0
        %5790 = vmatmul.mubr.f32.gmra.mxu0 %v5723
        %v5791 = vpop.f32.mrf.mxu0
        %v5792 = vadd.f32 0.0, %v5791
        %v5793 = vpop.f32.mrf.mxu0
        %v5794 = vadd.f32 0.0, %v5793
        %5795 = vdwg.mxu0
        %v5797 = vsel %vm1723, %v5719, 0
        %5799 = vmatprep.subr.mxu0 0.0
        %5800 = vmatpush1.msra.mxu0 0.0
        %5801 = vmatprep.subr.mxu0 0.0
        %5802 = vmatpush1.msra.mxu0 0.0
        %5803 = vmatprep.subr.mxu0 0.0
        %5804 = vmatpush1.msra.mxu0 0.0
        %5805 = vmatprep.subr.mxu0 0.0
        %5806 = vmatpush1.msra.mxu0 0.0
        %5807 = vmatprep.subr.mxu0 0.0
        %5808 = vmatpush1.msra.mxu0 0.0
        %5809 = vmatprep.subr.mxu0 0.0
        %5810 = vmatpush1.msra.mxu0 0.0
        %5811 = vmatprep.subr.mxu0 0.0
        %5812 = vmatpush1.msra.mxu0 0.0
        %5813 = vmatprep.subr.mxu0 0.0
        %5814 = vmatpush1.msra.mxu0 0.0
        %5815 = vmatprep.subr.mxu0 0.0
        %5816 = vmatpush1.msra.mxu0 0.0
        %5817 = vmatprep.subr.mxu0 0.0
        %5818 = vmatpush1.msra.mxu0 0.0
        %5819 = vmatprep.subr.mxu0 0.0
        %5820 = vmatpush1.msra.mxu0 0.0
        %5821 = vmatprep.subr.mxu0 0.0
        %5822 = vmatpush1.msra.mxu0 0.0
        %5823 = vmatprep.subr.mxu0 0.0
        %5824 = vmatpush1.msra.mxu0 0.0
        %5825 = vmatprep.subr.mxu0 0.0
        %5826 = vmatpush1.msra.mxu0 0.0
        %5827 = vmatprep.subr.mxu0 %v3894
        %5828 = vmatpush1.msra.mxu0 %v3893
        %5829 = vmatprep.subr.mxu0 %v3892
        %5830 = vmatpush1.msra.mxu0 %v3891
        %5831 = vmatprep.subr.mxu0 0.0
        %5832 = vmatpush2.msra.mxu0 0.0
        %5833 = vmatprep.subr.mxu0 0.0
        %5834 = vmatpush2.msra.mxu0 0.0
        %5835 = vmatprep.subr.mxu0 0.0
        %5836 = vmatpush2.msra.mxu0 0.0
        %5837 = vmatprep.subr.mxu0 0.0
        %5838 = vmatpush2.msra.mxu0 0.0
        %5839 = vmatprep.subr.mxu0 0.0
        %5840 = vmatpush2.msra.mxu0 0.0
        %5841 = vmatprep.subr.mxu0 0.0
        %5842 = vmatpush2.msra.mxu0 0.0
        %5843 = vmatprep.subr.mxu0 0.0
        %5844 = vmatpush2.msra.mxu0 0.0
        %5845 = vmatprep.subr.mxu0 0.0
        %5846 = vmatpush2.msra.mxu0 0.0
        %5847 = vmatprep.subr.mxu0 0.0
        %5848 = vmatpush2.msra.mxu0 0.0
        %5849 = vmatprep.subr.mxu0 0.0
        %5850 = vmatpush2.msra.mxu0 0.0
        %5851 = vmatprep.subr.mxu0 0.0
        %5852 = vmatpush2.msra.mxu0 0.0
        %5853 = vmatprep.subr.mxu0 0.0
        %5854 = vmatpush2.msra.mxu0 0.0
        %5855 = vmatprep.subr.mxu0 0.0
        %5856 = vmatpush2.msra.mxu0 0.0
        %5857 = vmatprep.subr.mxu0 0.0
        %5858 = vmatpush2.msra.mxu0 0.0
        %5859 = vmatprep.subr.mxu0 0.0
        %5860 = vmatpush2.msra.mxu0 0.0
        %5861 = vmatprep.subr.mxu0 0.0
        %5862 = vmatpush2.msra.mxu0 0.0
        %5863 = vmatprep.mubr.f32.mxu0 0.0
        %5864 = vmatmul.mubr.f32.gmra.mxu0 %v5797
        %v5865 = vpop.f32.mrf.mxu0
        %v5866 = vadd.f32 %v5792, %v5865
        %v5867 = vpop.f32.mrf.mxu0
        %v5868 = vadd.f32 %v5794, %v5867
        %5869 = vdwg.mxu0
        %v5870 = vld [vmem:[#allocation5 + $0x68] sm:$0xff]
        %5872 = vset.pattern.permute.xlu0 0
        %5873 = vperm.xlu0 %5872, %v5870
        %v5874 = vpop.permute.xlu0 %5873
        %v5876 = vadd.f32 %v5866, %v5874
        %v5877 = vadd.f32 %v5868, %v5874
        %5878 = vst [vmem:[%s174] sm:$0xff] %v5876
        %5879 = vst [vmem:[%s174 + $0x8] sm:$0xff] %v5877
        %s5880 = sand.u32 %s75, 1
        %s5881 = scalar_lea.sflag [#allocation4], %s5880
        %s5882 = sand.u32 %s75, 1
        %s5883 = smul.addr %s5882, 16
        %s5884 = scalar_lea.vmem [#allocation7], %s5883
        // Predicated region
        $region37: #{tpu_custom_call.1} parent=27 // pred_check
          %p5885 = pneg %p85
        $region38: #{tpu_custom_call.1} parent=27 // pred_check_branch
          %5887 = sbr.rel (%p5885) target = $region40
        $region39: #{tpu_custom_call.1} parent=27 // pred_region
          %s5889 = ssub.s32 256, 256
          %5890 = vsyncadd %s5881, %s5889
          %s5891 = smul.addr %s20, 2
          %s5892 = smul.addr %s5891, 128
          %s5893 = scalar_lea.hbm %s2, %s5892
          %s5895 = sshll.u32 %s5884, 4
          %s5896 = int_to_ptr.vmem [resolvable:$true] %s5895
          %5898 = dma.vmem_to_hbm [thread:$0]  %s5896, 256, %s5893, %s5881
        $region40: #{tpu_custom_call.1} parent=27 // pred_fallthru
          _
      $region28: #{tpu_custom_call.1} parent=5 // pred_fallthru
        _
      %p5899 = scmp.le.s32.totalorder 2, %s15
      // Predicated region
      $region41: #{tpu_custom_call.1} parent=5 // pred_check
        %p5900 = pneg %p5899
      $region42: #{tpu_custom_call.1} parent=5 // pred_check_branch
        %5902 = sbr.rel (%p5900) target = $region44
      $region43: #{tpu_custom_call.1} parent=5 // pred_region
        %s5903 = ssub.s32 %s15, 2
        // Predicated region
        $region45: #{tpu_custom_call.1} parent=43 // pred_check
          %p5904 = pneg %p91
        $region46: #{tpu_custom_call.1} parent=43 // pred_check_branch
          %5906 = sbr.rel (%p5904) target = $region48
        $region47: #{tpu_custom_call.1} parent=43 // pred_region
          %s5907 = sand.u32 %s76, 1
          %s5908 = scalar_lea.sflag [#allocation4], %s5907
          %s5909 = sand.u32 %s76, 1
          %s5910 = smul.addr %s5909, 16
          %s5911 = scalar_lea.vmem [#allocation7], %s5910
          %5912 = dma.done %s5908, 256
        $region48: #{tpu_custom_call.1} parent=43 // pred_fallthru
          _
      $region44: #{tpu_custom_call.1} parent=5 // pred_fallthru
        _
    $region6: #{tpu_custom_call.1} parent=1 // loop_footer
      %s19 = sadd.s32 1, %s15
    $region7: #{tpu_custom_call.1} parent=1 // loop_footer_branch
      %14 = sbr.rel target = $region3
    $region8: #{tpu_custom_call.1} parent=1 // loop_exit
      _
    %5913 = vsyncpa [#allocation3], 1
    %s5914 = scalar_lea.sflag [#allocation3], 1
    %5915 = vsyncpa %s5914, 1
    %5916 = vsyncpa [#allocation6], 1
    %5917 = vsyncpa [#allocation4], 1
    %s5918 = scalar_lea.sflag [#allocation4], 1
    %5919 = vsyncpa %s5918, 1

</llo_original>
